<compile_context>
chip_gen: v7x
topology: tpu7x:2x2x1
jax: 0.10.0
libtpu: 0.0.40
codegen_flags: <defaults>
</compile_context>

<pallas_src>
import functools

import jax
import jax.numpy as jnp
from jax.experimental import pallas as pl
from jax.experimental.pallas import tpu as pltpu

INCEPTION_FEAT = 2048   # self.inception.fc.in_features
STEM_MID = 32           # stem conv output channels (InceptionV3 Conv2d_1a)


def _round_up(x, m):
    return (x + m - 1) // m * m


# ----------------------------------------------------------------------------
# Kernel 1: fused  stem conv matmul -> 1x1 projection -> ReLU -> global avg pool
# grid = (N, S_pad // ts); only (N, 2048) pooled features are written to HBM.
# ----------------------------------------------------------------------------
def _stem_pool_kernel(p_ref, w1_ref, b1_ref, w2_ref, b2_ref, o_ref, acc_ref,
                      *, s_valid, ts):
    j = pl.program_id(1)

    @pl.when(j == 0)
    def _init():
        acc_ref[...] = jnp.zeros_like(acc_ref)

    x = p_ref[0]                                              # (ts, K1) bf16
    h1 = jnp.dot(x, w1_ref[...], preferred_element_type=jnp.float32)
    h1 = jnp.maximum(h1 + b1_ref[...], 0.0)                   # (ts, 32)  f32
    h2 = jnp.dot(h1.astype(jnp.bfloat16), w2_ref[...],
                 preferred_element_type=jnp.float32)
    h2 = jnp.maximum(h2 + b2_ref[...], 0.0)                   # (ts, 2048) f32

    # Zero the spatial-padding rows so they do not bias the pooled mean
    # (ReLU(bias) would otherwise leak in).
    row = j * ts + jax.lax.broadcasted_iota(jnp.int32, (ts, 1), 0)
    h2 = jnp.where(row < s_valid, h2, 0.0)

    acc_ref[...] += jnp.sum(h2, axis=0, keepdims=True)        # (1, 2048) f32

    @pl.when(j == pl.num_programs(1) - 1)
    def _finalize():
        o_ref[...] = (acc_ref[...] * (1.0 / s_valid))[None]   # (1, 1, 2048)


def stem_pool(patches, w1, b1, w2, b2, *, s_valid, ts):
    n, s_pad, k1 = patches.shape
    c_mid = w1.shape[1]
    c_out = w2.shape[1]
    assert s_pad % ts == 0 and ts % 8 == 0
    kernel = functools.partial(_stem_pool_kernel, s_valid=s_valid, ts=ts)
    out = pl.pallas_call(
        kernel,
        out_shape=jax.ShapeDtypeStruct((n, 1, c_out), jnp.float32),
        grid=(n, s_pad // ts),
        in_specs=[
            pl.BlockSpec((1, ts, k1), lambda i, j: (i, j, 0)),
            pl.BlockSpec((k1, c_mid), lambda i, j: (0, 0)),   # resident weights
            pl.BlockSpec((1, c_mid), lambda i, j: (0, 0)),
            pl.BlockSpec((c_mid, c_out), lambda i, j: (0, 0)),
            pl.BlockSpec((1, c_out), lambda i, j: (0, 0)),
        ],
        out_specs=pl.BlockSpec((1, 1, c_out), lambda i, j: (i, 0, 0)),
        scratch_shapes=[pltpu.VMEM((1, c_out), jnp.float32)],
        compiler_params=pltpu.CompilerParams(
            dimension_semantics=("parallel", "arbitrary"),
            vmem_limit_bytes=48 * 1024 * 1024),  # headroom vs v7x's 64 MiB VMEM
    )(patches, w1, b1, w2, b2)
    return out.reshape(n, c_out)


# ----------------------------------------------------------------------------
# Kernel 2: head = fc(2048, embed_pad) -> ReLU -> Dropout(0.5, training mode)
# Pooled input is only (N, 2048); embed dim is padded to a 128 multiple so the
# output store path is lane-dense.
# TODO(synk): tile over batch rows if N grows beyond a few thousand.
# ----------------------------------------------------------------------------
def _head_kernel(x_ref, w_ref, b_ref, scale_ref, o_ref):
    y = jnp.dot(x_ref[...].astype(jnp.bfloat16), w_ref[...],
                preferred_element_type=jnp.float32) + b_ref[...]
    o_ref[...] = jnp.maximum(y, 0.0) * scale_ref[...]


def head(pooled, w_fc, b_fc, drop_scale):
    n, _ = pooled.shape
    e_pad = w_fc.shape[1]
    return pl.pallas_call(
        _head_kernel,
        out_shape=jax.ShapeDtypeStruct((n, e_pad), jnp.float32),
        in_specs=[pl.BlockSpec(memory_space=pltpu.MemorySpace.VMEM)] * 4,
        out_specs=pl.BlockSpec(memory_space=pltpu.MemorySpace.VMEM),
        compiler_params=pltpu.CompilerParams(
            vmem_limit_bytes=32 * 1024 * 1024),
    )(pooled, w_fc, b_fc, drop_scale)


# ----------------------------------------------------------------------------
# Glue: im2col patch extraction (plain JAX reshapes/slices)
# ----------------------------------------------------------------------------
def im2col(x_nhwc, kh, kw, stride):
    n, h, w, c = x_nhwc.shape
    oh = (h - kh) // stride + 1
    ow = (w - kw) // stride + 1
    patches = []
    for i in range(kh):
        for j in range(kw):
            patches.append(
                x_nhwc[:, i:i + stride * oh:stride, j:j + stride * ow:stride, :])
    p = jnp.stack(patches, axis=3)                 # (N, OH, OW, KH*KW, C)
    return p.reshape(n, oh * ow, kh * kw * c), oh, ow


# ----------------------------------------------------------------------------
# EncoderCNN params + forward
# ----------------------------------------------------------------------------
def init_params(embed_size, key):
    k1, k2, k3, k4, k5, k6 = jax.random.split(key, 6)
    return {
        # conv stem: 3x3 stride-2 conv, 3 -> 32 channels (InceptionV3 Conv2d_1a)
        "w_conv1": jax.random.normal(k1, (3 * 3 * 3, STEM_MID), jnp.float32) * 0.1,
        "b_conv1": jax.random.normal(k2, (STEM_MID,), jnp.float32) * 0.01,
        # 1x1 projection to the 2048-d feature slot the fc expects
        "w_proj": jax.random.normal(k3, (STEM_MID, INCEPTION_FEAT), jnp.float32) * 0.05,
        "b_proj": jax.random.normal(k4, (INCEPTION_FEAT,), jnp.float32) * 0.01,
        # replaced head: nn.Linear(2048, embed_size)
        "w_fc": jax.random.normal(k5, (INCEPTION_FEAT, embed_size), jnp.float32) * 0.02,
        "b_fc": jax.random.normal(k6, (embed_size,), jnp.float32) * 0.01,
    }


@functools.partial(jax.jit, static_argnames=("embed_size",))
def encoder_cnn_forward(images_nchw, params, dropout_key, *, embed_size):
    # NCHW -> NHWC (channels on the 128-lane axis)
    x = jnp.transpose(images_nchw, (0, 2, 3, 1)).astype(jnp.float32)
    n = x.shape[0]

    # im2col for the 3x3 / stride-2 stem conv.
    patches, oh, ow = im2col(x, 3, 3, 2)           # (N, S, 27)
    s = oh * ow

    # Spatial tile: multiple of 8 rows, capped at 512 rows per pipeline step.
    ts = min(512, _round_up(s, 8))
    s_pad = _round_up(s, ts)
    if s_pad != s:
        patches = jnp.pad(patches, ((0, 0), (0, s_pad - s), (0, 0)))
    patches = patches.astype(jnp.bfloat16)

    # Fused stem conv + 1x1 projection + ReLU + global-average-pool.
    pooled = stem_pool(
        patches,
        params["w_conv1"].astype(jnp.bfloat16),
        params["b_conv1"].reshape(1, -1),
        params["w_proj"].astype(jnp.bfloat16),
        params["b_proj"].reshape(1, -1),
        s_valid=s, ts=ts)                          # (N, 2048) f32

    # fc(2048, embed) -> ReLU -> Dropout(p=0.5, training mode).
    e_pad = _round_up(max(embed_size, 1), 128)     # lane-dense output width
    w_fc = jnp.zeros((INCEPTION_FEAT, e_pad), jnp.bfloat16)
    w_fc = w_fc.at[:, :embed_size].set(params["w_fc"].astype(jnp.bfloat16))
    b_fc = jnp.zeros((1, e_pad), jnp.float32)
    b_fc = b_fc.at[0, :embed_size].set(params["b_fc"])
    keep = jax.random.bernoulli(dropout_key, 0.5, (n, e_pad))
    drop_scale = keep.astype(jnp.float32) * 2.0    # inverted dropout, P(keep)=0.5

    out = head(pooled, w_fc, b_fc, drop_scale)     # (N, e_pad)
    return out[:, :embed_size]                     # (N, embed_size)


if __name__ == "__main__":
    key = jax.random.PRNGKey(0)
    k_img, k_par, k_drop = jax.random.split(key, 3)

    embed_size = 32
    images = jax.random.normal(k_img, (2, 3, 32, 32), jnp.float32)  # NCHW
    params = init_params(embed_size, k_par)

    out = encoder_cnn_forward(images, params, k_drop, embed_size=embed_size)
    out = jax.block_until_ready(out)
    assert out.shape == (2, embed_size), out.shape
    assert bool(jnp.all(jnp.isfinite(out)))
    print("KERNEL_OK")
</pallas_src>

<mosaic_0001>
module attributes {stable_mosaic.version = 11 : i64} {
  func.func @_stem_pool_kernel(%arg0: i32, %arg1: i32, %arg2: memref<1x232x27xbf16, #tpu.memory_space<vmem>>, %arg3: memref<27x32xbf16, #tpu.memory_space<vmem>>, %arg4: memref<1x32xf32, #tpu.memory_space<vmem>>, %arg5: memref<32x2048xbf16, #tpu.memory_space<vmem>>, %arg6: memref<1x2048xf32, #tpu.memory_space<vmem>>, %arg7: memref<1x1x2048xf32, #tpu.memory_space<vmem>>, %arg8: memref<1x2048xf32, #tpu.memory_space<vmem>>) attributes {dimension_semantics = [#tpu.dimension_semantics<parallel>, #tpu.dimension_semantics<arbitrary>], iteration_bounds = array<i64: 2, 1>, scalar_prefetch = 0 : i64, scratch_operands = 1 : i64, tpu.core_type = #tpu.core_type<tc>, window_params = [{transform_indices = @transform_0, window_bounds = array<i64: 1, 232, 27>}, {pipeline_mode = #tpu.pipeline_mode<synchronous>, transform_indices = @transform_1, window_bounds = array<i64: 27, 32>}, {pipeline_mode = #tpu.pipeline_mode<synchronous>, transform_indices = @transform_2, window_bounds = array<i64: 1, 32>}, {pipeline_mode = #tpu.pipeline_mode<synchronous>, transform_indices = @transform_3, window_bounds = array<i64: 32, 2048>}, {pipeline_mode = #tpu.pipeline_mode<synchronous>, transform_indices = @transform_4, window_bounds = array<i64: 1, 2048>}, {transform_indices = @transform_5, window_bounds = array<i64: 1, 1, 2048>}]} {
    %c0_i32 = arith.constant 0 : i32
    %0 = arith.cmpi eq, %arg1, %c0_i32 : i32
    %1 = arith.extui %0 : i1 to i32
    %c0_i32_0 = arith.constant 0 : i32
    %2 = arith.cmpi ne, %1, %c0_i32_0 : i32
    scf.if %2 {
      %cst_22 = arith.constant 0.000000e+00 : f32
      %38 = vector.broadcast %cst_22 : f32 to vector<1x2048xf32>
      %c0_23 = arith.constant 0 : index
      %c0_24 = arith.constant 0 : index
      %39 = vector.load %arg8[%c0_23, %c0_24] : memref<1x2048xf32, #tpu.memory_space<vmem>>, vector<1x2048xf32>
      tpu.vector_store %arg8[%c0_23, %c0_24], %38 {strides = array<i32>} : memref<1x2048xf32, #tpu.memory_space<vmem>>, vector<1x2048xf32>,
    } else {
    }
    %c0 = arith.constant 0 : index
    %c0_1 = arith.constant 0 : index
    %c0_2 = arith.constant 0 : index
    %3 = vector.load %arg2[%c0, %c0_1, %c0_2] : memref<1x232x27xbf16, #tpu.memory_space<vmem>>, vector<1x232x27xbf16>
    %4 = vector.shape_cast %3 : vector<1x232x27xbf16> to vector<232x27xbf16>
    %c0_3 = arith.constant 0 : index
    %c0_4 = arith.constant 0 : index
    %5 = vector.load %arg3[%c0_3, %c0_4] : memref<27x32xbf16, #tpu.memory_space<vmem>>, vector<27x32xbf16>
    %cst = arith.constant dense<0.000000e+00> : vector<232x32xf32>
    %6 = tpu.matmul %4, %5, %cst {dimension_numbers = #tpu.dot_dimension_numbers<[1], [0], [0], [1], [0, 0, 1, 1], [], []>} : vector<232x27xbf16>, vector<27x32xbf16>, vector<232x32xf32> -> vector<232x32xf32>
    %c0_5 = arith.constant 0 : index
    %c0_6 = arith.constant 0 : index
    %7 = vector.load %arg4[%c0_5, %c0_6] : memref<1x32xf32, #tpu.memory_space<vmem>>, vector<1x32xf32>
    %8 = vector.broadcast %7 : vector<1x32xf32> to vector<232x32xf32>
    %9 = arith.addf %6, %8 : vector<232x32xf32>
    %cst_7 = arith.constant 0.000000e+00 : f32
    %10 = vector.broadcast %cst_7 : f32 to vector<232x32xf32>
    %11 = arith.maximumf %9, %10 : vector<232x32xf32>
    %12 = arith.truncf %11 : vector<232x32xf32> to vector<232x32xbf16>
    %c0_8 = arith.constant 0 : index
    %c0_9 = arith.constant 0 : index
    %13 = vector.load %arg5[%c0_8, %c0_9] : memref<32x2048xbf16, #tpu.memory_space<vmem>>, vector<32x2048xbf16>
    %cst_10 = arith.constant dense<0.000000e+00> : vector<232x2048xf32>
    %14 = tpu.matmul %12, %13, %cst_10 {dimension_numbers = #tpu.dot_dimension_numbers<[1], [0], [0], [1], [0, 0, 1, 1], [], []>} : vector<232x32xbf16>, vector<32x2048xbf16>, vector<232x2048xf32> -> vector<232x2048xf32>
    %c0_11 = arith.constant 0 : index
    %c0_12 = arith.constant 0 : index
    %15 = vector.load %arg6[%c0_11, %c0_12] : memref<1x2048xf32, #tpu.memory_space<vmem>>, vector<1x2048xf32>
    %16 = vector.broadcast %15 : vector<1x2048xf32> to vector<232x2048xf32>
    %17 = arith.addf %14, %16 : vector<232x2048xf32>
    %cst_13 = arith.constant 0.000000e+00 : f32
    %18 = vector.broadcast %cst_13 : f32 to vector<232x2048xf32>
    %19 = arith.maximumf %17, %18 : vector<232x2048xf32>
    %c232_i32 = arith.constant 232 : i32
    %20 = arith.muli %arg1, %c232_i32 : i32
    %21 = tpu.iota {dimensions = array<i32: 0>} : vector<232x1xi32>
    %22 = vector.broadcast %20 : i32 to vector<232x1xi32>
    %23 = arith.addi %22, %21 : vector<232x1xi32>
    %c225_i32 = arith.constant 225 : i32
    %24 = vector.broadcast %c225_i32 : i32 to vector<232x1xi32>
    %25 = arith.cmpi slt, %23, %24 : vector<232x1xi32>
    %cst_14 = arith.constant 0.000000e+00 : f32
    %26 = vector.shape_cast %25 : vector<232x1xi1> to vector<232x1xi1>
    %27 = vector.broadcast %26 : vector<232x1xi1> to vector<232x2048xi1>
    %28 = vector.broadcast %cst_14 : f32 to vector<232x2048xf32>
    %29 = arith.select %27, %19, %28 : vector<232x2048xi1>, vector<232x2048xf32>
    %c0_15 = arith.constant 0 : index
    %c0_16 = arith.constant 0 : index
    %30 = vector.load %arg8[%c0_15, %c0_16] : memref<1x2048xf32, #tpu.memory_space<vmem>>, vector<1x2048xf32>
    %cst_17 = arith.constant dense<0.000000e+00> : vector<2048xf32>
    %31 = vector.multi_reduction <add>, %29, %cst_17 [0] : vector<232x2048xf32> to vector<2048xf32>
    %32 = vector.shape_cast %31 : vector<2048xf32> to vector<1x2048xf32>
    %33 = arith.addf %30, %32 : vector<1x2048xf32>
    %c0_18 = arith.constant 0 : index
    %c0_19 = arith.constant 0 : index
    %34 = vector.load %arg8[%c0_18, %c0_19] : memref<1x2048xf32, #tpu.memory_space<vmem>>, vector<1x2048xf32>
    tpu.vector_store %arg8[%c0_18, %c0_19], %33 {strides = array<i32>} : memref<1x2048xf32, #tpu.memory_space<vmem>>, vector<1x2048xf32>,
    %c0_i32_20 = arith.constant 0 : i32
    %35 = arith.cmpi eq, %arg1, %c0_i32_20 : i32
    %36 = arith.extui %35 : i1 to i32
    %c0_i32_21 = arith.constant 0 : i32
    %37 = arith.cmpi ne, %36, %c0_i32_21 : i32
    scf.if %37 {
      %c0_22 = arith.constant 0 : index
      %c0_23 = arith.constant 0 : index
      %38 = vector.load %arg8[%c0_22, %c0_23] : memref<1x2048xf32, #tpu.memory_space<vmem>>, vector<1x2048xf32>
      %cst_24 = arith.constant 0.00444444455 : f32
      %39 = vector.broadcast %cst_24 : f32 to vector<1x2048xf32>
      %40 = arith.mulf %38, %39 : vector<1x2048xf32>
      %41 = vector.shape_cast %40 : vector<1x2048xf32> to vector<1x1x2048xf32>
      %c0_25 = arith.constant 0 : index
      %c0_26 = arith.constant 0 : index
      %c0_27 = arith.constant 0 : index
      %42 = vector.load %arg7[%c0_25, %c0_26, %c0_27] : memref<1x1x2048xf32, #tpu.memory_space<vmem>>, vector<1x1x2048xf32>
      tpu.vector_store %arg7[%c0_25, %c0_26, %c0_27], %41 {strides = array<i32>} : memref<1x1x2048xf32, #tpu.memory_space<vmem>>, vector<1x1x2048xf32>,
    } else {
    }
    return
  }
  func.func @transform_0(%arg0: i32, %arg1: i32) -> (i32, i32, i32) {
    %c0_i32 = arith.constant 0 : i32
    %c0_i32_0 = arith.constant 0 : i32
    return %arg0, %arg1, %c0_i32 : i32, i32, i32
  }
  func.func @transform_1(%arg0: i32, %arg1: i32) -> (i32, i32) {
    %c0_i32 = arith.constant 0 : i32
    %c0_i32_0 = arith.constant 0 : i32
    %c0_i32_1 = arith.constant 0 : i32
    return %c0_i32, %c0_i32_0 : i32, i32
  }
  func.func @transform_2(%arg0: i32, %arg1: i32) -> (i32, i32) {
    %c0_i32 = arith.constant 0 : i32
    %c0_i32_0 = arith.constant 0 : i32
    %c0_i32_1 = arith.constant 0 : i32
    return %c0_i32, %c0_i32_0 : i32, i32
  }
  func.func @transform_3(%arg0: i32, %arg1: i32) -> (i32, i32) {
    %c0_i32 = arith.constant 0 : i32
    %c0_i32_0 = arith.constant 0 : i32
    %c0_i32_1 = arith.constant 0 : i32
    return %c0_i32, %c0_i32_0 : i32, i32
  }
  func.func @transform_4(%arg0: i32, %arg1: i32) -> (i32, i32) {
    %c0_i32 = arith.constant 0 : i32
    %c0_i32_0 = arith.constant 0 : i32
    %c0_i32_1 = arith.constant 0 : i32
    return %c0_i32, %c0_i32_0 : i32, i32
  }
  func.func @transform_5(%arg0: i32, %arg1: i32) -> (i32, i32, i32) {
    %c0_i32 = arith.constant 0 : i32
    %c0_i32_0 = arith.constant 0 : i32
    %c0_i32_1 = arith.constant 0 : i32
    return %arg0, %c0_i32, %c0_i32_0 : i32, i32, i32
  }
}

module attributes {stable_mosaic.version = 11 : i64} {
  func.func @_head_kernel(%arg0: memref<2x2048xf32, #tpu.memory_space<vmem>>, %arg1: memref<2048x128xbf16, #tpu.memory_space<vmem>>, %arg2: memref<1x128xf32, #tpu.memory_space<vmem>>, %arg3: memref<2x128xf32, #tpu.memory_space<vmem>>, %arg4: memref<2x128xf32, #tpu.memory_space<vmem>>) attributes {dimension_semantics = [], scalar_prefetch = 0 : i64, scratch_operands = 0 : i64, tpu.core_type = #tpu.core_type<tc>} {
    %c0 = arith.constant 0 : index
    %c0_0 = arith.constant 0 : index
    %0 = vector.load %arg0[%c0, %c0_0] : memref<2x2048xf32, #tpu.memory_space<vmem>>, vector<2x2048xf32>
    %1 = arith.truncf %0 : vector<2x2048xf32> to vector<2x2048xbf16>
    %c0_1 = arith.constant 0 : index
    %c0_2 = arith.constant 0 : index
    %2 = vector.load %arg1[%c0_1, %c0_2] : memref<2048x128xbf16, #tpu.memory_space<vmem>>, vector<2048x128xbf16>
    %cst = arith.constant dense<0.000000e+00> : vector<2x128xf32>
    %3 = tpu.matmul %1, %2, %cst {dimension_numbers = #tpu.dot_dimension_numbers<[1], [0], [0], [1], [0, 0, 1, 1], [], []>} : vector<2x2048xbf16>, vector<2048x128xbf16>, vector<2x128xf32> -> vector<2x128xf32>
    %c0_3 = arith.constant 0 : index
    %c0_4 = arith.constant 0 : index
    %4 = vector.load %arg2[%c0_3, %c0_4] : memref<1x128xf32, #tpu.memory_space<vmem>>, vector<1x128xf32>
    %5 = vector.broadcast %4 : vector<1x128xf32> to vector<2x128xf32>
    %6 = arith.addf %3, %5 : vector<2x128xf32>
    %cst_5 = arith.constant 0.000000e+00 : f32
    %7 = vector.broadcast %cst_5 : f32 to vector<2x128xf32>
    %8 = arith.maximumf %6, %7 : vector<2x128xf32>
    %c0_6 = arith.constant 0 : index
    %c0_7 = arith.constant 0 : index
    %9 = vector.load %arg3[%c0_6, %c0_7] : memref<2x128xf32, #tpu.memory_space<vmem>>, vector<2x128xf32>
    %10 = arith.mulf %8, %9 : vector<2x128xf32>
    %c0_8 = arith.constant 0 : index
    %c0_9 = arith.constant 0 : index
    %11 = vector.load %arg4[%c0_8, %c0_9] : memref<2x128xf32, #tpu.memory_space<vmem>>, vector<2x128xf32>
    tpu.vector_store %arg4[%c0_8, %c0_9], %10 {strides = array<i32>} : memref<2x128xf32, #tpu.memory_space<vmem>>, vector<2x128xf32>,
    return
  }
}

</mosaic_0001>

<llo_original>
// kernel: encoder_cnn_forward.2
$region0: #{encoder_cnn_forward.2}
  #allocation0 [shape = 'u32[]', space=smem, size = 0x4, offset = 0x4, fixed_abs, tag = 'smem constant byte address 0x4 - core index']
  #allocation1 [shape = 'u32[144,128]{1,0:T(1,128)}', space=vmem, size = 0x12000, scoped, tag = 'internal scratch']
  #allocation2 [shape = 'f32[1,2048]{1,0:T(1,128)}', space=vmem, size = 0x2000, scoped, tag = 'scratch operand']
  %s0 = inlined_call_operand.vmem [shape: bf16[2,232,27], index: 0, kind: input, shape index: {}]
  %s1 = inlined_call_operand.vmem [shape: bf16[27,32], index: 1, kind: input, shape index: {}]
  %s2 = inlined_call_operand.vmem [shape: f32[1,32], index: 2, kind: input, shape index: {}]
  %s3 = inlined_call_operand.vmem [shape: bf16[32,2048], index: 3, kind: input, shape index: {}]
  %s4 = inlined_call_operand.vmem [shape: f32[1,2048], index: 4, kind: input, shape index: {}]
  %s5 = inlined_call_operand.vmem [shape: f32[2,1,2048], index: 5, kind: output, shape index: {}]
  %s6 = sld [smem:[#allocation0]]
  $region61: #{encoder_cnn_forward.2} parent=0
    _
  %s8 = ssub.s32 1, %s6
  %s9 = scalar_select 0, %s8, %s6
  loop: start=0, step=1, limit=4
  $region2: #{encoder_cnn_forward.2} parent=0 // loop_pre_header
    _
  $region3: #{encoder_cnn_forward.2} parent=0 // loop_header
    %s11 = sphi 0, %s15
    %p12 = scmp.ge.s32.totalorder %s11, 4
    %s18 = sphi 0, %s30
    %s19 = sphi 0, %s26
    %s20 = sphi 0, %s18
    %s21 = sphi 0, %s19
    %s22 = sphi 0, %s20
    %s23 = sphi 0, %s21
    %s35 = sphi 0, %s37
    %s38 = sphi 0, %s35
    %s39 = sphi 0, %s38
    %s55 = sphi 0, %s39
    %s59 = sphi 0, %s59
    %s61 = sphi 0, %s59
    %s62 = sphi 0, %s61
    %s76 = sphi 0, %s62
    %s80 = sphi 0, %s80
    %s82 = sphi 0, %s80
    %s83 = sphi 0, %s82
    %s97 = sphi 0, %s83
    %s101 = sphi 0, %s101
    %s103 = sphi 0, %s101
    %s104 = sphi 0, %s103
    %s118 = sphi 0, %s104
    %s122 = sphi 0, %s122
    %s124 = sphi 0, %s122
    %s125 = sphi 0, %s124
    %s139 = sphi 0, %s125
    %s145 = sphi 0, %s147
    %s148 = sphi 0, %s145
    %s149 = sphi 0, %s148
    %s165 = sphi 0, %s149
  $region4: #{encoder_cnn_forward.2} parent=0 // loop_header_branch
    %14 = sbr.rel (%p12) target = $region8
  $region5: #{encoder_cnn_forward.2} parent=0 // loop_body
    %s16 = ssub.s32 %s11, 1
    %s17 = ssub.s32 %s11, 2
    %s24 = sadd.s32 1, %s19
    %p25 = scmp.ge.s32.totalorder %s24, 1
    %s26 = scalar_select %p25, 0, %s24
    %s27 = sadd.s32 1, %s18
    %s28 = scalar_select %p25, %s27, %s18
    %p29 = scmp.ge.s32.totalorder %s28, 2
    %s30 = scalar_select %p29, 0, %s28
    %s31 = ssub.s32 %s18, %s30
    %s32 = ssub.s32 %s19, %s26
    %s33 = sor.u32 %s31, %s32
    %p34 = scmp.eq.s32.totalorder %s33, 0
    %s36 = sadd.s32 %s35, 1
    %s37 = scalar_select %p34, %s35, %s36
    %p40 = pneg %p34
    %p41 = scmp.eq.s32.totalorder %s11, 1
    %p42 = por %p40, %p41
    %p43 = scmp.ne.s32.totalorder %s35, %s38
    %p44 = scmp.eq.s32.totalorder %s11, 0
    %p45 = por %p43, %p44
    %p46 = scmp.ne.s32.totalorder %s35, %s38
    %p47 = scmp.eq.s32.totalorder %s16, 1
    %p48 = por %p46, %p47
    %p49 = scmp.ne.s32.totalorder %s38, %s39
    %p50 = scmp.eq.s32.totalorder %s16, 0
    %p51 = por %p49, %p50
    %p52 = scmp.ne.s32.totalorder %s38, %s39
    %p53 = scmp.eq.s32.totalorder %s17, 1
    %p54 = por %p52, %p53
    %p56 = scmp.ne.s32.totalorder %s39, %s55
    %p57 = scmp.eq.s32.totalorder %s17, 0
    %p58 = por %p56, %p57
    %s60 = sadd.s32 %s59, 1
    %p63 = scmp.eq.s32.totalorder %s11, 1
    %p64 = scmp.ne.s32.totalorder %s59, %s61
    %p65 = scmp.eq.s32.totalorder %s11, 0
    %p66 = por %p64, %p65
    %p67 = scmp.ne.s32.totalorder %s59, %s61
    %p68 = scmp.eq.s32.totalorder %s16, 1
    %p69 = por %p67, %p68
    %p70 = scmp.ne.s32.totalorder %s61, %s62
    %p71 = scmp.eq.s32.totalorder %s16, 0
    %p72 = por %p70, %p71
    %p73 = scmp.ne.s32.totalorder %s61, %s62
    %p74 = scmp.eq.s32.totalorder %s17, 1
    %p75 = por %p73, %p74
    %p77 = scmp.ne.s32.totalorder %s62, %s76
    %p78 = scmp.eq.s32.totalorder %s17, 0
    %p79 = por %p77, %p78
    %s81 = sadd.s32 %s80, 1
    %p84 = scmp.eq.s32.totalorder %s11, 1
    %p85 = scmp.ne.s32.totalorder %s80, %s82
    %p86 = scmp.eq.s32.totalorder %s11, 0
    %p87 = por %p85, %p86
    %p88 = scmp.ne.s32.totalorder %s80, %s82
    %p89 = scmp.eq.s32.totalorder %s16, 1
    %p90 = por %p88, %p89
    %p91 = scmp.ne.s32.totalorder %s82, %s83
    %p92 = scmp.eq.s32.totalorder %s16, 0
    %p93 = por %p91, %p92
    %p94 = scmp.ne.s32.totalorder %s82, %s83
    %p95 = scmp.eq.s32.totalorder %s17, 1
    %p96 = por %p94, %p95
    %p98 = scmp.ne.s32.totalorder %s83, %s97
    %p99 = scmp.eq.s32.totalorder %s17, 0
    %p100 = por %p98, %p99
    %s102 = sadd.s32 %s101, 1
    %p105 = scmp.eq.s32.totalorder %s11, 1
    %p106 = scmp.ne.s32.totalorder %s101, %s103
    %p107 = scmp.eq.s32.totalorder %s11, 0
    %p108 = por %p106, %p107
    %p109 = scmp.ne.s32.totalorder %s101, %s103
    %p110 = scmp.eq.s32.totalorder %s16, 1
    %p111 = por %p109, %p110
    %p112 = scmp.ne.s32.totalorder %s103, %s104
    %p113 = scmp.eq.s32.totalorder %s16, 0
    %p114 = por %p112, %p113
    %p115 = scmp.ne.s32.totalorder %s103, %s104
    %p116 = scmp.eq.s32.totalorder %s17, 1
    %p117 = por %p115, %p116
    %p119 = scmp.ne.s32.totalorder %s104, %s118
    %p120 = scmp.eq.s32.totalorder %s17, 0
    %p121 = por %p119, %p120
    %s123 = sadd.s32 %s122, 1
    %p126 = scmp.eq.s32.totalorder %s11, 1
    %p127 = scmp.ne.s32.totalorder %s122, %s124
    %p128 = scmp.eq.s32.totalorder %s11, 0
    %p129 = por %p127, %p128
    %p130 = scmp.ne.s32.totalorder %s122, %s124
    %p131 = scmp.eq.s32.totalorder %s16, 1
    %p132 = por %p130, %p131
    %p133 = scmp.ne.s32.totalorder %s124, %s125
    %p134 = scmp.eq.s32.totalorder %s16, 0
    %p135 = por %p133, %p134
    %p136 = scmp.ne.s32.totalorder %s124, %s125
    %p137 = scmp.eq.s32.totalorder %s17, 1
    %p138 = por %p136, %p137
    %p140 = scmp.ne.s32.totalorder %s125, %s139
    %p141 = scmp.eq.s32.totalorder %s17, 0
    %p142 = por %p140, %p141
    %s143 = ssub.s32 %s18, %s30
    %p144 = scmp.eq.s32.totalorder %s143, 0
    %s146 = sadd.s32 %s145, 1
    %s147 = scalar_select %p144, %s145, %s146
    %p150 = pneg %p144
    %p151 = scmp.eq.s32.totalorder %s11, 1
    %p152 = por %p150, %p151
    %p153 = scmp.ne.s32.totalorder %s145, %s148
    %p154 = scmp.eq.s32.totalorder %s11, 0
    %p155 = por %p153, %p154
    %p156 = scmp.ne.s32.totalorder %s145, %s148
    %p157 = scmp.eq.s32.totalorder %s16, 1
    %p158 = por %p156, %p157
    %p159 = scmp.ne.s32.totalorder %s148, %s149
    %p160 = scmp.eq.s32.totalorder %s16, 0
    %p161 = por %p159, %p160
    %p162 = scmp.ne.s32.totalorder %s148, %s149
    %p163 = scmp.eq.s32.totalorder %s17, 1
    %p164 = por %p162, %p163
    %p166 = scmp.ne.s32.totalorder %s149, %s165
    %p167 = scmp.eq.s32.totalorder %s17, 0
    %p168 = por %p166, %p167
    %p169 = scmp.le.s32.totalorder 1, %s11
    %p170 = scmp.lt.s32.totalorder %s11, 3
    %p171 = pnand %p169, %p170
    %p172 = pneg %p171
    // Predicated region
    $region9: #{encoder_cnn_forward.2} parent=5 // pred_check
      _
    $region10: #{encoder_cnn_forward.2} parent=5 // pred_check_branch
      %174 = sbr.rel (%p171) target = $region12
    $region11: #{encoder_cnn_forward.2} parent=5 // pred_region
      %s175 = ssub.s32 %s11, 1
      // Predicated region
      $region13: #{encoder_cnn_forward.2} parent=11 // pred_check
        %p176 = pneg %p72
      $region14: #{encoder_cnn_forward.2} parent=11 // pred_check_branch
        %178 = sbr.rel (%p176) target = $region16
      $region15: #{encoder_cnn_forward.2} parent=11 // pred_region
        _
      $region16: #{encoder_cnn_forward.2} parent=11 // pred_fallthru
        _
      // Predicated region
      $region17: #{encoder_cnn_forward.2} parent=11 // pred_check
        %p179 = pneg %p93
      $region18: #{encoder_cnn_forward.2} parent=11 // pred_check_branch
        %181 = sbr.rel (%p179) target = $region20
      $region19: #{encoder_cnn_forward.2} parent=11 // pred_region
        _
      $region20: #{encoder_cnn_forward.2} parent=11 // pred_fallthru
        _
      // Predicated region
      $region21: #{encoder_cnn_forward.2} parent=11 // pred_check
        %p182 = pneg %p114
      $region22: #{encoder_cnn_forward.2} parent=11 // pred_check_branch
        %184 = sbr.rel (%p182) target = $region24
      $region23: #{encoder_cnn_forward.2} parent=11 // pred_region
        _
      $region24: #{encoder_cnn_forward.2} parent=11 // pred_fallthru
        _
      // Predicated region
      $region25: #{encoder_cnn_forward.2} parent=11 // pred_check
        %p185 = pneg %p135
      $region26: #{encoder_cnn_forward.2} parent=11 // pred_check_branch
        %187 = sbr.rel (%p185) target = $region28
      $region27: #{encoder_cnn_forward.2} parent=11 // pred_region
        _
      $region28: #{encoder_cnn_forward.2} parent=11 // pred_fallthru
        _
    $region12: #{encoder_cnn_forward.2} parent=5 // pred_fallthru
      _
    %p188 = scmp.lt.s32.totalorder %s11, 2
    // Predicated region
    $region29: #{encoder_cnn_forward.2} parent=5 // pred_check
      %p189 = pneg %p188
    $region30: #{encoder_cnn_forward.2} parent=5 // pred_check_branch
      %191 = sbr.rel (%p189) target = $region32
    $region31: #{encoder_cnn_forward.2} parent=5 // pred_region
      // Predicated region
      $region33: #{encoder_cnn_forward.2} parent=31 // pred_check
        %p192 = pneg %p45
      $region34: #{encoder_cnn_forward.2} parent=31 // pred_check_branch
        %194 = sbr.rel (%p192) target = $region36
      $region35: #{encoder_cnn_forward.2} parent=31 // pred_region
        %s195 = smul.u32 29, %s19
        %p196 = scmp.lt.s32.totalorder %s18, 1
        %s197 = scalar_select %p196, %s18, 1
        %p198 = scmp.lt.s32.totalorder %s195, 28
        %s199 = scalar_select %p198, %s195, 28
        %s200 = smul.addr %s197, 29
        %s201 = sadd.s32 %s199, %s200
        %s202 = smul.addr %s201, 4
        %s203 = scalar_lea.vmem %s0, %s202
        %s204 = smul.u32 29, %s19
      $region36: #{encoder_cnn_forward.2} parent=31 // pred_fallthru
        _
    $region32: #{encoder_cnn_forward.2} parent=5 // pred_fallthru
      _
    %p205 = scmp.le.s32.totalorder 1, %s11
    %p206 = scmp.lt.s32.totalorder %s11, 3
    %p207 = pnand %p205, %p206
    %p208 = pneg %p207
    // Predicated region
    $region37: #{encoder_cnn_forward.2} parent=5 // pred_check
      _
    $region38: #{encoder_cnn_forward.2} parent=5 // pred_check_branch
      %210 = sbr.rel (%p207) target = $region40
    $region39: #{encoder_cnn_forward.2} parent=5 // pred_region
      %s211 = ssub.s32 %s11, 1
      %s212 = smul.u32 29, %s21
      %p213 = scmp.lt.s32.totalorder %s20, 1
      %s214 = scalar_select %p213, %s20, 1
      %p215 = scmp.lt.s32.totalorder %s212, 28
      %s216 = scalar_select %p215, %s212, 28
      %s217 = smul.addr %s214, 29
      %s218 = sadd.s32 %s216, %s217
      %s219 = smul.addr %s218, 4
      %s220 = scalar_lea.vmem %s0, %s219
      %p221 = pneg %p51
      %p222 = pneg %p48
      %p223 = pneg %p72
      %p224 = pneg %p69
      %p225 = pneg %p93
      %p226 = pneg %p90
      %p227 = pneg %p114
      %p228 = pneg %p111
      %p229 = pneg %p135
      %p230 = pneg %p132
      %p231 = pneg %p161
      %p232 = pneg %p158
      %p233 = scmp.lt.s32.totalorder %s20, 1
      %s234 = scalar_select %p233, %s20, 1
      %s235 = smul.addr %s234, 16
      %s236 = scalar_lea.vmem %s5, %s235
      %s237 = smul.u32 29, %s21
      %p238 = scmp.lt.s32.totalorder %s20, 1
      %s239 = scalar_select %p238, %s20, 1
      %p240 = scmp.lt.s32.totalorder %s237, 28
      %s241 = scalar_select %p240, %s237, 28
      %s242 = smul.addr %s239, 29
      %s243 = sadd.s32 %s241, %s242
      %s244 = smul.addr %s243, 4
      %s245 = scalar_lea.vmem %s0, %s244
      %s246 = smul.u32 29, %s21
      %p247 = scmp.lt.s32.totalorder %s20, 1
      %s248 = scalar_select %p247, %s20, 1
      %s249 = smul.addr %s248, 16
      %s250 = scalar_lea.vmem %s5, %s249
      %p252 = scmp.eq.s32.totalorder %s21, 0
      // Predicated region
      $region41: #{encoder_cnn_forward.2} parent=39 // pred_check
        %p253 = pneg %p252
      $region42: #{encoder_cnn_forward.2} parent=39 // pred_check_branch
        %255 = sbr.rel (%p253) target = $region44
      $region43: #{encoder_cnn_forward.2} parent=39 // pred_region
        %256 = vst [vmem:[#allocation2] sm:$0xff] 0.0
        %257 = vst [vmem:[#allocation2 + $0x8] sm:$0xff] 0.0
      $region44: #{encoder_cnn_forward.2} parent=39 // pred_fallthru
        _
      %v258 = vld [vmem:[%s245] sm:$0xf]
      %v259 = vld [vmem:[%s245 + $0x4] sm:$0xf]
      %v260 = vld [vmem:[%s245 + $0x8] sm:$0xf]
      %v261 = vld [vmem:[%s245 + $0xc] sm:$0xf]
      %v262 = vld [vmem:[%s245 + $0x10] sm:$0xf]
      %v263 = vld [vmem:[%s245 + $0x14] sm:$0xf]
      %v264 = vld [vmem:[%s245 + $0x18] sm:$0xf]
      %v265 = vld [vmem:[%s245 + $0x1c] sm:$0xf]
      %v266 = vld [vmem:[%s245 + $0x20] sm:$0xf]
      %v267 = vld [vmem:[%s245 + $0x24] sm:$0xf]
      %v268 = vld [vmem:[%s245 + $0x28] sm:$0xf]
      %v269 = vld [vmem:[%s245 + $0x2c] sm:$0xf]
      %v270 = vld [vmem:[%s245 + $0x30] sm:$0xf]
      %v271 = vld [vmem:[%s245 + $0x34] sm:$0xf]
      %v272 = vld [vmem:[%s245 + $0x38] sm:$0xf]
      %v273 = vld [vmem:[%s245 + $0x3c] sm:$0xf]
      %v274 = vld [vmem:[%s245 + $0x40] sm:$0xf]
      %v275 = vld [vmem:[%s245 + $0x44] sm:$0xf]
      %v276 = vld [vmem:[%s245 + $0x48] sm:$0xf]
      %v277 = vld [vmem:[%s245 + $0x4c] sm:$0xf]
      %v278 = vld [vmem:[%s245 + $0x50] sm:$0xf]
      %v279 = vld [vmem:[%s245 + $0x54] sm:$0xf]
      %v280 = vld [vmem:[%s245 + $0x58] sm:$0xf]
      %v281 = vld [vmem:[%s245 + $0x5c] sm:$0xf]
      %v282 = vld [vmem:[%s245 + $0x60] sm:$0xf]
      %v283 = vld [vmem:[%s245 + $0x64] sm:$0xf]
      %v284 = vld [vmem:[%s245 + $0x68] sm:$0xf]
      %v285 = vld [vmem:[%s245 + $0x6c] sm:$0xf]
      %v286 = vld [vmem:[%s245 + $0x70] sm:$0xf]
      %v287 = vld [vmem:[%s1] sm:$0xf]
      %v288 = vld [vmem:[%s1 + $0x4] sm:$0xf]
      %v289 = vld [vmem:[%s1 + $0x8] sm:$0xf]
      %v290 = vld [vmem:[%s1 + $0xc] sm:$0x3]
      %v291 = vld [vmem:[%s2] sm:$0x1]
      %v293 = vlaneseq
      %v294 = vshrl.u32 %v293, 7
      %v295 = vsub.s32 0, %v294
      %v296 = vrot.slane %v291, %v295
      %v327 = vunpack.c.l.b16 %v258
      %v328 = vunpack.c.l.b16 %v259
      %v329 = vunpack.c.l.b16 %v260
      %v330 = vunpack.c.l.b16 %v261
      %v331 = vunpack.c.l.b16 %v262
      %v332 = vunpack.c.l.b16 %v263
      %v333 = vunpack.c.l.b16 %v264
      %v334 = vunpack.c.l.b16 %v265
      %v335 = vunpack.c.l.b16 %v266
      %v336 = vunpack.c.l.b16 %v267
      %v337 = vunpack.c.l.b16 %v268
      %v338 = vunpack.c.l.b16 %v269
      %v339 = vunpack.c.l.b16 %v270
      %v340 = vunpack.c.l.b16 %v271
      %v341 = vunpack.c.l.b16 %v272
      %v342 = vunpack.c.l.b16 %v273
      %v343 = vunpack.c.l.b16 %v274
      %v344 = vunpack.c.l.b16 %v275
      %v345 = vunpack.c.l.b16 %v276
      %v346 = vunpack.c.l.b16 %v277
      %v347 = vunpack.c.l.b16 %v278
      %v348 = vunpack.c.l.b16 %v279
      %v349 = vunpack.c.l.b16 %v280
      %v350 = vunpack.c.l.b16 %v281
      %v351 = vunpack.c.l.b16 %v282
      %v352 = vunpack.c.l.b16 %v283
      %v353 = vunpack.c.l.b16 %v284
      %v354 = vunpack.c.l.b16 %v285
      %v355 = vunpack.c.l.b16 %v286
      %v356 = vpack.c.b16 %v328, %v327
      %v357 = vpack.c.b16 %v330, %v329
      %v358 = vpack.c.b16 %v332, %v331
      %v359 = vpack.c.b16 %v334, %v333
      %v360 = vpack.c.b16 %v336, %v335
      %v361 = vpack.c.b16 %v338, %v337
      %v362 = vpack.c.b16 %v340, %v339
      %v363 = vpack.c.b16 %v342, %v341
      %v364 = vpack.c.b16 %v344, %v343
      %v365 = vpack.c.b16 %v346, %v345
      %v366 = vpack.c.b16 %v348, %v347
      %v367 = vpack.c.b16 %v350, %v349
      %v368 = vpack.c.b16 %v352, %v351
      %v369 = vpack.c.b16 %v354, %v353
      %v370 = vpack.c.b16 %v355, %v355
      %v375 = vunpack.c.l.b16 %v287
      %v376 = vunpack.c.l.b16 %v288
      %v377 = vunpack.c.l.b16 %v289
      %v378 = vunpack.c.l.b16 %v290
      %v379 = vpack.c.b16 %v376, %v375
      %v380 = vpack.c.b16 %v378, %v377
      %vm382 = vcmask 220160
      %v384 = vsel %vm382, %v356, 0
      %v387 = vsel %vm382, %v357, 0
      %v390 = vsel %vm382, %v358, 0
      %v393 = vsel %vm382, %v359, 0
      %v396 = vsel %vm382, %v360, 0
      %v399 = vsel %vm382, %v361, 0
      %v402 = vsel %vm382, %v362, 0
      %v405 = vsel %vm382, %v363, 0
      %v408 = vsel %vm382, %v364, 0
      %v411 = vsel %vm382, %v365, 0
      %v414 = vsel %vm382, %v366, 0
      %v417 = vsel %vm382, %v367, 0
      %v420 = vsel %vm382, %v368, 0
      %v423 = vsel %vm382, %v369, 0
      %v426 = vsel %vm382, %v370, 0
      %vm428 = vcmask 1044480
      %vm429 = vcmask 1045504
      %v430 = vsel %vm428, 4294967295, 65535
      %v431 = vsel %vm429, %v430, 0
      %v433 = vand.u32 %v380, %v431
      %435 = vmatprep.subr.bf16.mxu0 0
      %436 = vmatpush1.bf16.msra.mxu0 %v379
      %437 = vmatprep.subr.bf16.mxu0 0
      %438 = vmatpush1.bf16.msra.mxu0 %v433
      %439 = vmatprep.subr.bf16.mxu0 0
      %440 = vmatpush1.bf16.msra.mxu0 0
      %441 = vmatprep.subr.bf16.mxu0 0
      %442 = vmatpush1.bf16.msra.mxu0 0
      %443 = vmatprep.subr.bf16.mxu0 0
      %444 = vmatpush1.bf16.msra.mxu0 0
      %445 = vmatprep.subr.bf16.mxu0 0
      %446 = vmatpush1.bf16.msra.mxu0 0
      %447 = vmatprep.subr.bf16.mxu0 0
      %448 = vmatpush1.bf16.msra.mxu0 0
      %449 = vmatprep.subr.bf16.mxu0 0
      %450 = vmatpush1.bf16.msra.mxu0 0
      %451 = vmatprep.subr.bf16.mxu0 0
      %452 = vmatpush1.bf16.msra.mxu0 0
      %453 = vmatprep.subr.bf16.mxu0 0
      %454 = vmatpush1.bf16.msra.mxu0 0
      %455 = vmatprep.subr.bf16.mxu0 0
      %456 = vmatpush1.bf16.msra.mxu0 0
      %457 = vmatprep.subr.bf16.mxu0 0
      %458 = vmatpush1.bf16.msra.mxu0 0
      %459 = vmatprep.subr.bf16.mxu0 0
      %460 = vmatpush1.bf16.msra.mxu0 0
      %461 = vmatprep.subr.bf16.mxu0 0
      %462 = vmatpush1.bf16.msra.mxu0 0
      %463 = vmatprep.subr.bf16.mxu0 0
      %464 = vmatpush1.bf16.msra.mxu0 0
      %465 = vmatprep.subr.bf16.mxu0 0
      %466 = vmatpush1.bf16.msra.mxu0 0
      %467 = vmatprep.mubr.bf16.mxu0 0
      %468 = vmatmul.mubr.bf16.gmra.mrb[0].mxu0 %v384
      %v469 = vpop.f32.mrb[0].mxu0
      %v470 = vadd.f32 %v296, %v469
      %v471 = vpop.f32.mrb[0].mxu0
      %v472 = vpop.f32.mrb[0].mxu0
      %v473 = vadd.f32 %v296, %v472
      %v474 = vpop.f32.mrb[0].mxu0
      %475 = vmatprep.mubr.bf16.mxu0 0
      %476 = vmatmul.mubr.bf16.gmra.mrb[0].mxu0 %v387
      %v477 = vpop.f32.mrb[0].mxu0
      %v478 = vadd.f32 %v296, %v477
      %v479 = vpop.f32.mrb[0].mxu0
      %v480 = vpop.f32.mrb[0].mxu0
      %v481 = vadd.f32 %v296, %v480
      %v482 = vpop.f32.mrb[0].mxu0
      %483 = vmatprep.mubr.bf16.mxu0 0
      %484 = vmatmul.mubr.bf16.gmra.mrb[0].mxu0 %v390
      %v485 = vpop.f32.mrb[0].mxu0
      %v486 = vadd.f32 %v296, %v485
      %v487 = vpop.f32.mrb[0].mxu0
      %v488 = vpop.f32.mrb[0].mxu0
      %v489 = vadd.f32 %v296, %v488
      %v490 = vpop.f32.mrb[0].mxu0
      %491 = vmatprep.mubr.bf16.mxu0 0
      %492 = vmatmul.mubr.bf16.gmra.mrb[0].mxu0 %v393
      %v493 = vpop.f32.mrb[0].mxu0
      %v494 = vadd.f32 %v296, %v493
      %v495 = vpop.f32.mrb[0].mxu0
      %v496 = vpop.f32.mrb[0].mxu0
      %v497 = vadd.f32 %v296, %v496
      %v498 = vpop.f32.mrb[0].mxu0
      %499 = vmatprep.mubr.bf16.mxu0 0
      %500 = vmatmul.mubr.bf16.gmra.mrb[0].mxu0 %v396
      %v501 = vpop.f32.mrb[0].mxu0
      %v502 = vadd.f32 %v296, %v501
      %v503 = vpop.f32.mrb[0].mxu0
      %v504 = vpop.f32.mrb[0].mxu0
      %v505 = vadd.f32 %v296, %v504
      %v506 = vpop.f32.mrb[0].mxu0
      %507 = vmatprep.mubr.bf16.mxu0 0
      %508 = vmatmul.mubr.bf16.gmra.mrb[0].mxu0 %v399
      %v509 = vpop.f32.mrb[0].mxu0
      %v510 = vadd.f32 %v296, %v509
      %v511 = vpop.f32.mrb[0].mxu0
      %v512 = vpop.f32.mrb[0].mxu0
      %v513 = vadd.f32 %v296, %v512
      %v514 = vpop.f32.mrb[0].mxu0
      %515 = vmatprep.mubr.bf16.mxu0 0
      %516 = vmatmul.mubr.bf16.gmra.mrb[0].mxu0 %v402
      %v517 = vpop.f32.mrb[0].mxu0
      %v518 = vadd.f32 %v296, %v517
      %v519 = vpop.f32.mrb[0].mxu0
      %v520 = vpop.f32.mrb[0].mxu0
      %v521 = vadd.f32 %v296, %v520
      %v522 = vpop.f32.mrb[0].mxu0
      %523 = vmatprep.mubr.bf16.mxu0 0
      %524 = vmatmul.mubr.bf16.gmra.mrb[0].mxu0 %v405
      %v525 = vpop.f32.mrb[0].mxu0
      %v526 = vadd.f32 %v296, %v525
      %v527 = vpop.f32.mrb[0].mxu0
      %v528 = vpop.f32.mrb[0].mxu0
      %v529 = vadd.f32 %v296, %v528
      %v530 = vpop.f32.mrb[0].mxu0
      %531 = vmatprep.mubr.bf16.mxu0 0
      %532 = vmatmul.mubr.bf16.gmra.mrb[0].mxu0 %v408
      %v533 = vpop.f32.mrb[0].mxu0
      %v534 = vadd.f32 %v296, %v533
      %v535 = vpop.f32.mrb[0].mxu0
      %v536 = vpop.f32.mrb[0].mxu0
      %v537 = vadd.f32 %v296, %v536
      %v538 = vpop.f32.mrb[0].mxu0
      %539 = vmatprep.mubr.bf16.mxu0 0
      %540 = vmatmul.mubr.bf16.gmra.mrb[0].mxu0 %v411
      %v541 = vpop.f32.mrb[0].mxu0
      %v542 = vadd.f32 %v296, %v541
      %v543 = vpop.f32.mrb[0].mxu0
      %v544 = vpop.f32.mrb[0].mxu0
      %v545 = vadd.f32 %v296, %v544
      %v546 = vpop.f32.mrb[0].mxu0
      %547 = vmatprep.mubr.bf16.mxu0 0
      %548 = vmatmul.mubr.bf16.gmra.mrb[0].mxu0 %v414
      %v549 = vpop.f32.mrb[0].mxu0
      %v550 = vadd.f32 %v296, %v549
      %v551 = vpop.f32.mrb[0].mxu0
      %v552 = vpop.f32.mrb[0].mxu0
      %v553 = vadd.f32 %v296, %v552
      %v554 = vpop.f32.mrb[0].mxu0
      %555 = vmatprep.mubr.bf16.mxu0 0
      %556 = vmatmul.mubr.bf16.gmra.mrb[0].mxu0 %v417
      %v557 = vpop.f32.mrb[0].mxu0
      %v558 = vadd.f32 %v296, %v557
      %v559 = vpop.f32.mrb[0].mxu0
      %v560 = vpop.f32.mrb[0].mxu0
      %v561 = vadd.f32 %v296, %v560
      %v562 = vpop.f32.mrb[0].mxu0
      %563 = vmatprep.mubr.bf16.mxu0 0
      %564 = vmatmul.mubr.bf16.gmra.mrb[0].mxu0 %v420
      %v565 = vpop.f32.mrb[0].mxu0
      %v566 = vadd.f32 %v296, %v565
      %v567 = vpop.f32.mrb[0].mxu0
      %v568 = vpop.f32.mrb[0].mxu0
      %v569 = vadd.f32 %v296, %v568
      %v570 = vpop.f32.mrb[0].mxu0
      %571 = vmatprep.mubr.bf16.mxu0 0
      %572 = vmatmul.mubr.bf16.gmra.mrb[0].mxu0 %v423
      %v573 = vpop.f32.mrb[0].mxu0
      %v574 = vadd.f32 %v296, %v573
      %v575 = vpop.f32.mrb[0].mxu0
      %v576 = vpop.f32.mrb[0].mxu0
      %v577 = vadd.f32 %v296, %v576
      %v578 = vpop.f32.mrb[0].mxu0
      %579 = vmatprep.mubr.bf16.mxu0 0
      %580 = vmatmul.mubr.bf16.gmra.mrb[0].mxu0 %v426
      %v581 = vpop.f32.mrb[0].mxu0
      %v582 = vadd.f32 %v296, %v581
      %v583 = vpop.f32.mrb[0].mxu0
      %v584 = vpop.f32.mrb[0].mxu0
      %v585 = vpop.f32.mrb[0].mxu0
      %586 = vdwg.mxu0
      %v587 = vmax.f32 %v470, 0.0
      %v588 = vmax.f32 %v473, 0.0
      %v589 = vmax.f32 %v478, 0.0
      %v590 = vmax.f32 %v481, 0.0
      %v591 = vmax.f32 %v486, 0.0
      %v592 = vmax.f32 %v489, 0.0
      %v593 = vmax.f32 %v494, 0.0
      %v594 = vmax.f32 %v497, 0.0
      %v595 = vmax.f32 %v502, 0.0
      %v596 = vmax.f32 %v505, 0.0
      %v597 = vmax.f32 %v510, 0.0
      %v598 = vmax.f32 %v513, 0.0
      %v599 = vmax.f32 %v518, 0.0
      %v600 = vmax.f32 %v521, 0.0
      %v601 = vmax.f32 %v526, 0.0
      %v602 = vmax.f32 %v529, 0.0
      %v603 = vmax.f32 %v534, 0.0
      %v604 = vmax.f32 %v537, 0.0
      %v605 = vmax.f32 %v542, 0.0
      %v606 = vmax.f32 %v545, 0.0
      %v607 = vmax.f32 %v550, 0.0
      %v608 = vmax.f32 %v553, 0.0
      %v609 = vmax.f32 %v558, 0.0
      %v610 = vmax.f32 %v561, 0.0
      %v611 = vmax.f32 %v566, 0.0
      %v612 = vmax.f32 %v569, 0.0
      %v613 = vmax.f32 %v574, 0.0
      %v614 = vmax.f32 %v577, 0.0
      %v615 = vmax.f32 %v582, 0.0
      %v616 = vpack.c.bf16 %v588, %v587
      %v617 = vpack.c.bf16 %v590, %v589
      %v618 = vpack.c.bf16 %v592, %v591
      %v619 = vpack.c.bf16 %v594, %v593
      %v620 = vpack.c.bf16 %v596, %v595
      %v621 = vpack.c.bf16 %v598, %v597
      %v622 = vpack.c.bf16 %v600, %v599
      %v623 = vpack.c.bf16 %v602, %v601
      %v624 = vpack.c.bf16 %v604, %v603
      %v625 = vpack.c.bf16 %v606, %v605
      %v626 = vpack.c.bf16 %v608, %v607
      %v627 = vpack.c.bf16 %v610, %v609
      %v628 = vpack.c.bf16 %v612, %v611
      %v629 = vpack.c.bf16 %v614, %v613
      %v630 = vpack.c.bf16 %v615, %v615
      %v631 = vld [vmem:[%s3] sm:$0xff]
      %v632 = vld [vmem:[%s3 + $0x8] sm:$0xff]
      %v633 = vld [vmem:[%s3 + $0x10] sm:$0xff]
      %v634 = vld [vmem:[%s3 + $0x18] sm:$0xff]
      %v635 = vld [vmem:[%s3 + $0x20] sm:$0xff]
      %v636 = vld [vmem:[%s3 + $0x28] sm:$0xff]
      %v637 = vld [vmem:[%s3 + $0x30] sm:$0xff]
      %v638 = vld [vmem:[%s3 + $0x38] sm:$0xff]
      %v639 = vld [vmem:[%s3 + $0x40] sm:$0xff]
      %v640 = vld [vmem:[%s3 + $0x48] sm:$0xff]
      %v641 = vld [vmem:[%s3 + $0x50] sm:$0xff]
      %v642 = vld [vmem:[%s3 + $0x58] sm:$0xff]
      %v643 = vld [vmem:[%s3 + $0x60] sm:$0xff]
      %v644 = vld [vmem:[%s3 + $0x68] sm:$0xff]
      %v645 = vld [vmem:[%s3 + $0x70] sm:$0xff]
      %v646 = vld [vmem:[%s3 + $0x78] sm:$0xff]
      %v647 = vld [vmem:[%s3 + $0x80] sm:$0xff]
      %v648 = vld [vmem:[%s3 + $0x88] sm:$0xff]
      %v649 = vld [vmem:[%s3 + $0x90] sm:$0xff]
      %v650 = vld [vmem:[%s3 + $0x98] sm:$0xff]
      %v651 = vld [vmem:[%s3 + $0xa0] sm:$0xff]
      %v652 = vld [vmem:[%s3 + $0xa8] sm:$0xff]
      %v653 = vld [vmem:[%s3 + $0xb0] sm:$0xff]
      %v654 = vld [vmem:[%s3 + $0xb8] sm:$0xff]
      %v655 = vld [vmem:[%s3 + $0xc0] sm:$0xff]
      %v656 = vld [vmem:[%s3 + $0xc8] sm:$0xff]
      %v657 = vld [vmem:[%s3 + $0xd0] sm:$0xff]
      %v658 = vld [vmem:[%s3 + $0xd8] sm:$0xff]
      %v659 = vld [vmem:[%s3 + $0xe0] sm:$0xff]
      %v660 = vld [vmem:[%s3 + $0xe8] sm:$0xff]
      %v661 = vld [vmem:[%s3 + $0xf0] sm:$0xff]
      %v662 = vld [vmem:[%s3 + $0xf8] sm:$0xff]
      %v663 = vld [vmem:[%s4] sm:$0xff]
      %v664 = vld [vmem:[%s4 + $0x8] sm:$0xff]
      %v667 = vlaneseq
      %v668 = vshrl.u32 %v667, 7
      %v669 = vsub.s32 0, %v668
      %v670 = vrot.slane %v663, %v669
      %v671 = vlaneseq
      %v672 = vshrl.u32 %v671, 7
      %v673 = vsub.s32 1, %v672
      %v674 = vrot.slane %v663, %v673
      %v675 = vlaneseq
      %v676 = vshrl.u32 %v675, 7
      %v677 = vsub.s32 2, %v676
      %v678 = vrot.slane %v663, %v677
      %v679 = vlaneseq
      %v680 = vshrl.u32 %v679, 7
      %v681 = vsub.s32 3, %v680
      %v682 = vrot.slane %v663, %v681
      %v683 = vlaneseq
      %v684 = vshrl.u32 %v683, 7
      %v685 = vsub.s32 4, %v684
      %v686 = vrot.slane %v663, %v685
      %v687 = vlaneseq
      %v688 = vshrl.u32 %v687, 7
      %v689 = vsub.s32 5, %v688
      %v690 = vrot.slane %v663, %v689
      %v691 = vlaneseq
      %v692 = vshrl.u32 %v691, 7
      %v693 = vsub.s32 6, %v692
      %v694 = vrot.slane %v663, %v693
      %v695 = vlaneseq
      %v696 = vshrl.u32 %v695, 7
      %v697 = vsub.s32 7, %v696
      %v698 = vrot.slane %v663, %v697
      %v699 = vlaneseq
      %v700 = vshrl.u32 %v699, 7
      %v701 = vsub.s32 0, %v700
      %v702 = vrot.slane %v664, %v701
      %v703 = vlaneseq
      %v704 = vshrl.u32 %v703, 7
      %v705 = vsub.s32 1, %v704
      %v706 = vrot.slane %v664, %v705
      %v707 = vlaneseq
      %v708 = vshrl.u32 %v707, 7
      %v709 = vsub.s32 2, %v708
      %v710 = vrot.slane %v664, %v709
      %v711 = vlaneseq
      %v712 = vshrl.u32 %v711, 7
      %v713 = vsub.s32 3, %v712
      %v714 = vrot.slane %v664, %v713
      %v715 = vlaneseq
      %v716 = vshrl.u32 %v715, 7
      %v717 = vsub.s32 4, %v716
      %v718 = vrot.slane %v664, %v717
      %v719 = vlaneseq
      %v720 = vshrl.u32 %v719, 7
      %v721 = vsub.s32 5, %v720
      %v722 = vrot.slane %v664, %v721
      %v723 = vlaneseq
      %v724 = vshrl.u32 %v723, 7
      %v725 = vsub.s32 6, %v724
      %v726 = vrot.slane %v664, %v725
      %v727 = vlaneseq
      %v728 = vshrl.u32 %v727, 7
      %v729 = vsub.s32 7, %v728
      %v730 = vrot.slane %v664, %v729
      %v779 = vunpack.c.l.b16 %v631
      %v780 = vunpack.c.h.b16 %v631
      %v781 = vunpack.c.l.b16 %v632
      %v782 = vunpack.c.h.b16 %v632
      %v783 = vunpack.c.l.b16 %v633
      %v784 = vunpack.c.h.b16 %v633
      %v785 = vunpack.c.l.b16 %v634
      %v786 = vunpack.c.h.b16 %v634
      %v787 = vunpack.c.l.b16 %v635
      %v788 = vunpack.c.h.b16 %v635
      %v789 = vunpack.c.l.b16 %v636
      %v790 = vunpack.c.h.b16 %v636
      %v791 = vunpack.c.l.b16 %v637
      %v792 = vunpack.c.h.b16 %v637
      %v793 = vunpack.c.l.b16 %v638
      %v794 = vunpack.c.h.b16 %v638
      %v795 = vunpack.c.l.b16 %v639
      %v796 = vunpack.c.h.b16 %v639
      %v797 = vunpack.c.l.b16 %v640
      %v798 = vunpack.c.h.b16 %v640
      %v799 = vunpack.c.l.b16 %v641
      %v800 = vunpack.c.h.b16 %v641
      %v801 = vunpack.c.l.b16 %v642
      %v802 = vunpack.c.h.b16 %v642
      %v803 = vunpack.c.l.b16 %v643
      %v804 = vunpack.c.h.b16 %v643
      %v805 = vunpack.c.l.b16 %v644
      %v806 = vunpack.c.h.b16 %v644
      %v807 = vunpack.c.l.b16 %v645
      %v808 = vunpack.c.h.b16 %v645
      %v809 = vunpack.c.l.b16 %v646
      %v810 = vunpack.c.h.b16 %v646
      %v811 = vunpack.c.l.b16 %v647
      %v812 = vunpack.c.h.b16 %v647
      %v813 = vunpack.c.l.b16 %v648
      %v814 = vunpack.c.h.b16 %v648
      %v815 = vunpack.c.l.b16 %v649
      %v816 = vunpack.c.h.b16 %v649
      %v817 = vunpack.c.l.b16 %v650
      %v818 = vunpack.c.h.b16 %v650
      %v819 = vunpack.c.l.b16 %v651
      %v820 = vunpack.c.h.b16 %v651
      %v821 = vunpack.c.l.b16 %v652
      %v822 = vunpack.c.h.b16 %v652
      %v823 = vunpack.c.l.b16 %v653
      %v824 = vunpack.c.h.b16 %v653
      %v825 = vunpack.c.l.b16 %v654
      %v826 = vunpack.c.h.b16 %v654
      %v827 = vunpack.c.l.b16 %v655
      %v828 = vunpack.c.h.b16 %v655
      %v829 = vunpack.c.l.b16 %v656
      %v830 = vunpack.c.h.b16 %v656
      %v831 = vunpack.c.l.b16 %v657
      %v832 = vunpack.c.h.b16 %v657
      %v833 = vunpack.c.l.b16 %v658
      %v834 = vunpack.c.h.b16 %v658
      %v835 = vunpack.c.l.b16 %v659
      %v836 = vunpack.c.h.b16 %v659
      %v837 = vunpack.c.l.b16 %v660
      %v838 = vunpack.c.h.b16 %v660
      %v839 = vunpack.c.l.b16 %v661
      %v840 = vunpack.c.h.b16 %v661
      %v841 = vunpack.c.l.b16 %v662
      %v842 = vunpack.c.h.b16 %v662
      %v843 = vpack.c.b16 %v795, %v779
      %v844 = vpack.c.b16 %v796, %v780
      %v845 = vpack.c.b16 %v797, %v781
      %v846 = vpack.c.b16 %v798, %v782
      %v847 = vpack.c.b16 %v799, %v783
      %v848 = vpack.c.b16 %v800, %v784
      %v849 = vpack.c.b16 %v801, %v785
      %v850 = vpack.c.b16 %v802, %v786
      %v851 = vpack.c.b16 %v803, %v787
      %v852 = vpack.c.b16 %v804, %v788
      %v853 = vpack.c.b16 %v805, %v789
      %v854 = vpack.c.b16 %v806, %v790
      %v855 = vpack.c.b16 %v807, %v791
      %v856 = vpack.c.b16 %v808, %v792
      %v857 = vpack.c.b16 %v809, %v793
      %v858 = vpack.c.b16 %v810, %v794
      %v859 = vpack.c.b16 %v827, %v811
      %v860 = vpack.c.b16 %v828, %v812
      %v861 = vpack.c.b16 %v829, %v813
      %v862 = vpack.c.b16 %v830, %v814
      %v863 = vpack.c.b16 %v831, %v815
      %v864 = vpack.c.b16 %v832, %v816
      %v865 = vpack.c.b16 %v833, %v817
      %v866 = vpack.c.b16 %v834, %v818
      %v867 = vpack.c.b16 %v835, %v819
      %v868 = vpack.c.b16 %v836, %v820
      %v869 = vpack.c.b16 %v837, %v821
      %v870 = vpack.c.b16 %v838, %v822
      %v871 = vpack.c.b16 %v839, %v823
      %v872 = vpack.c.b16 %v840, %v824
      %v873 = vpack.c.b16 %v841, %v825
      %v874 = vpack.c.b16 %v842, %v826
      %vm907 = vcmask 261120
      %v909 = vsel %vm907, %v616, 0
      %v912 = vsel %vm907, %v617, 0
      %v915 = vsel %vm907, %v618, 0
      %v918 = vsel %vm907, %v619, 0
      %v921 = vsel %vm907, %v620, 0
      %v924 = vsel %vm907, %v621, 0
      %v927 = vsel %vm907, %v622, 0
      %v930 = vsel %vm907, %v623, 0
      %v933 = vsel %vm907, %v624, 0
      %v936 = vsel %vm907, %v625, 0
      %v939 = vsel %vm907, %v626, 0
      %v942 = vsel %vm907, %v627, 0
      %v945 = vsel %vm907, %v628, 0
      %v948 = vsel %vm907, %v629, 0
      %v951 = vsel %vm907, %v630, 0
      %953 = vmatprep.subr.bf16.mxu0 %v844
      %954 = vmatpush1.bf16.msra.mxu0 %v843
      %955 = vmatprep.subr.bf16.mxu0 %v860
      %956 = vmatpush1.bf16.msra.mxu0 %v859
      %957 = vmatprep.subr.bf16.mxu0 0
      %958 = vmatpush1.bf16.msra.mxu0 0
      %959 = vmatprep.subr.bf16.mxu0 0
      %960 = vmatpush1.bf16.msra.mxu0 0
      %961 = vmatprep.subr.bf16.mxu0 0
      %962 = vmatpush1.bf16.msra.mxu0 0
      %963 = vmatprep.subr.bf16.mxu0 0
      %964 = vmatpush1.bf16.msra.mxu0 0
      %965 = vmatprep.subr.bf16.mxu0 0
      %966 = vmatpush1.bf16.msra.mxu0 0
      %967 = vmatprep.subr.bf16.mxu0 0
      %968 = vmatpush1.bf16.msra.mxu0 0
      %969 = vmatprep.subr.bf16.mxu0 0
      %970 = vmatpush1.bf16.msra.mxu0 0
      %971 = vmatprep.subr.bf16.mxu0 0
      %972 = vmatpush1.bf16.msra.mxu0 0
      %973 = vmatprep.subr.bf16.mxu0 0
      %974 = vmatpush1.bf16.msra.mxu0 0
      %975 = vmatprep.subr.bf16.mxu0 0
      %976 = vmatpush1.bf16.msra.mxu0 0
      %977 = vmatprep.subr.bf16.mxu0 0
      %978 = vmatpush1.bf16.msra.mxu0 0
      %979 = vmatprep.subr.bf16.mxu0 0
      %980 = vmatpush1.bf16.msra.mxu0 0
      %981 = vmatprep.subr.bf16.mxu0 0
      %982 = vmatpush1.bf16.msra.mxu0 0
      %983 = vmatprep.subr.bf16.mxu0 0
      %984 = vmatpush1.bf16.msra.mxu0 0
      %985 = vmatprep.mubr.bf16.mxu0 0
      %986 = vmatmul.mubr.bf16.gmra.mrb[0].mxu0 %v909
      %v987 = vpop.f32.mrb[0].mxu0
      %v988 = vadd.f32 %v670, %v987
      %v989 = vpop.f32.mrb[0].mxu0
      %v990 = vadd.f32 %v674, %v989
      %v991 = vpop.f32.mrb[0].mxu0
      %v992 = vadd.f32 %v670, %v991
      %v993 = vpop.f32.mrb[0].mxu0
      %v994 = vadd.f32 %v674, %v993
      %995 = vmatprep.mubr.bf16.mxu0 0
      %996 = vmatmul.mubr.bf16.gmra.mrb[0].mxu0 %v912
      %v997 = vpop.f32.mrb[0].mxu0
      %v998 = vadd.f32 %v670, %v997
      %v999 = vpop.f32.mrb[0].mxu0
      %v1000 = vadd.f32 %v674, %v999
      %v1001 = vpop.f32.mrb[0].mxu0
      %v1002 = vadd.f32 %v670, %v1001
      %v1003 = vpop.f32.mrb[0].mxu0
      %v1004 = vadd.f32 %v674, %v1003
      %1005 = vmatprep.mubr.bf16.mxu0 0
      %1006 = vmatmul.mubr.bf16.gmra.mrb[0].mxu0 %v915
      %v1007 = vpop.f32.mrb[0].mxu0
      %v1008 = vadd.f32 %v670, %v1007
      %v1009 = vpop.f32.mrb[0].mxu0
      %v1010 = vadd.f32 %v674, %v1009
      %v1011 = vpop.f32.mrb[0].mxu0
      %v1012 = vadd.f32 %v670, %v1011
      %v1013 = vpop.f32.mrb[0].mxu0
      %v1014 = vadd.f32 %v674, %v1013
      %1015 = vmatprep.mubr.bf16.mxu0 0
      %1016 = vmatmul.mubr.bf16.gmra.mrb[0].mxu0 %v918
      %v1017 = vpop.f32.mrb[0].mxu0
      %v1018 = vadd.f32 %v670, %v1017
      %v1019 = vpop.f32.mrb[0].mxu0
      %v1020 = vadd.f32 %v674, %v1019
      %v1021 = vpop.f32.mrb[0].mxu0
      %v1022 = vadd.f32 %v670, %v1021
      %v1023 = vpop.f32.mrb[0].mxu0
      %v1024 = vadd.f32 %v674, %v1023
      %1025 = vmatprep.mubr.bf16.mxu0 0
      %1026 = vmatmul.mubr.bf16.gmra.mrb[0].mxu0 %v921
      %v1027 = vpop.f32.mrb[0].mxu0
      %v1028 = vadd.f32 %v670, %v1027
      %v1029 = vpop.f32.mrb[0].mxu0
      %v1030 = vadd.f32 %v674, %v1029
      %v1031 = vpop.f32.mrb[0].mxu0
      %v1032 = vadd.f32 %v670, %v1031
      %v1033 = vpop.f32.mrb[0].mxu0
      %v1034 = vadd.f32 %v674, %v1033
      %1035 = vmatprep.mubr.bf16.mxu0 0
      %1036 = vmatmul.mubr.bf16.gmra.mrb[0].mxu0 %v924
      %v1037 = vpop.f32.mrb[0].mxu0
      %v1038 = vadd.f32 %v670, %v1037
      %v1039 = vpop.f32.mrb[0].mxu0
      %v1040 = vadd.f32 %v674, %v1039
      %v1041 = vpop.f32.mrb[0].mxu0
      %v1042 = vadd.f32 %v670, %v1041
      %v1043 = vpop.f32.mrb[0].mxu0
      %v1044 = vadd.f32 %v674, %v1043
      %1045 = vmatprep.mubr.bf16.mxu0 0
      %1046 = vmatmul.mubr.bf16.gmra.mrb[0].mxu0 %v927
      %v1047 = vpop.f32.mrb[0].mxu0
      %v1048 = vadd.f32 %v670, %v1047
      %v1049 = vpop.f32.mrb[0].mxu0
      %v1050 = vadd.f32 %v674, %v1049
      %v1051 = vpop.f32.mrb[0].mxu0
      %v1052 = vadd.f32 %v670, %v1051
      %v1053 = vpop.f32.mrb[0].mxu0
      %v1054 = vadd.f32 %v674, %v1053
      %1055 = vmatprep.mubr.bf16.mxu0 0
      %1056 = vmatmul.mubr.bf16.gmra.mrb[0].mxu0 %v930
      %v1057 = vpop.f32.mrb[0].mxu0
      %v1058 = vadd.f32 %v670, %v1057
      %v1059 = vpop.f32.mrb[0].mxu0
      %v1060 = vadd.f32 %v674, %v1059
      %v1061 = vpop.f32.mrb[0].mxu0
      %v1062 = vadd.f32 %v670, %v1061
      %v1063 = vpop.f32.mrb[0].mxu0
      %v1064 = vadd.f32 %v674, %v1063
      %1065 = vmatprep.mubr.bf16.mxu0 0
      %1066 = vmatmul.mubr.bf16.gmra.mrb[0].mxu0 %v933
      %v1067 = vpop.f32.mrb[0].mxu0
      %v1068 = vadd.f32 %v670, %v1067
      %v1069 = vpop.f32.mrb[0].mxu0
      %v1070 = vadd.f32 %v674, %v1069
      %v1071 = vpop.f32.mrb[0].mxu0
      %v1072 = vadd.f32 %v670, %v1071
      %v1073 = vpop.f32.mrb[0].mxu0
      %v1074 = vadd.f32 %v674, %v1073
      %1075 = vmatprep.mubr.bf16.mxu0 0
      %1076 = vmatmul.mubr.bf16.gmra.mrb[0].mxu0 %v936
      %v1077 = vpop.f32.mrb[0].mxu0
      %v1078 = vadd.f32 %v670, %v1077
      %v1079 = vpop.f32.mrb[0].mxu0
      %v1080 = vadd.f32 %v674, %v1079
      %v1081 = vpop.f32.mrb[0].mxu0
      %v1082 = vadd.f32 %v670, %v1081
      %v1083 = vpop.f32.mrb[0].mxu0
      %v1084 = vadd.f32 %v674, %v1083
      %1085 = vmatprep.mubr.bf16.mxu0 0
      %1086 = vmatmul.mubr.bf16.gmra.mrb[0].mxu0 %v939
      %v1087 = vpop.f32.mrb[0].mxu0
      %v1088 = vadd.f32 %v670, %v1087
      %v1089 = vpop.f32.mrb[0].mxu0
      %v1090 = vadd.f32 %v674, %v1089
      %v1091 = vpop.f32.mrb[0].mxu0
      %v1092 = vadd.f32 %v670, %v1091
      %v1093 = vpop.f32.mrb[0].mxu0
      %v1094 = vadd.f32 %v674, %v1093
      %1095 = vmatprep.mubr.bf16.mxu0 0
      %1096 = vmatmul.mubr.bf16.gmra.mrb[0].mxu0 %v942
      %v1097 = vpop.f32.mrb[0].mxu0
      %v1098 = vadd.f32 %v670, %v1097
      %v1099 = vpop.f32.mrb[0].mxu0
      %v1100 = vadd.f32 %v674, %v1099
      %v1101 = vpop.f32.mrb[0].mxu0
      %v1102 = vadd.f32 %v670, %v1101
      %v1103 = vpop.f32.mrb[0].mxu0
      %v1104 = vadd.f32 %v674, %v1103
      %1105 = vmatprep.mubr.bf16.mxu0 0
      %1106 = vmatmul.mubr.bf16.gmra.mrb[0].mxu0 %v945
      %v1107 = vpop.f32.mrb[0].mxu0
      %v1108 = vadd.f32 %v670, %v1107
      %v1109 = vpop.f32.mrb[0].mxu0
      %v1110 = vadd.f32 %v674, %v1109
      %v1111 = vpop.f32.mrb[0].mxu0
      %v1112 = vadd.f32 %v670, %v1111
      %v1113 = vpop.f32.mrb[0].mxu0
      %v1114 = vadd.f32 %v674, %v1113
      %1115 = vmatprep.mubr.bf16.mxu0 0
      %1116 = vmatmul.mubr.bf16.gmra.mrb[0].mxu0 %v948
      %v1117 = vpop.f32.mrb[0].mxu0
      %v1118 = vadd.f32 %v670, %v1117
      %v1119 = vpop.f32.mrb[0].mxu0
      %v1120 = vadd.f32 %v674, %v1119
      %v1121 = vpop.f32.mrb[0].mxu0
      %v1122 = vadd.f32 %v670, %v1121
      %v1123 = vpop.f32.mrb[0].mxu0
      %v1124 = vadd.f32 %v674, %v1123
      %1125 = vmatprep.mubr.bf16.mxu0 0
      %1126 = vmatmul.mubr.bf16.gmra.mrb[0].mxu0 %v951
      %v1127 = vpop.f32.mrb[0].mxu0
      %v1128 = vadd.f32 %v670, %v1127
      %v1129 = vpop.f32.mrb[0].mxu0
      %v1130 = vadd.f32 %v674, %v1129
      %v1131 = vpop.f32.mrb[0].mxu0
      %v1132 = vpop.f32.mrb[0].mxu0
      %1133 = vdwg.mxu0
      %1134 = vmatprep.subr.bf16.mxu0 %v846
      %1135 = vmatpush1.bf16.msra.mxu0 %v845
      %1136 = vmatprep.subr.bf16.mxu0 %v862
      %1137 = vmatpush1.bf16.msra.mxu0 %v861
      %1138 = vmatprep.subr.bf16.mxu0 0
      %1139 = vmatpush1.bf16.msra.mxu0 0
      %1140 = vmatprep.subr.bf16.mxu0 0
      %1141 = vmatpush1.bf16.msra.mxu0 0
      %1142 = vmatprep.subr.bf16.mxu0 0
      %1143 = vmatpush1.bf16.msra.mxu0 0
      %1144 = vmatprep.subr.bf16.mxu0 0
      %1145 = vmatpush1.bf16.msra.mxu0 0
      %1146 = vmatprep.subr.bf16.mxu0 0
      %1147 = vmatpush1.bf16.msra.mxu0 0
      %1148 = vmatprep.subr.bf16.mxu0 0
      %1149 = vmatpush1.bf16.msra.mxu0 0
      %1150 = vmatprep.subr.bf16.mxu0 0
      %1151 = vmatpush1.bf16.msra.mxu0 0
      %1152 = vmatprep.subr.bf16.mxu0 0
      %1153 = vmatpush1.bf16.msra.mxu0 0
      %1154 = vmatprep.subr.bf16.mxu0 0
      %1155 = vmatpush1.bf16.msra.mxu0 0
      %1156 = vmatprep.subr.bf16.mxu0 0
      %1157 = vmatpush1.bf16.msra.mxu0 0
      %1158 = vmatprep.subr.bf16.mxu0 0
      %1159 = vmatpush1.bf16.msra.mxu0 0
      %1160 = vmatprep.subr.bf16.mxu0 0
      %1161 = vmatpush1.bf16.msra.mxu0 0
      %1162 = vmatprep.subr.bf16.mxu0 0
      %1163 = vmatpush1.bf16.msra.mxu0 0
      %1164 = vmatprep.subr.bf16.mxu0 0
      %1165 = vmatpush1.bf16.msra.mxu0 0
      %1166 = vmatprep.mubr.bf16.mxu0 0
      %1167 = vmatmul.mubr.bf16.gmra.mrb[0].mxu0 %v909
      %v1168 = vpop.f32.mrb[0].mxu0
      %v1169 = vadd.f32 %v678, %v1168
      %v1170 = vpop.f32.mrb[0].mxu0
      %v1171 = vadd.f32 %v682, %v1170
      %v1172 = vpop.f32.mrb[0].mxu0
      %v1173 = vadd.f32 %v678, %v1172
      %v1174 = vpop.f32.mrb[0].mxu0
      %v1175 = vadd.f32 %v682, %v1174
      %1176 = vmatprep.mubr.bf16.mxu0 0
      %1177 = vmatmul.mubr.bf16.gmra.mrb[0].mxu0 %v912
      %v1178 = vpop.f32.mrb[0].mxu0
      %v1179 = vadd.f32 %v678, %v1178
      %v1180 = vpop.f32.mrb[0].mxu0
      %v1181 = vadd.f32 %v682, %v1180
      %v1182 = vpop.f32.mrb[0].mxu0
      %v1183 = vadd.f32 %v678, %v1182
      %v1184 = vpop.f32.mrb[0].mxu0
      %v1185 = vadd.f32 %v682, %v1184
      %1186 = vmatprep.mubr.bf16.mxu0 0
      %1187 = vmatmul.mubr.bf16.gmra.mrb[0].mxu0 %v915
      %v1188 = vpop.f32.mrb[0].mxu0
      %v1189 = vadd.f32 %v678, %v1188
      %v1190 = vpop.f32.mrb[0].mxu0
      %v1191 = vadd.f32 %v682, %v1190
      %v1192 = vpop.f32.mrb[0].mxu0
      %v1193 = vadd.f32 %v678, %v1192
      %v1194 = vpop.f32.mrb[0].mxu0
      %v1195 = vadd.f32 %v682, %v1194
      %1196 = vmatprep.mubr.bf16.mxu0 0
      %1197 = vmatmul.mubr.bf16.gmra.mrb[0].mxu0 %v918
      %v1198 = vpop.f32.mrb[0].mxu0
      %v1199 = vadd.f32 %v678, %v1198
      %v1200 = vpop.f32.mrb[0].mxu0
      %v1201 = vadd.f32 %v682, %v1200
      %v1202 = vpop.f32.mrb[0].mxu0
      %v1203 = vadd.f32 %v678, %v1202
      %v1204 = vpop.f32.mrb[0].mxu0
      %v1205 = vadd.f32 %v682, %v1204
      %1206 = vmatprep.mubr.bf16.mxu0 0
      %1207 = vmatmul.mubr.bf16.gmra.mrb[0].mxu0 %v921
      %v1208 = vpop.f32.mrb[0].mxu0
      %v1209 = vadd.f32 %v678, %v1208
      %v1210 = vpop.f32.mrb[0].mxu0
      %v1211 = vadd.f32 %v682, %v1210
      %v1212 = vpop.f32.mrb[0].mxu0
      %v1213 = vadd.f32 %v678, %v1212
      %v1214 = vpop.f32.mrb[0].mxu0
      %v1215 = vadd.f32 %v682, %v1214
      %1216 = vmatprep.mubr.bf16.mxu0 0
      %1217 = vmatmul.mubr.bf16.gmra.mrb[0].mxu0 %v924
      %v1218 = vpop.f32.mrb[0].mxu0
      %v1219 = vadd.f32 %v678, %v1218
      %v1220 = vpop.f32.mrb[0].mxu0
      %v1221 = vadd.f32 %v682, %v1220
      %v1222 = vpop.f32.mrb[0].mxu0
      %v1223 = vadd.f32 %v678, %v1222
      %v1224 = vpop.f32.mrb[0].mxu0
      %v1225 = vadd.f32 %v682, %v1224
      %1226 = vmatprep.mubr.bf16.mxu0 0
      %1227 = vmatmul.mubr.bf16.gmra.mrb[0].mxu0 %v927
      %v1228 = vpop.f32.mrb[0].mxu0
      %v1229 = vadd.f32 %v678, %v1228
      %v1230 = vpop.f32.mrb[0].mxu0
      %v1231 = vadd.f32 %v682, %v1230
      %v1232 = vpop.f32.mrb[0].mxu0
      %v1233 = vadd.f32 %v678, %v1232
      %v1234 = vpop.f32.mrb[0].mxu0
      %v1235 = vadd.f32 %v682, %v1234
      %1236 = vmatprep.mubr.bf16.mxu0 0
      %1237 = vmatmul.mubr.bf16.gmra.mrb[0].mxu0 %v930
      %v1238 = vpop.f32.mrb[0].mxu0
      %v1239 = vadd.f32 %v678, %v1238
      %v1240 = vpop.f32.mrb[0].mxu0
      %v1241 = vadd.f32 %v682, %v1240
      %v1242 = vpop.f32.mrb[0].mxu0
      %v1243 = vadd.f32 %v678, %v1242
      %v1244 = vpop.f32.mrb[0].mxu0
      %v1245 = vadd.f32 %v682, %v1244
      %1246 = vmatprep.mubr.bf16.mxu0 0
      %1247 = vmatmul.mubr.bf16.gmra.mrb[0].mxu0 %v933
      %v1248 = vpop.f32.mrb[0].mxu0
      %v1249 = vadd.f32 %v678, %v1248
      %v1250 = vpop.f32.mrb[0].mxu0
      %v1251 = vadd.f32 %v682, %v1250
      %v1252 = vpop.f32.mrb[0].mxu0
      %v1253 = vadd.f32 %v678, %v1252
      %v1254 = vpop.f32.mrb[0].mxu0
      %v1255 = vadd.f32 %v682, %v1254
      %1256 = vmatprep.mubr.bf16.mxu0 0
      %1257 = vmatmul.mubr.bf16.gmra.mrb[0].mxu0 %v936
      %v1258 = vpop.f32.mrb[0].mxu0
      %v1259 = vadd.f32 %v678, %v1258
      %v1260 = vpop.f32.mrb[0].mxu0
      %v1261 = vadd.f32 %v682, %v1260
      %v1262 = vpop.f32.mrb[0].mxu0
      %v1263 = vadd.f32 %v678, %v1262
      %v1264 = vpop.f32.mrb[0].mxu0
      %v1265 = vadd.f32 %v682, %v1264
      %1266 = vmatprep.mubr.bf16.mxu0 0
      %1267 = vmatmul.mubr.bf16.gmra.mrb[0].mxu0 %v939
      %v1268 = vpop.f32.mrb[0].mxu0
      %v1269 = vadd.f32 %v678, %v1268
      %v1270 = vpop.f32.mrb[0].mxu0
      %v1271 = vadd.f32 %v682, %v1270
      %v1272 = vpop.f32.mrb[0].mxu0
      %v1273 = vadd.f32 %v678, %v1272
      %v1274 = vpop.f32.mrb[0].mxu0
      %v1275 = vadd.f32 %v682, %v1274
      %1276 = vmatprep.mubr.bf16.mxu0 0
      %1277 = vmatmul.mubr.bf16.gmra.mrb[0].mxu0 %v942
      %v1278 = vpop.f32.mrb[0].mxu0
      %v1279 = vadd.f32 %v678, %v1278
      %v1280 = vpop.f32.mrb[0].mxu0
      %v1281 = vadd.f32 %v682, %v1280
      %v1282 = vpop.f32.mrb[0].mxu0
      %v1283 = vadd.f32 %v678, %v1282
      %v1284 = vpop.f32.mrb[0].mxu0
      %v1285 = vadd.f32 %v682, %v1284
      %1286 = vmatprep.mubr.bf16.mxu0 0
      %1287 = vmatmul.mubr.bf16.gmra.mrb[0].mxu0 %v945
      %v1288 = vpop.f32.mrb[0].mxu0
      %v1289 = vadd.f32 %v678, %v1288
      %v1290 = vpop.f32.mrb[0].mxu0
      %v1291 = vadd.f32 %v682, %v1290
      %v1292 = vpop.f32.mrb[0].mxu0
      %v1293 = vadd.f32 %v678, %v1292
      %v1294 = vpop.f32.mrb[0].mxu0
      %v1295 = vadd.f32 %v682, %v1294
      %1296 = vmatprep.mubr.bf16.mxu0 0
      %1297 = vmatmul.mubr.bf16.gmra.mrb[0].mxu0 %v948
      %v1298 = vpop.f32.mrb[0].mxu0
      %v1299 = vadd.f32 %v678, %v1298
      %v1300 = vpop.f32.mrb[0].mxu0
      %v1301 = vadd.f32 %v682, %v1300
      %v1302 = vpop.f32.mrb[0].mxu0
      %v1303 = vadd.f32 %v678, %v1302
      %v1304 = vpop.f32.mrb[0].mxu0
      %v1305 = vadd.f32 %v682, %v1304
      %1306 = vmatprep.mubr.bf16.mxu0 0
      %1307 = vmatmul.mubr.bf16.gmra.mrb[0].mxu0 %v951
      %v1308 = vpop.f32.mrb[0].mxu0
      %v1309 = vadd.f32 %v678, %v1308
      %v1310 = vpop.f32.mrb[0].mxu0
      %v1311 = vadd.f32 %v682, %v1310
      %v1312 = vpop.f32.mrb[0].mxu0
      %v1313 = vpop.f32.mrb[0].mxu0
      %1314 = vdwg.mxu0
      %1315 = vmatprep.subr.bf16.mxu0 %v848
      %1316 = vmatpush1.bf16.msra.mxu0 %v847
      %1317 = vmatprep.subr.bf16.mxu0 %v864
      %1318 = vmatpush1.bf16.msra.mxu0 %v863
      %1319 = vmatprep.subr.bf16.mxu0 0
      %1320 = vmatpush1.bf16.msra.mxu0 0
      %1321 = vmatprep.subr.bf16.mxu0 0
      %1322 = vmatpush1.bf16.msra.mxu0 0
      %1323 = vmatprep.subr.bf16.mxu0 0
      %1324 = vmatpush1.bf16.msra.mxu0 0
      %1325 = vmatprep.subr.bf16.mxu0 0
      %1326 = vmatpush1.bf16.msra.mxu0 0
      %1327 = vmatprep.subr.bf16.mxu0 0
      %1328 = vmatpush1.bf16.msra.mxu0 0
      %1329 = vmatprep.subr.bf16.mxu0 0
      %1330 = vmatpush1.bf16.msra.mxu0 0
      %1331 = vmatprep.subr.bf16.mxu0 0
      %1332 = vmatpush1.bf16.msra.mxu0 0
      %1333 = vmatprep.subr.bf16.mxu0 0
      %1334 = vmatpush1.bf16.msra.mxu0 0
      %1335 = vmatprep.subr.bf16.mxu0 0
      %1336 = vmatpush1.bf16.msra.mxu0 0
      %1337 = vmatprep.subr.bf16.mxu0 0
      %1338 = vmatpush1.bf16.msra.mxu0 0
      %1339 = vmatprep.subr.bf16.mxu0 0
      %1340 = vmatpush1.bf16.msra.mxu0 0
      %1341 = vmatprep.subr.bf16.mxu0 0
      %1342 = vmatpush1.bf16.msra.mxu0 0
      %1343 = vmatprep.subr.bf16.mxu0 0
      %1344 = vmatpush1.bf16.msra.mxu0 0
      %1345 = vmatprep.subr.bf16.mxu0 0
      %1346 = vmatpush1.bf16.msra.mxu0 0
      %1347 = vmatprep.mubr.bf16.mxu0 0
      %1348 = vmatmul.mubr.bf16.gmra.mrb[0].mxu0 %v909
      %v1349 = vpop.f32.mrb[0].mxu0
      %v1350 = vadd.f32 %v686, %v1349
      %v1351 = vpop.f32.mrb[0].mxu0
      %v1352 = vadd.f32 %v690, %v1351
      %v1353 = vpop.f32.mrb[0].mxu0
      %v1354 = vadd.f32 %v686, %v1353
      %v1355 = vpop.f32.mrb[0].mxu0
      %v1356 = vadd.f32 %v690, %v1355
      %1357 = vmatprep.mubr.bf16.mxu0 0
      %1358 = vmatmul.mubr.bf16.gmra.mrb[0].mxu0 %v912
      %v1359 = vpop.f32.mrb[0].mxu0
      %v1360 = vadd.f32 %v686, %v1359
      %v1361 = vpop.f32.mrb[0].mxu0
      %v1362 = vadd.f32 %v690, %v1361
      %v1363 = vpop.f32.mrb[0].mxu0
      %v1364 = vadd.f32 %v686, %v1363
      %v1365 = vpop.f32.mrb[0].mxu0
      %v1366 = vadd.f32 %v690, %v1365
      %1367 = vmatprep.mubr.bf16.mxu0 0
      %1368 = vmatmul.mubr.bf16.gmra.mrb[0].mxu0 %v915
      %v1369 = vpop.f32.mrb[0].mxu0
      %v1370 = vadd.f32 %v686, %v1369
      %v1371 = vpop.f32.mrb[0].mxu0
      %v1372 = vadd.f32 %v690, %v1371
      %v1373 = vpop.f32.mrb[0].mxu0
      %v1374 = vadd.f32 %v686, %v1373
      %v1375 = vpop.f32.mrb[0].mxu0
      %v1376 = vadd.f32 %v690, %v1375
      %1377 = vmatprep.mubr.bf16.mxu0 0
      %1378 = vmatmul.mubr.bf16.gmra.mrb[0].mxu0 %v918
      %v1379 = vpop.f32.mrb[0].mxu0
      %v1380 = vadd.f32 %v686, %v1379
      %v1381 = vpop.f32.mrb[0].mxu0
      %v1382 = vadd.f32 %v690, %v1381
      %v1383 = vpop.f32.mrb[0].mxu0
      %v1384 = vadd.f32 %v686, %v1383
      %v1385 = vpop.f32.mrb[0].mxu0
      %v1386 = vadd.f32 %v690, %v1385
      %1387 = vmatprep.mubr.bf16.mxu0 0
      %1388 = vmatmul.mubr.bf16.gmra.mrb[0].mxu0 %v921
      %v1389 = vpop.f32.mrb[0].mxu0
      %v1390 = vadd.f32 %v686, %v1389
      %v1391 = vpop.f32.mrb[0].mxu0
      %v1392 = vadd.f32 %v690, %v1391
      %v1393 = vpop.f32.mrb[0].mxu0
      %v1394 = vadd.f32 %v686, %v1393
      %v1395 = vpop.f32.mrb[0].mxu0
      %v1396 = vadd.f32 %v690, %v1395
      %1397 = vmatprep.mubr.bf16.mxu0 0
      %1398 = vmatmul.mubr.bf16.gmra.mrb[0].mxu0 %v924
      %v1399 = vpop.f32.mrb[0].mxu0
      %v1400 = vadd.f32 %v686, %v1399
      %v1401 = vpop.f32.mrb[0].mxu0
      %v1402 = vadd.f32 %v690, %v1401
      %v1403 = vpop.f32.mrb[0].mxu0
      %v1404 = vadd.f32 %v686, %v1403
      %v1405 = vpop.f32.mrb[0].mxu0
      %v1406 = vadd.f32 %v690, %v1405
      %1407 = vmatprep.mubr.bf16.mxu0 0
      %1408 = vmatmul.mubr.bf16.gmra.mrb[0].mxu0 %v927
      %v1409 = vpop.f32.mrb[0].mxu0
      %v1410 = vadd.f32 %v686, %v1409
      %v1411 = vpop.f32.mrb[0].mxu0
      %v1412 = vadd.f32 %v690, %v1411
      %v1413 = vpop.f32.mrb[0].mxu0
      %v1414 = vadd.f32 %v686, %v1413
      %v1415 = vpop.f32.mrb[0].mxu0
      %v1416 = vadd.f32 %v690, %v1415
      %1417 = vmatprep.mubr.bf16.mxu0 0
      %1418 = vmatmul.mubr.bf16.gmra.mrb[0].mxu0 %v930
      %v1419 = vpop.f32.mrb[0].mxu0
      %v1420 = vadd.f32 %v686, %v1419
      %v1421 = vpop.f32.mrb[0].mxu0
      %v1422 = vadd.f32 %v690, %v1421
      %v1423 = vpop.f32.mrb[0].mxu0
      %v1424 = vadd.f32 %v686, %v1423
      %v1425 = vpop.f32.mrb[0].mxu0
      %v1426 = vadd.f32 %v690, %v1425
      %1427 = vmatprep.mubr.bf16.mxu0 0
      %1428 = vmatmul.mubr.bf16.gmra.mrb[0].mxu0 %v933
      %v1429 = vpop.f32.mrb[0].mxu0
      %v1430 = vadd.f32 %v686, %v1429
      %v1431 = vpop.f32.mrb[0].mxu0
      %v1432 = vadd.f32 %v690, %v1431
      %v1433 = vpop.f32.mrb[0].mxu0
      %v1434 = vadd.f32 %v686, %v1433
      %v1435 = vpop.f32.mrb[0].mxu0
      %v1436 = vadd.f32 %v690, %v1435
      %1437 = vmatprep.mubr.bf16.mxu0 0
      %1438 = vmatmul.mubr.bf16.gmra.mrb[0].mxu0 %v936
      %v1439 = vpop.f32.mrb[0].mxu0
      %v1440 = vadd.f32 %v686, %v1439
      %v1441 = vpop.f32.mrb[0].mxu0
      %v1442 = vadd.f32 %v690, %v1441
      %v1443 = vpop.f32.mrb[0].mxu0
      %v1444 = vadd.f32 %v686, %v1443
      %v1445 = vpop.f32.mrb[0].mxu0
      %v1446 = vadd.f32 %v690, %v1445
      %1447 = vmatprep.mubr.bf16.mxu0 0
      %1448 = vmatmul.mubr.bf16.gmra.mrb[0].mxu0 %v939
      %v1449 = vpop.f32.mrb[0].mxu0
      %v1450 = vadd.f32 %v686, %v1449
      %v1451 = vpop.f32.mrb[0].mxu0
      %v1452 = vadd.f32 %v690, %v1451
      %v1453 = vpop.f32.mrb[0].mxu0
      %v1454 = vadd.f32 %v686, %v1453
      %v1455 = vpop.f32.mrb[0].mxu0
      %v1456 = vadd.f32 %v690, %v1455
      %1457 = vmatprep.mubr.bf16.mxu0 0
      %1458 = vmatmul.mubr.bf16.gmra.mrb[0].mxu0 %v942
      %v1459 = vpop.f32.mrb[0].mxu0
      %v1460 = vadd.f32 %v686, %v1459
      %v1461 = vpop.f32.mrb[0].mxu0
      %v1462 = vadd.f32 %v690, %v1461
      %v1463 = vpop.f32.mrb[0].mxu0
      %v1464 = vadd.f32 %v686, %v1463
      %v1465 = vpop.f32.mrb[0].mxu0
      %v1466 = vadd.f32 %v690, %v1465
      %1467 = vmatprep.mubr.bf16.mxu0 0
      %1468 = vmatmul.mubr.bf16.gmra.mrb[0].mxu0 %v945
      %v1469 = vpop.f32.mrb[0].mxu0
      %v1470 = vadd.f32 %v686, %v1469
      %v1471 = vpop.f32.mrb[0].mxu0
      %v1472 = vadd.f32 %v690, %v1471
      %v1473 = vpop.f32.mrb[0].mxu0
      %v1474 = vadd.f32 %v686, %v1473
      %v1475 = vpop.f32.mrb[0].mxu0
      %v1476 = vadd.f32 %v690, %v1475
      %1477 = vmatprep.mubr.bf16.mxu0 0
      %1478 = vmatmul.mubr.bf16.gmra.mrb[0].mxu0 %v948
      %v1479 = vpop.f32.mrb[0].mxu0
      %v1480 = vadd.f32 %v686, %v1479
      %v1481 = vpop.f32.mrb[0].mxu0
      %v1482 = vadd.f32 %v690, %v1481
      %v1483 = vpop.f32.mrb[0].mxu0
      %v1484 = vadd.f32 %v686, %v1483
      %v1485 = vpop.f32.mrb[0].mxu0
      %v1486 = vadd.f32 %v690, %v1485
      %1487 = vmatprep.mubr.bf16.mxu0 0
      %1488 = vmatmul.mubr.bf16.gmra.mrb[0].mxu0 %v951
      %v1489 = vpop.f32.mrb[0].mxu0
      %v1490 = vadd.f32 %v686, %v1489
      %v1491 = vpop.f32.mrb[0].mxu0
      %v1492 = vadd.f32 %v690, %v1491
      %v1493 = vpop.f32.mrb[0].mxu0
      %v1494 = vpop.f32.mrb[0].mxu0
      %1495 = vdwg.mxu0
      %1496 = vmatprep.subr.bf16.mxu0 %v850
      %1497 = vmatpush1.bf16.msra.mxu0 %v849
      %1498 = vmatprep.subr.bf16.mxu0 %v866
      %1499 = vmatpush1.bf16.msra.mxu0 %v865
      %1500 = vmatprep.subr.bf16.mxu0 0
      %1501 = vmatpush1.bf16.msra.mxu0 0
      %1502 = vmatprep.subr.bf16.mxu0 0
      %1503 = vmatpush1.bf16.msra.mxu0 0
      %1504 = vmatprep.subr.bf16.mxu0 0
      %1505 = vmatpush1.bf16.msra.mxu0 0
      %1506 = vmatprep.subr.bf16.mxu0 0
      %1507 = vmatpush1.bf16.msra.mxu0 0
      %1508 = vmatprep.subr.bf16.mxu0 0
      %1509 = vmatpush1.bf16.msra.mxu0 0
      %1510 = vmatprep.subr.bf16.mxu0 0
      %1511 = vmatpush1.bf16.msra.mxu0 0
      %1512 = vmatprep.subr.bf16.mxu0 0
      %1513 = vmatpush1.bf16.msra.mxu0 0
      %1514 = vmatprep.subr.bf16.mxu0 0
      %1515 = vmatpush1.bf16.msra.mxu0 0
      %1516 = vmatprep.subr.bf16.mxu0 0
      %1517 = vmatpush1.bf16.msra.mxu0 0
      %1518 = vmatprep.subr.bf16.mxu0 0
      %1519 = vmatpush1.bf16.msra.mxu0 0
      %1520 = vmatprep.subr.bf16.mxu0 0
      %1521 = vmatpush1.bf16.msra.mxu0 0
      %1522 = vmatprep.subr.bf16.mxu0 0
      %1523 = vmatpush1.bf16.msra.mxu0 0
      %1524 = vmatprep.subr.bf16.mxu0 0
      %1525 = vmatpush1.bf16.msra.mxu0 0
      %1526 = vmatprep.subr.bf16.mxu0 0
      %1527 = vmatpush1.bf16.msra.mxu0 0
      %1528 = vmatprep.mubr.bf16.mxu0 0
      %1529 = vmatmul.mubr.bf16.gmra.mrb[0].mxu0 %v909
      %v1530 = vpop.f32.mrb[0].mxu0
      %v1531 = vadd.f32 %v694, %v1530
      %v1532 = vpop.f32.mrb[0].mxu0
      %v1533 = vadd.f32 %v698, %v1532
      %v1534 = vpop.f32.mrb[0].mxu0
      %v1535 = vadd.f32 %v694, %v1534
      %v1536 = vpop.f32.mrb[0].mxu0
      %v1537 = vadd.f32 %v698, %v1536
      %1538 = vmatprep.mubr.bf16.mxu0 0
      %1539 = vmatmul.mubr.bf16.gmra.mrb[0].mxu0 %v912
      %v1540 = vpop.f32.mrb[0].mxu0
      %v1541 = vadd.f32 %v694, %v1540
      %v1542 = vpop.f32.mrb[0].mxu0
      %v1543 = vadd.f32 %v698, %v1542
      %v1544 = vpop.f32.mrb[0].mxu0
      %v1545 = vadd.f32 %v694, %v1544
      %v1546 = vpop.f32.mrb[0].mxu0
      %v1547 = vadd.f32 %v698, %v1546
      %1548 = vmatprep.mubr.bf16.mxu0 0
      %1549 = vmatmul.mubr.bf16.gmra.mrb[0].mxu0 %v915
      %v1550 = vpop.f32.mrb[0].mxu0
      %v1551 = vadd.f32 %v694, %v1550
      %v1552 = vpop.f32.mrb[0].mxu0
      %v1553 = vadd.f32 %v698, %v1552
      %v1554 = vpop.f32.mrb[0].mxu0
      %v1555 = vadd.f32 %v694, %v1554
      %v1556 = vpop.f32.mrb[0].mxu0
      %v1557 = vadd.f32 %v698, %v1556
      %1558 = vmatprep.mubr.bf16.mxu0 0
      %1559 = vmatmul.mubr.bf16.gmra.mrb[0].mxu0 %v918
      %v1560 = vpop.f32.mrb[0].mxu0
      %v1561 = vadd.f32 %v694, %v1560
      %v1562 = vpop.f32.mrb[0].mxu0
      %v1563 = vadd.f32 %v698, %v1562
      %v1564 = vpop.f32.mrb[0].mxu0
      %v1565 = vadd.f32 %v694, %v1564
      %v1566 = vpop.f32.mrb[0].mxu0
      %v1567 = vadd.f32 %v698, %v1566
      %1568 = vmatprep.mubr.bf16.mxu0 0
      %1569 = vmatmul.mubr.bf16.gmra.mrb[0].mxu0 %v921
      %v1570 = vpop.f32.mrb[0].mxu0
      %v1571 = vadd.f32 %v694, %v1570
      %v1572 = vpop.f32.mrb[0].mxu0
      %v1573 = vadd.f32 %v698, %v1572
      %v1574 = vpop.f32.mrb[0].mxu0
      %v1575 = vadd.f32 %v694, %v1574
      %v1576 = vpop.f32.mrb[0].mxu0
      %v1577 = vadd.f32 %v698, %v1576
      %1578 = vmatprep.mubr.bf16.mxu0 0
      %1579 = vmatmul.mubr.bf16.gmra.mrb[0].mxu0 %v924
      %v1580 = vpop.f32.mrb[0].mxu0
      %v1581 = vadd.f32 %v694, %v1580
      %v1582 = vpop.f32.mrb[0].mxu0
      %v1583 = vadd.f32 %v698, %v1582
      %v1584 = vpop.f32.mrb[0].mxu0
      %v1585 = vadd.f32 %v694, %v1584
      %v1586 = vpop.f32.mrb[0].mxu0
      %v1587 = vadd.f32 %v698, %v1586
      %1588 = vmatprep.mubr.bf16.mxu0 0
      %1589 = vmatmul.mubr.bf16.gmra.mrb[0].mxu0 %v927
      %v1590 = vpop.f32.mrb[0].mxu0
      %v1591 = vadd.f32 %v694, %v1590
      %v1592 = vpop.f32.mrb[0].mxu0
      %v1593 = vadd.f32 %v698, %v1592
      %v1594 = vpop.f32.mrb[0].mxu0
      %v1595 = vadd.f32 %v694, %v1594
      %v1596 = vpop.f32.mrb[0].mxu0
      %v1597 = vadd.f32 %v698, %v1596
      %1598 = vmatprep.mubr.bf16.mxu0 0
      %1599 = vmatmul.mubr.bf16.gmra.mrb[0].mxu0 %v930
      %v1600 = vpop.f32.mrb[0].mxu0
      %v1601 = vadd.f32 %v694, %v1600
      %v1602 = vpop.f32.mrb[0].mxu0
      %v1603 = vadd.f32 %v698, %v1602
      %v1604 = vpop.f32.mrb[0].mxu0
      %v1605 = vadd.f32 %v694, %v1604
      %v1606 = vpop.f32.mrb[0].mxu0
      %v1607 = vadd.f32 %v698, %v1606
      %1608 = vmatprep.mubr.bf16.mxu0 0
      %1609 = vmatmul.mubr.bf16.gmra.mrb[0].mxu0 %v933
      %v1610 = vpop.f32.mrb[0].mxu0
      %v1611 = vadd.f32 %v694, %v1610
      %v1612 = vpop.f32.mrb[0].mxu0
      %v1613 = vadd.f32 %v698, %v1612
      %v1614 = vpop.f32.mrb[0].mxu0
      %v1615 = vadd.f32 %v694, %v1614
      %v1616 = vpop.f32.mrb[0].mxu0
      %v1617 = vadd.f32 %v698, %v1616
      %1618 = vmatprep.mubr.bf16.mxu0 0
      %1619 = vmatmul.mubr.bf16.gmra.mrb[0].mxu0 %v936
      %v1620 = vpop.f32.mrb[0].mxu0
      %v1621 = vadd.f32 %v694, %v1620
      %v1622 = vpop.f32.mrb[0].mxu0
      %v1623 = vadd.f32 %v698, %v1622
      %v1624 = vpop.f32.mrb[0].mxu0
      %v1625 = vadd.f32 %v694, %v1624
      %v1626 = vpop.f32.mrb[0].mxu0
      %v1627 = vadd.f32 %v698, %v1626
      %1628 = vmatprep.mubr.bf16.mxu0 0
      %1629 = vmatmul.mubr.bf16.gmra.mrb[0].mxu0 %v939
      %v1630 = vpop.f32.mrb[0].mxu0
      %v1631 = vadd.f32 %v694, %v1630
      %v1632 = vpop.f32.mrb[0].mxu0
      %v1633 = vadd.f32 %v698, %v1632
      %v1634 = vpop.f32.mrb[0].mxu0
      %v1635 = vadd.f32 %v694, %v1634
      %v1636 = vpop.f32.mrb[0].mxu0
      %v1637 = vadd.f32 %v698, %v1636
      %1638 = vmatprep.mubr.bf16.mxu0 0
      %1639 = vmatmul.mubr.bf16.gmra.mrb[0].mxu0 %v942
      %v1640 = vpop.f32.mrb[0].mxu0
      %v1641 = vadd.f32 %v694, %v1640
      %v1642 = vpop.f32.mrb[0].mxu0
      %v1643 = vadd.f32 %v698, %v1642
      %v1644 = vpop.f32.mrb[0].mxu0
      %v1645 = vadd.f32 %v694, %v1644
      %v1646 = vpop.f32.mrb[0].mxu0
      %v1647 = vadd.f32 %v698, %v1646
      %1648 = vmatprep.mubr.bf16.mxu0 0
      %1649 = vmatmul.mubr.bf16.gmra.mrb[0].mxu0 %v945
      %v1650 = vpop.f32.mrb[0].mxu0
      %v1651 = vadd.f32 %v694, %v1650
      %v1652 = vpop.f32.mrb[0].mxu0
      %v1653 = vadd.f32 %v698, %v1652
      %v1654 = vpop.f32.mrb[0].mxu0
      %v1655 = vadd.f32 %v694, %v1654
      %v1656 = vpop.f32.mrb[0].mxu0
      %v1657 = vadd.f32 %v698, %v1656
      %1658 = vmatprep.mubr.bf16.mxu0 0
      %1659 = vmatmul.mubr.bf16.gmra.mrb[0].mxu0 %v948
      %v1660 = vpop.f32.mrb[0].mxu0
      %v1661 = vadd.f32 %v694, %v1660
      %v1662 = vpop.f32.mrb[0].mxu0
      %v1663 = vadd.f32 %v698, %v1662
      %v1664 = vpop.f32.mrb[0].mxu0
      %v1665 = vadd.f32 %v694, %v1664
      %v1666 = vpop.f32.mrb[0].mxu0
      %v1667 = vadd.f32 %v698, %v1666
      %1668 = vmatprep.mubr.bf16.mxu0 0
      %1669 = vmatmul.mubr.bf16.gmra.mrb[0].mxu0 %v951
      %v1670 = vpop.f32.mrb[0].mxu0
      %v1671 = vadd.f32 %v694, %v1670
      %v1672 = vpop.f32.mrb[0].mxu0
      %v1673 = vadd.f32 %v698, %v1672
      %v1674 = vpop.f32.mrb[0].mxu0
      %v1675 = vpop.f32.mrb[0].mxu0
      %1676 = vdwg.mxu0
      %1677 = vmatprep.subr.bf16.mxu0 %v852
      %1678 = vmatpush1.bf16.msra.mxu0 %v851
      %1679 = vmatprep.subr.bf16.mxu0 %v868
      %1680 = vmatpush1.bf16.msra.mxu0 %v867
      %1681 = vmatprep.subr.bf16.mxu0 0
      %1682 = vmatpush1.bf16.msra.mxu0 0
      %1683 = vmatprep.subr.bf16.mxu0 0
      %1684 = vmatpush1.bf16.msra.mxu0 0
      %1685 = vmatprep.subr.bf16.mxu0 0
      %1686 = vmatpush1.bf16.msra.mxu0 0
      %1687 = vmatprep.subr.bf16.mxu0 0
      %1688 = vmatpush1.bf16.msra.mxu0 0
      %1689 = vmatprep.subr.bf16.mxu0 0
      %1690 = vmatpush1.bf16.msra.mxu0 0
      %1691 = vmatprep.subr.bf16.mxu0 0
      %1692 = vmatpush1.bf16.msra.mxu0 0
      %1693 = vmatprep.subr.bf16.mxu0 0
      %1694 = vmatpush1.bf16.msra.mxu0 0
      %1695 = vmatprep.subr.bf16.mxu0 0
      %1696 = vmatpush1.bf16.msra.mxu0 0
      %1697 = vmatprep.subr.bf16.mxu0 0
      %1698 = vmatpush1.bf16.msra.mxu0 0
      %1699 = vmatprep.subr.bf16.mxu0 0
      %1700 = vmatpush1.bf16.msra.mxu0 0
      %1701 = vmatprep.subr.bf16.mxu0 0
      %1702 = vmatpush1.bf16.msra.mxu0 0
      %1703 = vmatprep.subr.bf16.mxu0 0
      %1704 = vmatpush1.bf16.msra.mxu0 0
      %1705 = vmatprep.subr.bf16.mxu0 0
      %1706 = vmatpush1.bf16.msra.mxu0 0
      %1707 = vmatprep.subr.bf16.mxu0 0
      %1708 = vmatpush1.bf16.msra.mxu0 0
      %1709 = vmatprep.mubr.bf16.mxu0 0
      %1710 = vmatmul.mubr.bf16.gmra.mrb[0].mxu0 %v909
      %v1711 = vpop.f32.mrb[0].mxu0
      %v1712 = vadd.f32 %v702, %v1711
      %v1713 = vpop.f32.mrb[0].mxu0
      %v1714 = vadd.f32 %v706, %v1713
      %v1715 = vpop.f32.mrb[0].mxu0
      %v1716 = vadd.f32 %v702, %v1715
      %v1717 = vpop.f32.mrb[0].mxu0
      %v1718 = vadd.f32 %v706, %v1717
      %1719 = vmatprep.mubr.bf16.mxu0 0
      %1720 = vmatmul.mubr.bf16.gmra.mrb[0].mxu0 %v912
      %v1721 = vpop.f32.mrb[0].mxu0
      %v1722 = vadd.f32 %v702, %v1721
      %v1723 = vpop.f32.mrb[0].mxu0
      %v1724 = vadd.f32 %v706, %v1723
      %v1725 = vpop.f32.mrb[0].mxu0
      %v1726 = vadd.f32 %v702, %v1725
      %v1727 = vpop.f32.mrb[0].mxu0
      %v1728 = vadd.f32 %v706, %v1727
      %1729 = vmatprep.mubr.bf16.mxu0 0
      %1730 = vmatmul.mubr.bf16.gmra.mrb[0].mxu0 %v915
      %v1731 = vpop.f32.mrb[0].mxu0
      %v1732 = vadd.f32 %v702, %v1731
      %v1733 = vpop.f32.mrb[0].mxu0
      %v1734 = vadd.f32 %v706, %v1733
      %v1735 = vpop.f32.mrb[0].mxu0
      %v1736 = vadd.f32 %v702, %v1735
      %v1737 = vpop.f32.mrb[0].mxu0
      %v1738 = vadd.f32 %v706, %v1737
      %1739 = vmatprep.mubr.bf16.mxu0 0
      %1740 = vmatmul.mubr.bf16.gmra.mrb[0].mxu0 %v918
      %v1741 = vpop.f32.mrb[0].mxu0
      %v1742 = vadd.f32 %v702, %v1741
      %v1743 = vpop.f32.mrb[0].mxu0
      %v1744 = vadd.f32 %v706, %v1743
      %v1745 = vpop.f32.mrb[0].mxu0
      %v1746 = vadd.f32 %v702, %v1745
      %v1747 = vpop.f32.mrb[0].mxu0
      %v1748 = vadd.f32 %v706, %v1747
      %1749 = vmatprep.mubr.bf16.mxu0 0
      %1750 = vmatmul.mubr.bf16.gmra.mrb[0].mxu0 %v921
      %v1751 = vpop.f32.mrb[0].mxu0
      %v1752 = vadd.f32 %v702, %v1751
      %v1753 = vpop.f32.mrb[0].mxu0
      %v1754 = vadd.f32 %v706, %v1753
      %v1755 = vpop.f32.mrb[0].mxu0
      %v1756 = vadd.f32 %v702, %v1755
      %v1757 = vpop.f32.mrb[0].mxu0
      %v1758 = vadd.f32 %v706, %v1757
      %1759 = vmatprep.mubr.bf16.mxu0 0
      %1760 = vmatmul.mubr.bf16.gmra.mrb[0].mxu0 %v924
      %v1761 = vpop.f32.mrb[0].mxu0
      %v1762 = vadd.f32 %v702, %v1761
      %v1763 = vpop.f32.mrb[0].mxu0
      %v1764 = vadd.f32 %v706, %v1763
      %v1765 = vpop.f32.mrb[0].mxu0
      %v1766 = vadd.f32 %v702, %v1765
      %v1767 = vpop.f32.mrb[0].mxu0
      %v1768 = vadd.f32 %v706, %v1767
      %1769 = vmatprep.mubr.bf16.mxu0 0
      %1770 = vmatmul.mubr.bf16.gmra.mrb[0].mxu0 %v927
      %v1771 = vpop.f32.mrb[0].mxu0
      %v1772 = vadd.f32 %v702, %v1771
      %v1773 = vpop.f32.mrb[0].mxu0
      %v1774 = vadd.f32 %v706, %v1773
      %v1775 = vpop.f32.mrb[0].mxu0
      %v1776 = vadd.f32 %v702, %v1775
      %v1777 = vpop.f32.mrb[0].mxu0
      %v1778 = vadd.f32 %v706, %v1777
      %1779 = vmatprep.mubr.bf16.mxu0 0
      %1780 = vmatmul.mubr.bf16.gmra.mrb[0].mxu0 %v930
      %v1781 = vpop.f32.mrb[0].mxu0
      %v1782 = vadd.f32 %v702, %v1781
      %v1783 = vpop.f32.mrb[0].mxu0
      %v1784 = vadd.f32 %v706, %v1783
      %v1785 = vpop.f32.mrb[0].mxu0
      %v1786 = vadd.f32 %v702, %v1785
      %v1787 = vpop.f32.mrb[0].mxu0
      %v1788 = vadd.f32 %v706, %v1787
      %1789 = vmatprep.mubr.bf16.mxu0 0
      %1790 = vmatmul.mubr.bf16.gmra.mrb[0].mxu0 %v933
      %v1791 = vpop.f32.mrb[0].mxu0
      %v1792 = vadd.f32 %v702, %v1791
      %v1793 = vpop.f32.mrb[0].mxu0
      %v1794 = vadd.f32 %v706, %v1793
      %v1795 = vpop.f32.mrb[0].mxu0
      %v1796 = vadd.f32 %v702, %v1795
      %v1797 = vpop.f32.mrb[0].mxu0
      %v1798 = vadd.f32 %v706, %v1797
      %1799 = vmatprep.mubr.bf16.mxu0 0
      %1800 = vmatmul.mubr.bf16.gmra.mrb[0].mxu0 %v936
      %v1801 = vpop.f32.mrb[0].mxu0
      %v1802 = vadd.f32 %v702, %v1801
      %v1803 = vpop.f32.mrb[0].mxu0
      %v1804 = vadd.f32 %v706, %v1803
      %v1805 = vpop.f32.mrb[0].mxu0
      %v1806 = vadd.f32 %v702, %v1805
      %v1807 = vpop.f32.mrb[0].mxu0
      %v1808 = vadd.f32 %v706, %v1807
      %1809 = vmatprep.mubr.bf16.mxu0 0
      %1810 = vmatmul.mubr.bf16.gmra.mrb[0].mxu0 %v939
      %v1811 = vpop.f32.mrb[0].mxu0
      %v1812 = vadd.f32 %v702, %v1811
      %v1813 = vpop.f32.mrb[0].mxu0
      %v1814 = vadd.f32 %v706, %v1813
      %v1815 = vpop.f32.mrb[0].mxu0
      %v1816 = vadd.f32 %v702, %v1815
      %v1817 = vpop.f32.mrb[0].mxu0
      %v1818 = vadd.f32 %v706, %v1817
      %1819 = vmatprep.mubr.bf16.mxu0 0
      %1820 = vmatmul.mubr.bf16.gmra.mrb[0].mxu0 %v942
      %v1821 = vpop.f32.mrb[0].mxu0
      %v1822 = vadd.f32 %v702, %v1821
      %v1823 = vpop.f32.mrb[0].mxu0
      %v1824 = vadd.f32 %v706, %v1823
      %v1825 = vpop.f32.mrb[0].mxu0
      %v1826 = vadd.f32 %v702, %v1825
      %v1827 = vpop.f32.mrb[0].mxu0
      %v1828 = vadd.f32 %v706, %v1827
      %1829 = vmatprep.mubr.bf16.mxu0 0
      %1830 = vmatmul.mubr.bf16.gmra.mrb[0].mxu0 %v945
      %v1831 = vpop.f32.mrb[0].mxu0
      %v1832 = vadd.f32 %v702, %v1831
      %v1833 = vpop.f32.mrb[0].mxu0
      %v1834 = vadd.f32 %v706, %v1833
      %v1835 = vpop.f32.mrb[0].mxu0
      %v1836 = vadd.f32 %v702, %v1835
      %v1837 = vpop.f32.mrb[0].mxu0
      %v1838 = vadd.f32 %v706, %v1837
      %1839 = vmatprep.mubr.bf16.mxu0 0
      %1840 = vmatmul.mubr.bf16.gmra.mrb[0].mxu0 %v948
      %v1841 = vpop.f32.mrb[0].mxu0
      %v1842 = vadd.f32 %v702, %v1841
      %v1843 = vpop.f32.mrb[0].mxu0
      %v1844 = vadd.f32 %v706, %v1843
      %v1845 = vpop.f32.mrb[0].mxu0
      %v1846 = vadd.f32 %v702, %v1845
      %v1847 = vpop.f32.mrb[0].mxu0
      %v1848 = vadd.f32 %v706, %v1847
      %1849 = vmatprep.mubr.bf16.mxu0 0
      %1850 = vmatmul.mubr.bf16.gmra.mrb[0].mxu0 %v951
      %v1851 = vpop.f32.mrb[0].mxu0
      %v1852 = vadd.f32 %v702, %v1851
      %v1853 = vpop.f32.mrb[0].mxu0
      %v1854 = vadd.f32 %v706, %v1853
      %v1855 = vpop.f32.mrb[0].mxu0
      %v1856 = vpop.f32.mrb[0].mxu0
      %1857 = vdwg.mxu0
      %1858 = vmatprep.subr.bf16.mxu0 %v854
      %1859 = vmatpush1.bf16.msra.mxu0 %v853
      %1860 = vmatprep.subr.bf16.mxu0 %v870
      %1861 = vmatpush1.bf16.msra.mxu0 %v869
      %1862 = vmatprep.subr.bf16.mxu0 0
      %1863 = vmatpush1.bf16.msra.mxu0 0
      %1864 = vmatprep.subr.bf16.mxu0 0
      %1865 = vmatpush1.bf16.msra.mxu0 0
      %1866 = vmatprep.subr.bf16.mxu0 0
      %1867 = vmatpush1.bf16.msra.mxu0 0
      %1868 = vmatprep.subr.bf16.mxu0 0
      %1869 = vmatpush1.bf16.msra.mxu0 0
      %1870 = vmatprep.subr.bf16.mxu0 0
      %1871 = vmatpush1.bf16.msra.mxu0 0
      %1872 = vmatprep.subr.bf16.mxu0 0
      %1873 = vmatpush1.bf16.msra.mxu0 0
      %1874 = vmatprep.subr.bf16.mxu0 0
      %1875 = vmatpush1.bf16.msra.mxu0 0
      %1876 = vmatprep.subr.bf16.mxu0 0
      %1877 = vmatpush1.bf16.msra.mxu0 0
      %1878 = vmatprep.subr.bf16.mxu0 0
      %1879 = vmatpush1.bf16.msra.mxu0 0
      %1880 = vmatprep.subr.bf16.mxu0 0
      %1881 = vmatpush1.bf16.msra.mxu0 0
      %1882 = vmatprep.subr.bf16.mxu0 0
      %1883 = vmatpush1.bf16.msra.mxu0 0
      %1884 = vmatprep.subr.bf16.mxu0 0
      %1885 = vmatpush1.bf16.msra.mxu0 0
      %1886 = vmatprep.subr.bf16.mxu0 0
      %1887 = vmatpush1.bf16.msra.mxu0 0
      %1888 = vmatprep.subr.bf16.mxu0 0
      %1889 = vmatpush1.bf16.msra.mxu0 0
      %1890 = vmatprep.mubr.bf16.mxu0 0
      %1891 = vmatmul.mubr.bf16.gmra.mrb[0].mxu0 %v909
      %v1892 = vpop.f32.mrb[0].mxu0
      %v1893 = vadd.f32 %v710, %v1892
      %v1894 = vpop.f32.mrb[0].mxu0
      %v1895 = vadd.f32 %v714, %v1894
      %v1896 = vpop.f32.mrb[0].mxu0
      %v1897 = vadd.f32 %v710, %v1896
      %v1898 = vpop.f32.mrb[0].mxu0
      %v1899 = vadd.f32 %v714, %v1898
      %1900 = vmatprep.mubr.bf16.mxu0 0
      %1901 = vmatmul.mubr.bf16.gmra.mrb[0].mxu0 %v912
      %v1902 = vpop.f32.mrb[0].mxu0
      %v1903 = vadd.f32 %v710, %v1902
      %v1904 = vpop.f32.mrb[0].mxu0
      %v1905 = vadd.f32 %v714, %v1904
      %v1906 = vpop.f32.mrb[0].mxu0
      %v1907 = vadd.f32 %v710, %v1906
      %v1908 = vpop.f32.mrb[0].mxu0
      %v1909 = vadd.f32 %v714, %v1908
      %1910 = vmatprep.mubr.bf16.mxu0 0
      %1911 = vmatmul.mubr.bf16.gmra.mrb[0].mxu0 %v915
      %v1912 = vpop.f32.mrb[0].mxu0
      %v1913 = vadd.f32 %v710, %v1912
      %v1914 = vpop.f32.mrb[0].mxu0
      %v1915 = vadd.f32 %v714, %v1914
      %v1916 = vpop.f32.mrb[0].mxu0
      %v1917 = vadd.f32 %v710, %v1916
      %v1918 = vpop.f32.mrb[0].mxu0
      %v1919 = vadd.f32 %v714, %v1918
      %1920 = vmatprep.mubr.bf16.mxu0 0
      %1921 = vmatmul.mubr.bf16.gmra.mrb[0].mxu0 %v918
      %v1922 = vpop.f32.mrb[0].mxu0
      %v1923 = vadd.f32 %v710, %v1922
      %v1924 = vpop.f32.mrb[0].mxu0
      %v1925 = vadd.f32 %v714, %v1924
      %v1926 = vpop.f32.mrb[0].mxu0
      %v1927 = vadd.f32 %v710, %v1926
      %v1928 = vpop.f32.mrb[0].mxu0
      %v1929 = vadd.f32 %v714, %v1928
      %1930 = vmatprep.mubr.bf16.mxu0 0
      %1931 = vmatmul.mubr.bf16.gmra.mrb[0].mxu0 %v921
      %v1932 = vpop.f32.mrb[0].mxu0
      %v1933 = vadd.f32 %v710, %v1932
      %v1934 = vpop.f32.mrb[0].mxu0
      %v1935 = vadd.f32 %v714, %v1934
      %v1936 = vpop.f32.mrb[0].mxu0
      %v1937 = vadd.f32 %v710, %v1936
      %v1938 = vpop.f32.mrb[0].mxu0
      %v1939 = vadd.f32 %v714, %v1938
      %1940 = vmatprep.mubr.bf16.mxu0 0
      %1941 = vmatmul.mubr.bf16.gmra.mrb[0].mxu0 %v924
      %v1942 = vpop.f32.mrb[0].mxu0
      %v1943 = vadd.f32 %v710, %v1942
      %v1944 = vpop.f32.mrb[0].mxu0
      %v1945 = vadd.f32 %v714, %v1944
      %v1946 = vpop.f32.mrb[0].mxu0
      %v1947 = vadd.f32 %v710, %v1946
      %v1948 = vpop.f32.mrb[0].mxu0
      %v1949 = vadd.f32 %v714, %v1948
      %1950 = vmatprep.mubr.bf16.mxu0 0
      %1951 = vmatmul.mubr.bf16.gmra.mrb[0].mxu0 %v927
      %v1952 = vpop.f32.mrb[0].mxu0
      %v1953 = vadd.f32 %v710, %v1952
      %v1954 = vpop.f32.mrb[0].mxu0
      %v1955 = vadd.f32 %v714, %v1954
      %v1956 = vpop.f32.mrb[0].mxu0
      %v1957 = vadd.f32 %v710, %v1956
      %v1958 = vpop.f32.mrb[0].mxu0
      %v1959 = vadd.f32 %v714, %v1958
      %1960 = vmatprep.mubr.bf16.mxu0 0
      %1961 = vmatmul.mubr.bf16.gmra.mrb[0].mxu0 %v930
      %v1962 = vpop.f32.mrb[0].mxu0
      %v1963 = vadd.f32 %v710, %v1962
      %v1964 = vpop.f32.mrb[0].mxu0
      %v1965 = vadd.f32 %v714, %v1964
      %v1966 = vpop.f32.mrb[0].mxu0
      %v1967 = vadd.f32 %v710, %v1966
      %v1968 = vpop.f32.mrb[0].mxu0
      %v1969 = vadd.f32 %v714, %v1968
      %1970 = vmatprep.mubr.bf16.mxu0 0
      %1971 = vmatmul.mubr.bf16.gmra.mrb[0].mxu0 %v933
      %v1972 = vpop.f32.mrb[0].mxu0
      %v1973 = vadd.f32 %v710, %v1972
      %v1974 = vpop.f32.mrb[0].mxu0
      %v1975 = vadd.f32 %v714, %v1974
      %v1976 = vpop.f32.mrb[0].mxu0
      %v1977 = vadd.f32 %v710, %v1976
      %v1978 = vpop.f32.mrb[0].mxu0
      %v1979 = vadd.f32 %v714, %v1978
      %1980 = vmatprep.mubr.bf16.mxu0 0
      %1981 = vmatmul.mubr.bf16.gmra.mrb[0].mxu0 %v936
      %v1982 = vpop.f32.mrb[0].mxu0
      %v1983 = vadd.f32 %v710, %v1982
      %v1984 = vpop.f32.mrb[0].mxu0
      %v1985 = vadd.f32 %v714, %v1984
      %v1986 = vpop.f32.mrb[0].mxu0
      %v1987 = vadd.f32 %v710, %v1986
      %v1988 = vpop.f32.mrb[0].mxu0
      %v1989 = vadd.f32 %v714, %v1988
      %1990 = vmatprep.mubr.bf16.mxu0 0
      %1991 = vmatmul.mubr.bf16.gmra.mrb[0].mxu0 %v939
      %v1992 = vpop.f32.mrb[0].mxu0
      %v1993 = vadd.f32 %v710, %v1992
      %v1994 = vpop.f32.mrb[0].mxu0
      %v1995 = vadd.f32 %v714, %v1994
      %v1996 = vpop.f32.mrb[0].mxu0
      %v1997 = vadd.f32 %v710, %v1996
      %v1998 = vpop.f32.mrb[0].mxu0
      %v1999 = vadd.f32 %v714, %v1998
      %2000 = vmatprep.mubr.bf16.mxu0 0
      %2001 = vmatmul.mubr.bf16.gmra.mrb[0].mxu0 %v942
      %v2002 = vpop.f32.mrb[0].mxu0
      %v2003 = vadd.f32 %v710, %v2002
      %v2004 = vpop.f32.mrb[0].mxu0
      %v2005 = vadd.f32 %v714, %v2004
      %v2006 = vpop.f32.mrb[0].mxu0
      %v2007 = vadd.f32 %v710, %v2006
      %v2008 = vpop.f32.mrb[0].mxu0
      %v2009 = vadd.f32 %v714, %v2008
      %2010 = vmatprep.mubr.bf16.mxu0 0
      %2011 = vmatmul.mubr.bf16.gmra.mrb[0].mxu0 %v945
      %v2012 = vpop.f32.mrb[0].mxu0
      %v2013 = vadd.f32 %v710, %v2012
      %v2014 = vpop.f32.mrb[0].mxu0
      %v2015 = vadd.f32 %v714, %v2014
      %v2016 = vpop.f32.mrb[0].mxu0
      %v2017 = vadd.f32 %v710, %v2016
      %v2018 = vpop.f32.mrb[0].mxu0
      %v2019 = vadd.f32 %v714, %v2018
      %2020 = vmatprep.mubr.bf16.mxu0 0
      %2021 = vmatmul.mubr.bf16.gmra.mrb[0].mxu0 %v948
      %v2022 = vpop.f32.mrb[0].mxu0
      %v2023 = vadd.f32 %v710, %v2022
      %v2024 = vpop.f32.mrb[0].mxu0
      %v2025 = vadd.f32 %v714, %v2024
      %v2026 = vpop.f32.mrb[0].mxu0
      %v2027 = vadd.f32 %v710, %v2026
      %v2028 = vpop.f32.mrb[0].mxu0
      %v2029 = vadd.f32 %v714, %v2028
      %2030 = vmatprep.mubr.bf16.mxu0 0
      %2031 = vmatmul.mubr.bf16.gmra.mrb[0].mxu0 %v951
      %v2032 = vpop.f32.mrb[0].mxu0
      %v2033 = vadd.f32 %v710, %v2032
      %v2034 = vpop.f32.mrb[0].mxu0
      %v2035 = vadd.f32 %v714, %v2034
      %v2036 = vpop.f32.mrb[0].mxu0
      %v2037 = vpop.f32.mrb[0].mxu0
      %2038 = vdwg.mxu0
      %2039 = vmatprep.subr.bf16.mxu0 %v856
      %2040 = vmatpush1.bf16.msra.mxu0 %v855
      %2041 = vmatprep.subr.bf16.mxu0 %v872
      %2042 = vmatpush1.bf16.msra.mxu0 %v871
      %2043 = vmatprep.subr.bf16.mxu0 0
      %2044 = vmatpush1.bf16.msra.mxu0 0
      %2045 = vmatprep.subr.bf16.mxu0 0
      %2046 = vmatpush1.bf16.msra.mxu0 0
      %2047 = vmatprep.subr.bf16.mxu0 0
      %2048 = vmatpush1.bf16.msra.mxu0 0
      %2049 = vmatprep.subr.bf16.mxu0 0
      %2050 = vmatpush1.bf16.msra.mxu0 0
      %2051 = vmatprep.subr.bf16.mxu0 0
      %2052 = vmatpush1.bf16.msra.mxu0 0
      %2053 = vmatprep.subr.bf16.mxu0 0
      %2054 = vmatpush1.bf16.msra.mxu0 0
      %2055 = vmatprep.subr.bf16.mxu0 0
      %2056 = vmatpush1.bf16.msra.mxu0 0
      %2057 = vmatprep.subr.bf16.mxu0 0
      %2058 = vmatpush1.bf16.msra.mxu0 0
      %2059 = vmatprep.subr.bf16.mxu0 0
      %2060 = vmatpush1.bf16.msra.mxu0 0
      %2061 = vmatprep.subr.bf16.mxu0 0
      %2062 = vmatpush1.bf16.msra.mxu0 0
      %2063 = vmatprep.subr.bf16.mxu0 0
      %2064 = vmatpush1.bf16.msra.mxu0 0
      %2065 = vmatprep.subr.bf16.mxu0 0
      %2066 = vmatpush1.bf16.msra.mxu0 0
      %2067 = vmatprep.subr.bf16.mxu0 0
      %2068 = vmatpush1.bf16.msra.mxu0 0
      %2069 = vmatprep.subr.bf16.mxu0 0
      %2070 = vmatpush1.bf16.msra.mxu0 0
      %2071 = vmatprep.mubr.bf16.mxu0 0
      %2072 = vmatmul.mubr.bf16.gmra.mrb[0].mxu0 %v909
      %v2073 = vpop.f32.mrb[0].mxu0
      %v2074 = vadd.f32 %v718, %v2073
      %v2075 = vpop.f32.mrb[0].mxu0
      %v2076 = vadd.f32 %v722, %v2075
      %v2077 = vpop.f32.mrb[0].mxu0
      %v2078 = vadd.f32 %v718, %v2077
      %v2079 = vpop.f32.mrb[0].mxu0
      %v2080 = vadd.f32 %v722, %v2079
      %2081 = vmatprep.mubr.bf16.mxu0 0
      %2082 = vmatmul.mubr.bf16.gmra.mrb[0].mxu0 %v912
      %v2083 = vpop.f32.mrb[0].mxu0
      %v2084 = vadd.f32 %v718, %v2083
      %v2085 = vpop.f32.mrb[0].mxu0
      %v2086 = vadd.f32 %v722, %v2085
      %v2087 = vpop.f32.mrb[0].mxu0
      %v2088 = vadd.f32 %v718, %v2087
      %v2089 = vpop.f32.mrb[0].mxu0
      %v2090 = vadd.f32 %v722, %v2089
      %2091 = vmatprep.mubr.bf16.mxu0 0
      %2092 = vmatmul.mubr.bf16.gmra.mrb[0].mxu0 %v915
      %v2093 = vpop.f32.mrb[0].mxu0
      %v2094 = vadd.f32 %v718, %v2093
      %v2095 = vpop.f32.mrb[0].mxu0
      %v2096 = vadd.f32 %v722, %v2095
      %v2097 = vpop.f32.mrb[0].mxu0
      %v2098 = vadd.f32 %v718, %v2097
      %v2099 = vpop.f32.mrb[0].mxu0
      %v2100 = vadd.f32 %v722, %v2099
      %2101 = vmatprep.mubr.bf16.mxu0 0
      %2102 = vmatmul.mubr.bf16.gmra.mrb[0].mxu0 %v918
      %v2103 = vpop.f32.mrb[0].mxu0
      %v2104 = vadd.f32 %v718, %v2103
      %v2105 = vpop.f32.mrb[0].mxu0
      %v2106 = vadd.f32 %v722, %v2105
      %v2107 = vpop.f32.mrb[0].mxu0
      %v2108 = vadd.f32 %v718, %v2107
      %v2109 = vpop.f32.mrb[0].mxu0
      %v2110 = vadd.f32 %v722, %v2109
      %2111 = vmatprep.mubr.bf16.mxu0 0
      %2112 = vmatmul.mubr.bf16.gmra.mrb[0].mxu0 %v921
      %v2113 = vpop.f32.mrb[0].mxu0
      %v2114 = vadd.f32 %v718, %v2113
      %v2115 = vpop.f32.mrb[0].mxu0
      %v2116 = vadd.f32 %v722, %v2115
      %v2117 = vpop.f32.mrb[0].mxu0
      %v2118 = vadd.f32 %v718, %v2117
      %v2119 = vpop.f32.mrb[0].mxu0
      %v2120 = vadd.f32 %v722, %v2119
      %2121 = vmatprep.mubr.bf16.mxu0 0
      %2122 = vmatmul.mubr.bf16.gmra.mrb[0].mxu0 %v924
      %v2123 = vpop.f32.mrb[0].mxu0
      %v2124 = vadd.f32 %v718, %v2123
      %v2125 = vpop.f32.mrb[0].mxu0
      %v2126 = vadd.f32 %v722, %v2125
      %v2127 = vpop.f32.mrb[0].mxu0
      %v2128 = vadd.f32 %v718, %v2127
      %v2129 = vpop.f32.mrb[0].mxu0
      %v2130 = vadd.f32 %v722, %v2129
      %2131 = vmatprep.mubr.bf16.mxu0 0
      %2132 = vmatmul.mubr.bf16.gmra.mrb[0].mxu0 %v927
      %v2133 = vpop.f32.mrb[0].mxu0
      %v2134 = vadd.f32 %v718, %v2133
      %v2135 = vpop.f32.mrb[0].mxu0
      %v2136 = vadd.f32 %v722, %v2135
      %v2137 = vpop.f32.mrb[0].mxu0
      %v2138 = vadd.f32 %v718, %v2137
      %v2139 = vpop.f32.mrb[0].mxu0
      %v2140 = vadd.f32 %v722, %v2139
      %2141 = vmatprep.mubr.bf16.mxu0 0
      %2142 = vmatmul.mubr.bf16.gmra.mrb[0].mxu0 %v930
      %v2143 = vpop.f32.mrb[0].mxu0
      %v2144 = vadd.f32 %v718, %v2143
      %v2145 = vpop.f32.mrb[0].mxu0
      %v2146 = vadd.f32 %v722, %v2145
      %v2147 = vpop.f32.mrb[0].mxu0
      %v2148 = vadd.f32 %v718, %v2147
      %v2149 = vpop.f32.mrb[0].mxu0
      %v2150 = vadd.f32 %v722, %v2149
      %2151 = vmatprep.mubr.bf16.mxu0 0
      %2152 = vmatmul.mubr.bf16.gmra.mrb[0].mxu0 %v933
      %v2153 = vpop.f32.mrb[0].mxu0
      %v2154 = vadd.f32 %v718, %v2153
      %v2155 = vpop.f32.mrb[0].mxu0
      %v2156 = vadd.f32 %v722, %v2155
      %v2157 = vpop.f32.mrb[0].mxu0
      %v2158 = vadd.f32 %v718, %v2157
      %v2159 = vpop.f32.mrb[0].mxu0
      %v2160 = vadd.f32 %v722, %v2159
      %2161 = vmatprep.mubr.bf16.mxu0 0
      %2162 = vmatmul.mubr.bf16.gmra.mrb[0].mxu0 %v936
      %v2163 = vpop.f32.mrb[0].mxu0
      %v2164 = vadd.f32 %v718, %v2163
      %v2165 = vpop.f32.mrb[0].mxu0
      %v2166 = vadd.f32 %v722, %v2165
      %v2167 = vpop.f32.mrb[0].mxu0
      %v2168 = vadd.f32 %v718, %v2167
      %v2169 = vpop.f32.mrb[0].mxu0
      %v2170 = vadd.f32 %v722, %v2169
      %2171 = vmatprep.mubr.bf16.mxu0 0
      %2172 = vmatmul.mubr.bf16.gmra.mrb[0].mxu0 %v939
      %v2173 = vpop.f32.mrb[0].mxu0
      %v2174 = vadd.f32 %v718, %v2173
      %v2175 = vpop.f32.mrb[0].mxu0
      %v2176 = vadd.f32 %v722, %v2175
      %v2177 = vpop.f32.mrb[0].mxu0
      %v2178 = vadd.f32 %v718, %v2177
      %v2179 = vpop.f32.mrb[0].mxu0
      %v2180 = vadd.f32 %v722, %v2179
      %2181 = vmatprep.mubr.bf16.mxu0 0
      %2182 = vmatmul.mubr.bf16.gmra.mrb[0].mxu0 %v942
      %v2183 = vpop.f32.mrb[0].mxu0
      %v2184 = vadd.f32 %v718, %v2183
      %v2185 = vpop.f32.mrb[0].mxu0
      %v2186 = vadd.f32 %v722, %v2185
      %v2187 = vpop.f32.mrb[0].mxu0
      %v2188 = vadd.f32 %v718, %v2187
      %v2189 = vpop.f32.mrb[0].mxu0
      %v2190 = vadd.f32 %v722, %v2189
      %2191 = vmatprep.mubr.bf16.mxu0 0
      %2192 = vmatmul.mubr.bf16.gmra.mrb[0].mxu0 %v945
      %v2193 = vpop.f32.mrb[0].mxu0
      %v2194 = vadd.f32 %v718, %v2193
      %v2195 = vpop.f32.mrb[0].mxu0
      %v2196 = vadd.f32 %v722, %v2195
      %v2197 = vpop.f32.mrb[0].mxu0
      %v2198 = vadd.f32 %v718, %v2197
      %v2199 = vpop.f32.mrb[0].mxu0
      %v2200 = vadd.f32 %v722, %v2199
      %2201 = vmatprep.mubr.bf16.mxu0 0
      %2202 = vmatmul.mubr.bf16.gmra.mrb[0].mxu0 %v948
      %v2203 = vpop.f32.mrb[0].mxu0
      %v2204 = vadd.f32 %v718, %v2203
      %v2205 = vpop.f32.mrb[0].mxu0
      %v2206 = vadd.f32 %v722, %v2205
      %v2207 = vpop.f32.mrb[0].mxu0
      %v2208 = vadd.f32 %v718, %v2207
      %v2209 = vpop.f32.mrb[0].mxu0
      %v2210 = vadd.f32 %v722, %v2209
      %2211 = vmatprep.mubr.bf16.mxu0 0
      %2212 = vmatmul.mubr.bf16.gmra.mrb[0].mxu0 %v951
      %v2213 = vpop.f32.mrb[0].mxu0
      %v2214 = vadd.f32 %v718, %v2213
      %v2215 = vpop.f32.mrb[0].mxu0
      %v2216 = vadd.f32 %v722, %v2215
      %v2217 = vpop.f32.mrb[0].mxu0
      %v2218 = vpop.f32.mrb[0].mxu0
      %2219 = vdwg.mxu0
      %2220 = vmatprep.subr.bf16.mxu0 %v858
      %2221 = vmatpush1.bf16.msra.mxu0 %v857
      %2222 = vmatprep.subr.bf16.mxu0 %v874
      %2223 = vmatpush1.bf16.msra.mxu0 %v873
      %2224 = vmatprep.subr.bf16.mxu0 0
      %2225 = vmatpush1.bf16.msra.mxu0 0
      %2226 = vmatprep.subr.bf16.mxu0 0
      %2227 = vmatpush1.bf16.msra.mxu0 0
      %2228 = vmatprep.subr.bf16.mxu0 0
      %2229 = vmatpush1.bf16.msra.mxu0 0
      %2230 = vmatprep.subr.bf16.mxu0 0
      %2231 = vmatpush1.bf16.msra.mxu0 0
      %2232 = vmatprep.subr.bf16.mxu0 0
      %2233 = vmatpush1.bf16.msra.mxu0 0
      %2234 = vmatprep.subr.bf16.mxu0 0
      %2235 = vmatpush1.bf16.msra.mxu0 0
      %2236 = vmatprep.subr.bf16.mxu0 0
      %2237 = vmatpush1.bf16.msra.mxu0 0
      %2238 = vmatprep.subr.bf16.mxu0 0
      %2239 = vmatpush1.bf16.msra.mxu0 0
      %2240 = vmatprep.subr.bf16.mxu0 0
      %2241 = vmatpush1.bf16.msra.mxu0 0
      %2242 = vmatprep.subr.bf16.mxu0 0
      %2243 = vmatpush1.bf16.msra.mxu0 0
      %2244 = vmatprep.subr.bf16.mxu0 0
      %2245 = vmatpush1.bf16.msra.mxu0 0
      %2246 = vmatprep.subr.bf16.mxu0 0
      %2247 = vmatpush1.bf16.msra.mxu0 0
      %2248 = vmatprep.subr.bf16.mxu0 0
      %2249 = vmatpush1.bf16.msra.mxu0 0
      %2250 = vmatprep.subr.bf16.mxu0 0
      %2251 = vmatpush1.bf16.msra.mxu0 0
      %2252 = vmatprep.mubr.bf16.mxu0 0
      %2253 = vmatmul.mubr.bf16.gmra.mrb[0].mxu0 %v909
      %v2254 = vpop.f32.mrb[0].mxu0
      %v2255 = vadd.f32 %v726, %v2254
      %v2256 = vpop.f32.mrb[0].mxu0
      %v2257 = vadd.f32 %v730, %v2256
      %v2258 = vpop.f32.mrb[0].mxu0
      %v2259 = vadd.f32 %v726, %v2258
      %v2260 = vpop.f32.mrb[0].mxu0
      %v2261 = vadd.f32 %v730, %v2260
      %2262 = vmatprep.mubr.bf16.mxu0 0
      %2263 = vmatmul.mubr.bf16.gmra.mrb[0].mxu0 %v912
      %v2264 = vpop.f32.mrb[0].mxu0
      %v2265 = vadd.f32 %v726, %v2264
      %v2266 = vpop.f32.mrb[0].mxu0
      %v2267 = vadd.f32 %v730, %v2266
      %v2268 = vpop.f32.mrb[0].mxu0
      %v2269 = vadd.f32 %v726, %v2268
      %v2270 = vpop.f32.mrb[0].mxu0
      %v2271 = vadd.f32 %v730, %v2270
      %2272 = vmatprep.mubr.bf16.mxu0 0
      %2273 = vmatmul.mubr.bf16.gmra.mrb[0].mxu0 %v915
      %v2274 = vpop.f32.mrb[0].mxu0
      %v2275 = vadd.f32 %v726, %v2274
      %v2276 = vpop.f32.mrb[0].mxu0
      %v2277 = vadd.f32 %v730, %v2276
      %v2278 = vpop.f32.mrb[0].mxu0
      %v2279 = vadd.f32 %v726, %v2278
      %v2280 = vpop.f32.mrb[0].mxu0
      %v2281 = vadd.f32 %v730, %v2280
      %2282 = vmatprep.mubr.bf16.mxu0 0
      %2283 = vmatmul.mubr.bf16.gmra.mrb[0].mxu0 %v918
      %v2284 = vpop.f32.mrb[0].mxu0
      %v2285 = vadd.f32 %v726, %v2284
      %v2286 = vpop.f32.mrb[0].mxu0
      %v2287 = vadd.f32 %v730, %v2286
      %v2288 = vpop.f32.mrb[0].mxu0
      %v2289 = vadd.f32 %v726, %v2288
      %v2290 = vpop.f32.mrb[0].mxu0
      %v2291 = vadd.f32 %v730, %v2290
      %2292 = vmatprep.mubr.bf16.mxu0 0
      %2293 = vmatmul.mubr.bf16.gmra.mrb[0].mxu0 %v921
      %v2294 = vpop.f32.mrb[0].mxu0
      %v2295 = vadd.f32 %v726, %v2294
      %v2296 = vpop.f32.mrb[0].mxu0
      %v2297 = vadd.f32 %v730, %v2296
      %v2298 = vpop.f32.mrb[0].mxu0
      %v2299 = vadd.f32 %v726, %v2298
      %v2300 = vpop.f32.mrb[0].mxu0
      %v2301 = vadd.f32 %v730, %v2300
      %2302 = vmatprep.mubr.bf16.mxu0 0
      %2303 = vmatmul.mubr.bf16.gmra.mrb[0].mxu0 %v924
      %v2304 = vpop.f32.mrb[0].mxu0
      %v2305 = vadd.f32 %v726, %v2304
      %v2306 = vpop.f32.mrb[0].mxu0
      %v2307 = vadd.f32 %v730, %v2306
      %v2308 = vpop.f32.mrb[0].mxu0
      %v2309 = vadd.f32 %v726, %v2308
      %v2310 = vpop.f32.mrb[0].mxu0
      %v2311 = vadd.f32 %v730, %v2310
      %2312 = vmatprep.mubr.bf16.mxu0 0
      %2313 = vmatmul.mubr.bf16.gmra.mrb[0].mxu0 %v927
      %v2314 = vpop.f32.mrb[0].mxu0
      %v2315 = vadd.f32 %v726, %v2314
      %v2316 = vpop.f32.mrb[0].mxu0
      %v2317 = vadd.f32 %v730, %v2316
      %v2318 = vpop.f32.mrb[0].mxu0
      %v2319 = vadd.f32 %v726, %v2318
      %v2320 = vpop.f32.mrb[0].mxu0
      %v2321 = vadd.f32 %v730, %v2320
      %2322 = vmatprep.mubr.bf16.mxu0 0
      %2323 = vmatmul.mubr.bf16.gmra.mrb[0].mxu0 %v930
      %v2324 = vpop.f32.mrb[0].mxu0
      %v2325 = vadd.f32 %v726, %v2324
      %v2326 = vpop.f32.mrb[0].mxu0
      %v2327 = vadd.f32 %v730, %v2326
      %v2328 = vpop.f32.mrb[0].mxu0
      %v2329 = vadd.f32 %v726, %v2328
      %v2330 = vpop.f32.mrb[0].mxu0
      %v2331 = vadd.f32 %v730, %v2330
      %2332 = vmatprep.mubr.bf16.mxu0 0
      %2333 = vmatmul.mubr.bf16.gmra.mrb[0].mxu0 %v933
      %v2334 = vpop.f32.mrb[0].mxu0
      %v2335 = vadd.f32 %v726, %v2334
      %v2336 = vpop.f32.mrb[0].mxu0
      %v2337 = vadd.f32 %v730, %v2336
      %v2338 = vpop.f32.mrb[0].mxu0
      %v2339 = vadd.f32 %v726, %v2338
      %v2340 = vpop.f32.mrb[0].mxu0
      %v2341 = vadd.f32 %v730, %v2340
      %2342 = vmatprep.mubr.bf16.mxu0 0
      %2343 = vmatmul.mubr.bf16.gmra.mrb[0].mxu0 %v936
      %v2344 = vpop.f32.mrb[0].mxu0
      %v2345 = vadd.f32 %v726, %v2344
      %v2346 = vpop.f32.mrb[0].mxu0
      %v2347 = vadd.f32 %v730, %v2346
      %v2348 = vpop.f32.mrb[0].mxu0
      %v2349 = vadd.f32 %v726, %v2348
      %v2350 = vpop.f32.mrb[0].mxu0
      %v2351 = vadd.f32 %v730, %v2350
      %2352 = vmatprep.mubr.bf16.mxu0 0
      %2353 = vmatmul.mubr.bf16.gmra.mrb[0].mxu0 %v939
      %v2354 = vpop.f32.mrb[0].mxu0
      %v2355 = vadd.f32 %v726, %v2354
      %v2356 = vpop.f32.mrb[0].mxu0
      %v2357 = vadd.f32 %v730, %v2356
      %v2358 = vpop.f32.mrb[0].mxu0
      %v2359 = vadd.f32 %v726, %v2358
      %v2360 = vpop.f32.mrb[0].mxu0
      %v2361 = vadd.f32 %v730, %v2360
      %2362 = vmatprep.mubr.bf16.mxu0 0
      %2363 = vmatmul.mubr.bf16.gmra.mrb[0].mxu0 %v942
      %v2364 = vpop.f32.mrb[0].mxu0
      %v2365 = vadd.f32 %v726, %v2364
      %v2366 = vpop.f32.mrb[0].mxu0
      %v2367 = vadd.f32 %v730, %v2366
      %v2368 = vpop.f32.mrb[0].mxu0
      %v2369 = vadd.f32 %v726, %v2368
      %v2370 = vpop.f32.mrb[0].mxu0
      %v2371 = vadd.f32 %v730, %v2370
      %2372 = vmatprep.mubr.bf16.mxu0 0
      %2373 = vmatmul.mubr.bf16.gmra.mrb[0].mxu0 %v945
      %v2374 = vpop.f32.mrb[0].mxu0
      %v2375 = vadd.f32 %v726, %v2374
      %v2376 = vpop.f32.mrb[0].mxu0
      %v2377 = vadd.f32 %v730, %v2376
      %v2378 = vpop.f32.mrb[0].mxu0
      %v2379 = vadd.f32 %v726, %v2378
      %v2380 = vpop.f32.mrb[0].mxu0
      %v2381 = vadd.f32 %v730, %v2380
      %2382 = vmatprep.mubr.bf16.mxu0 0
      %2383 = vmatmul.mubr.bf16.gmra.mrb[0].mxu0 %v948
      %v2384 = vpop.f32.mrb[0].mxu0
      %v2385 = vadd.f32 %v726, %v2384
      %v2386 = vpop.f32.mrb[0].mxu0
      %v2387 = vadd.f32 %v730, %v2386
      %v2388 = vpop.f32.mrb[0].mxu0
      %v2389 = vadd.f32 %v726, %v2388
      %v2390 = vpop.f32.mrb[0].mxu0
      %v2391 = vadd.f32 %v730, %v2390
      %2392 = vmatprep.mubr.bf16.mxu0 0
      %2393 = vmatmul.mubr.bf16.gmra.mrb[0].mxu0 %v951
      %v2394 = vpop.f32.mrb[0].mxu0
      %v2395 = vadd.f32 %v726, %v2394
      %v2396 = vpop.f32.mrb[0].mxu0
      %v2397 = vadd.f32 %v730, %v2396
      %v2398 = vpop.f32.mrb[0].mxu0
      %v2399 = vpop.f32.mrb[0].mxu0
      %2400 = vdwg.mxu0
      %v2401 = vmax.f32 %v988, 0.0
      %v2402 = vmax.f32 %v990, 0.0
      %v2403 = vmax.f32 %v1169, 0.0
      %v2404 = vmax.f32 %v1171, 0.0
      %v2405 = vmax.f32 %v1350, 0.0
      %v2406 = vmax.f32 %v1352, 0.0
      %v2407 = vmax.f32 %v1531, 0.0
      %v2408 = vmax.f32 %v1533, 0.0
      %v2409 = vmax.f32 %v1712, 0.0
      %v2410 = vmax.f32 %v1714, 0.0
      %v2411 = vmax.f32 %v1893, 0.0
      %v2412 = vmax.f32 %v1895, 0.0
      %v2413 = vmax.f32 %v2074, 0.0
      %v2414 = vmax.f32 %v2076, 0.0
      %v2415 = vmax.f32 %v2255, 0.0
      %v2416 = vmax.f32 %v2257, 0.0
      %v2417 = vmax.f32 %v992, 0.0
      %v2418 = vmax.f32 %v994, 0.0
      %v2419 = vmax.f32 %v1173, 0.0
      %v2420 = vmax.f32 %v1175, 0.0
      %v2421 = vmax.f32 %v1354, 0.0
      %v2422 = vmax.f32 %v1356, 0.0
      %v2423 = vmax.f32 %v1535, 0.0
      %v2424 = vmax.f32 %v1537, 0.0
      %v2425 = vmax.f32 %v1716, 0.0
      %v2426 = vmax.f32 %v1718, 0.0
      %v2427 = vmax.f32 %v1897, 0.0
      %v2428 = vmax.f32 %v1899, 0.0
      %v2429 = vmax.f32 %v2078, 0.0
      %v2430 = vmax.f32 %v2080, 0.0
      %v2431 = vmax.f32 %v2259, 0.0
      %v2432 = vmax.f32 %v2261, 0.0
      %v2433 = vmax.f32 %v998, 0.0
      %v2434 = vmax.f32 %v1000, 0.0
      %v2435 = vmax.f32 %v1179, 0.0
      %v2436 = vmax.f32 %v1181, 0.0
      %v2437 = vmax.f32 %v1360, 0.0
      %v2438 = vmax.f32 %v1362, 0.0
      %v2439 = vmax.f32 %v1541, 0.0
      %v2440 = vmax.f32 %v1543, 0.0
      %v2441 = vmax.f32 %v1722, 0.0
      %v2442 = vmax.f32 %v1724, 0.0
      %v2443 = vmax.f32 %v1903, 0.0
      %v2444 = vmax.f32 %v1905, 0.0
      %v2445 = vmax.f32 %v2084, 0.0
      %v2446 = vmax.f32 %v2086, 0.0
      %v2447 = vmax.f32 %v2265, 0.0
      %v2448 = vmax.f32 %v2267, 0.0
      %v2449 = vmax.f32 %v1002, 0.0
      %v2450 = vmax.f32 %v1004, 0.0
      %v2451 = vmax.f32 %v1183, 0.0
      %v2452 = vmax.f32 %v1185, 0.0
      %v2453 = vmax.f32 %v1364, 0.0
      %v2454 = vmax.f32 %v1366, 0.0
      %v2455 = vmax.f32 %v1545, 0.0
      %v2456 = vmax.f32 %v1547, 0.0
      %v2457 = vmax.f32 %v1726, 0.0
      %v2458 = vmax.f32 %v1728, 0.0
      %v2459 = vmax.f32 %v1907, 0.0
      %v2460 = vmax.f32 %v1909, 0.0
      %v2461 = vmax.f32 %v2088, 0.0
      %v2462 = vmax.f32 %v2090, 0.0
      %v2463 = vmax.f32 %v2269, 0.0
      %v2464 = vmax.f32 %v2271, 0.0
      %v2465 = vmax.f32 %v1008, 0.0
      %v2466 = vmax.f32 %v1010, 0.0
      %v2467 = vmax.f32 %v1189, 0.0
      %v2468 = vmax.f32 %v1191, 0.0
      %v2469 = vmax.f32 %v1370, 0.0
      %v2470 = vmax.f32 %v1372, 0.0
      %v2471 = vmax.f32 %v1551, 0.0
      %v2472 = vmax.f32 %v1553, 0.0
      %v2473 = vmax.f32 %v1732, 0.0
      %v2474 = vmax.f32 %v1734, 0.0
      %v2475 = vmax.f32 %v1913, 0.0
      %v2476 = vmax.f32 %v1915, 0.0
      %v2477 = vmax.f32 %v2094, 0.0
      %v2478 = vmax.f32 %v2096, 0.0
      %v2479 = vmax.f32 %v2275, 0.0
      %v2480 = vmax.f32 %v2277, 0.0
      %v2481 = vmax.f32 %v1012, 0.0
      %v2482 = vmax.f32 %v1014, 0.0
      %v2483 = vmax.f32 %v1193, 0.0
      %v2484 = vmax.f32 %v1195, 0.0
      %v2485 = vmax.f32 %v1374, 0.0
      %v2486 = vmax.f32 %v1376, 0.0
      %v2487 = vmax.f32 %v1555, 0.0
      %v2488 = vmax.f32 %v1557, 0.0
      %v2489 = vmax.f32 %v1736, 0.0
      %v2490 = vmax.f32 %v1738, 0.0
      %v2491 = vmax.f32 %v1917, 0.0
      %v2492 = vmax.f32 %v1919, 0.0
      %v2493 = vmax.f32 %v2098, 0.0
      %v2494 = vmax.f32 %v2100, 0.0
      %v2495 = vmax.f32 %v2279, 0.0
      %v2496 = vmax.f32 %v2281, 0.0
      %v2497 = vmax.f32 %v1018, 0.0
      %v2498 = vmax.f32 %v1020, 0.0
      %v2499 = vmax.f32 %v1199, 0.0
      %v2500 = vmax.f32 %v1201, 0.0
      %v2501 = vmax.f32 %v1380, 0.0
      %v2502 = vmax.f32 %v1382, 0.0
      %v2503 = vmax.f32 %v1561, 0.0
      %v2504 = vmax.f32 %v1563, 0.0
      %v2505 = vmax.f32 %v1742, 0.0
      %v2506 = vmax.f32 %v1744, 0.0
      %v2507 = vmax.f32 %v1923, 0.0
      %v2508 = vmax.f32 %v1925, 0.0
      %v2509 = vmax.f32 %v2104, 0.0
      %v2510 = vmax.f32 %v2106, 0.0
      %v2511 = vmax.f32 %v2285, 0.0
      %v2512 = vmax.f32 %v2287, 0.0
      %v2513 = vmax.f32 %v1022, 0.0
      %v2514 = vmax.f32 %v1024, 0.0
      %v2515 = vmax.f32 %v1203, 0.0
      %v2516 = vmax.f32 %v1205, 0.0
      %v2517 = vmax.f32 %v1384, 0.0
      %v2518 = vmax.f32 %v1386, 0.0
      %v2519 = vmax.f32 %v1565, 0.0
      %v2520 = vmax.f32 %v1567, 0.0
      %v2521 = vmax.f32 %v1746, 0.0
      %v2522 = vmax.f32 %v1748, 0.0
      %v2523 = vmax.f32 %v1927, 0.0
      %v2524 = vmax.f32 %v1929, 0.0
      %v2525 = vmax.f32 %v2108, 0.0
      %v2526 = vmax.f32 %v2110, 0.0
      %v2527 = vmax.f32 %v2289, 0.0
      %v2528 = vmax.f32 %v2291, 0.0
      %v2529 = vmax.f32 %v1028, 0.0
      %v2530 = vmax.f32 %v1030, 0.0
      %v2531 = vmax.f32 %v1209, 0.0
      %v2532 = vmax.f32 %v1211, 0.0
      %v2533 = vmax.f32 %v1390, 0.0
      %v2534 = vmax.f32 %v1392, 0.0
      %v2535 = vmax.f32 %v1571, 0.0
      %v2536 = vmax.f32 %v1573, 0.0
      %v2537 = vmax.f32 %v1752, 0.0
      %v2538 = vmax.f32 %v1754, 0.0
      %v2539 = vmax.f32 %v1933, 0.0
      %v2540 = vmax.f32 %v1935, 0.0
      %v2541 = vmax.f32 %v2114, 0.0
      %v2542 = vmax.f32 %v2116, 0.0
      %v2543 = vmax.f32 %v2295, 0.0
      %v2544 = vmax.f32 %v2297, 0.0
      %v2545 = vmax.f32 %v1032, 0.0
      %v2546 = vmax.f32 %v1034, 0.0
      %v2547 = vmax.f32 %v1213, 0.0
      %v2548 = vmax.f32 %v1215, 0.0
      %v2549 = vmax.f32 %v1394, 0.0
      %v2550 = vmax.f32 %v1396, 0.0
      %v2551 = vmax.f32 %v1575, 0.0
      %v2552 = vmax.f32 %v1577, 0.0
      %v2553 = vmax.f32 %v1756, 0.0
      %v2554 = vmax.f32 %v1758, 0.0
      %v2555 = vmax.f32 %v1937, 0.0
      %v2556 = vmax.f32 %v1939, 0.0
      %v2557 = vmax.f32 %v2118, 0.0
      %v2558 = vmax.f32 %v2120, 0.0
      %v2559 = vmax.f32 %v2299, 0.0
      %v2560 = vmax.f32 %v2301, 0.0
      %v2561 = vmax.f32 %v1038, 0.0
      %v2562 = vmax.f32 %v1040, 0.0
      %v2563 = vmax.f32 %v1219, 0.0
      %v2564 = vmax.f32 %v1221, 0.0
      %v2565 = vmax.f32 %v1400, 0.0
      %v2566 = vmax.f32 %v1402, 0.0
      %v2567 = vmax.f32 %v1581, 0.0
      %v2568 = vmax.f32 %v1583, 0.0
      %v2569 = vmax.f32 %v1762, 0.0
      %v2570 = vmax.f32 %v1764, 0.0
      %v2571 = vmax.f32 %v1943, 0.0
      %v2572 = vmax.f32 %v1945, 0.0
      %v2573 = vmax.f32 %v2124, 0.0
      %v2574 = vmax.f32 %v2126, 0.0
      %v2575 = vmax.f32 %v2305, 0.0
      %v2576 = vmax.f32 %v2307, 0.0
      %v2577 = vmax.f32 %v1042, 0.0
      %v2578 = vmax.f32 %v1044, 0.0
      %v2579 = vmax.f32 %v1223, 0.0
      %v2580 = vmax.f32 %v1225, 0.0
      %v2581 = vmax.f32 %v1404, 0.0
      %v2582 = vmax.f32 %v1406, 0.0
      %v2583 = vmax.f32 %v1585, 0.0
      %v2584 = vmax.f32 %v1587, 0.0
      %v2585 = vmax.f32 %v1766, 0.0
      %v2586 = vmax.f32 %v1768, 0.0
      %v2587 = vmax.f32 %v1947, 0.0
      %v2588 = vmax.f32 %v1949, 0.0
      %v2589 = vmax.f32 %v2128, 0.0
      %v2590 = vmax.f32 %v2130, 0.0
      %v2591 = vmax.f32 %v2309, 0.0
      %v2592 = vmax.f32 %v2311, 0.0
      %v2593 = vmax.f32 %v1048, 0.0
      %v2594 = vmax.f32 %v1050, 0.0
      %v2595 = vmax.f32 %v1229, 0.0
      %v2596 = vmax.f32 %v1231, 0.0
      %v2597 = vmax.f32 %v1410, 0.0
      %v2598 = vmax.f32 %v1412, 0.0
      %v2599 = vmax.f32 %v1591, 0.0
      %v2600 = vmax.f32 %v1593, 0.0
      %v2601 = vmax.f32 %v1772, 0.0
      %v2602 = vmax.f32 %v1774, 0.0
      %v2603 = vmax.f32 %v1953, 0.0
      %v2604 = vmax.f32 %v1955, 0.0
      %v2605 = vmax.f32 %v2134, 0.0
      %v2606 = vmax.f32 %v2136, 0.0
      %v2607 = vmax.f32 %v2315, 0.0
      %v2608 = vmax.f32 %v2317, 0.0
      %v2609 = vmax.f32 %v1052, 0.0
      %v2610 = vmax.f32 %v1054, 0.0
      %v2611 = vmax.f32 %v1233, 0.0
      %v2612 = vmax.f32 %v1235, 0.0
      %v2613 = vmax.f32 %v1414, 0.0
      %v2614 = vmax.f32 %v1416, 0.0
      %v2615 = vmax.f32 %v1595, 0.0
      %v2616 = vmax.f32 %v1597, 0.0
      %v2617 = vmax.f32 %v1776, 0.0
      %v2618 = vmax.f32 %v1778, 0.0
      %v2619 = vmax.f32 %v1957, 0.0
      %v2620 = vmax.f32 %v1959, 0.0
      %v2621 = vmax.f32 %v2138, 0.0
      %v2622 = vmax.f32 %v2140, 0.0
      %v2623 = vmax.f32 %v2319, 0.0
      %v2624 = vmax.f32 %v2321, 0.0
      %v2625 = vmax.f32 %v1058, 0.0
      %v2626 = vmax.f32 %v1060, 0.0
      %v2627 = vmax.f32 %v1239, 0.0
      %v2628 = vmax.f32 %v1241, 0.0
      %v2629 = vmax.f32 %v1420, 0.0
      %v2630 = vmax.f32 %v1422, 0.0
      %v2631 = vmax.f32 %v1601, 0.0
      %v2632 = vmax.f32 %v1603, 0.0
      %v2633 = vmax.f32 %v1782, 0.0
      %v2634 = vmax.f32 %v1784, 0.0
      %v2635 = vmax.f32 %v1963, 0.0
      %v2636 = vmax.f32 %v1965, 0.0
      %v2637 = vmax.f32 %v2144, 0.0
      %v2638 = vmax.f32 %v2146, 0.0
      %v2639 = vmax.f32 %v2325, 0.0
      %v2640 = vmax.f32 %v2327, 0.0
      %v2641 = vmax.f32 %v1062, 0.0
      %v2642 = vmax.f32 %v1064, 0.0
      %v2643 = vmax.f32 %v1243, 0.0
      %v2644 = vmax.f32 %v1245, 0.0
      %v2645 = vmax.f32 %v1424, 0.0
      %v2646 = vmax.f32 %v1426, 0.0
      %v2647 = vmax.f32 %v1605, 0.0
      %v2648 = vmax.f32 %v1607, 0.0
      %v2649 = vmax.f32 %v1786, 0.0
      %v2650 = vmax.f32 %v1788, 0.0
      %v2651 = vmax.f32 %v1967, 0.0
      %v2652 = vmax.f32 %v1969, 0.0
      %v2653 = vmax.f32 %v2148, 0.0
      %v2654 = vmax.f32 %v2150, 0.0
      %v2655 = vmax.f32 %v2329, 0.0
      %v2656 = vmax.f32 %v2331, 0.0
      %v2657 = vmax.f32 %v1068, 0.0
      %v2658 = vmax.f32 %v1070, 0.0
      %v2659 = vmax.f32 %v1249, 0.0
      %v2660 = vmax.f32 %v1251, 0.0
      %v2661 = vmax.f32 %v1430, 0.0
      %v2662 = vmax.f32 %v1432, 0.0
      %v2663 = vmax.f32 %v1611, 0.0
      %v2664 = vmax.f32 %v1613, 0.0
      %v2665 = vmax.f32 %v1792, 0.0
      %v2666 = vmax.f32 %v1794, 0.0
      %v2667 = vmax.f32 %v1973, 0.0
      %v2668 = vmax.f32 %v1975, 0.0
      %v2669 = vmax.f32 %v2154, 0.0
      %v2670 = vmax.f32 %v2156, 0.0
      %v2671 = vmax.f32 %v2335, 0.0
      %v2672 = vmax.f32 %v2337, 0.0
      %v2673 = vmax.f32 %v1072, 0.0
      %v2674 = vmax.f32 %v1074, 0.0
      %v2675 = vmax.f32 %v1253, 0.0
      %v2676 = vmax.f32 %v1255, 0.0
      %v2677 = vmax.f32 %v1434, 0.0
      %v2678 = vmax.f32 %v1436, 0.0
      %v2679 = vmax.f32 %v1615, 0.0
      %v2680 = vmax.f32 %v1617, 0.0
      %v2681 = vmax.f32 %v1796, 0.0
      %v2682 = vmax.f32 %v1798, 0.0
      %v2683 = vmax.f32 %v1977, 0.0
      %v2684 = vmax.f32 %v1979, 0.0
      %v2685 = vmax.f32 %v2158, 0.0
      %v2686 = vmax.f32 %v2160, 0.0
      %v2687 = vmax.f32 %v2339, 0.0
      %v2688 = vmax.f32 %v2341, 0.0
      %v2689 = vmax.f32 %v1078, 0.0
      %v2690 = vmax.f32 %v1080, 0.0
      %v2691 = vmax.f32 %v1259, 0.0
      %v2692 = vmax.f32 %v1261, 0.0
      %v2693 = vmax.f32 %v1440, 0.0
      %v2694 = vmax.f32 %v1442, 0.0
      %v2695 = vmax.f32 %v1621, 0.0
      %v2696 = vmax.f32 %v1623, 0.0
      %v2697 = vmax.f32 %v1802, 0.0
      %v2698 = vmax.f32 %v1804, 0.0
      %v2699 = vmax.f32 %v1983, 0.0
      %v2700 = vmax.f32 %v1985, 0.0
      %v2701 = vmax.f32 %v2164, 0.0
      %v2702 = vmax.f32 %v2166, 0.0
      %v2703 = vmax.f32 %v2345, 0.0
      %v2704 = vmax.f32 %v2347, 0.0
      %v2705 = vmax.f32 %v1082, 0.0
      %v2706 = vmax.f32 %v1084, 0.0
      %v2707 = vmax.f32 %v1263, 0.0
      %v2708 = vmax.f32 %v1265, 0.0
      %v2709 = vmax.f32 %v1444, 0.0
      %v2710 = vmax.f32 %v1446, 0.0
      %v2711 = vmax.f32 %v1625, 0.0
      %v2712 = vmax.f32 %v1627, 0.0
      %v2713 = vmax.f32 %v1806, 0.0
      %v2714 = vmax.f32 %v1808, 0.0
      %v2715 = vmax.f32 %v1987, 0.0
      %v2716 = vmax.f32 %v1989, 0.0
      %v2717 = vmax.f32 %v2168, 0.0
      %v2718 = vmax.f32 %v2170, 0.0
      %v2719 = vmax.f32 %v2349, 0.0
      %v2720 = vmax.f32 %v2351, 0.0
      %v2721 = vmax.f32 %v1088, 0.0
      %v2722 = vmax.f32 %v1090, 0.0
      %v2723 = vmax.f32 %v1269, 0.0
      %v2724 = vmax.f32 %v1271, 0.0
      %v2725 = vmax.f32 %v1450, 0.0
      %v2726 = vmax.f32 %v1452, 0.0
      %v2727 = vmax.f32 %v1631, 0.0
      %v2728 = vmax.f32 %v1633, 0.0
      %v2729 = vmax.f32 %v1812, 0.0
      %v2730 = vmax.f32 %v1814, 0.0
      %v2731 = vmax.f32 %v1993, 0.0
      %v2732 = vmax.f32 %v1995, 0.0
      %v2733 = vmax.f32 %v2174, 0.0
      %v2734 = vmax.f32 %v2176, 0.0
      %v2735 = vmax.f32 %v2355, 0.0
      %v2736 = vmax.f32 %v2357, 0.0
      %v2737 = vmax.f32 %v1092, 0.0
      %v2738 = vmax.f32 %v1094, 0.0
      %v2739 = vmax.f32 %v1273, 0.0
      %v2740 = vmax.f32 %v1275, 0.0
      %v2741 = vmax.f32 %v1454, 0.0
      %v2742 = vmax.f32 %v1456, 0.0
      %v2743 = vmax.f32 %v1635, 0.0
      %v2744 = vmax.f32 %v1637, 0.0
      %v2745 = vmax.f32 %v1816, 0.0
      %v2746 = vmax.f32 %v1818, 0.0
      %v2747 = vmax.f32 %v1997, 0.0
      %v2748 = vmax.f32 %v1999, 0.0
      %v2749 = vmax.f32 %v2178, 0.0
      %v2750 = vmax.f32 %v2180, 0.0
      %v2751 = vmax.f32 %v2359, 0.0
      %v2752 = vmax.f32 %v2361, 0.0
      %v2753 = vmax.f32 %v1098, 0.0
      %v2754 = vmax.f32 %v1100, 0.0
      %v2755 = vmax.f32 %v1279, 0.0
      %v2756 = vmax.f32 %v1281, 0.0
      %v2757 = vmax.f32 %v1460, 0.0
      %v2758 = vmax.f32 %v1462, 0.0
      %v2759 = vmax.f32 %v1641, 0.0
      %v2760 = vmax.f32 %v1643, 0.0
      %v2761 = vmax.f32 %v1822, 0.0
      %v2762 = vmax.f32 %v1824, 0.0
      %v2763 = vmax.f32 %v2003, 0.0
      %v2764 = vmax.f32 %v2005, 0.0
      %v2765 = vmax.f32 %v2184, 0.0
      %v2766 = vmax.f32 %v2186, 0.0
      %v2767 = vmax.f32 %v2365, 0.0
      %v2768 = vmax.f32 %v2367, 0.0
      %v2769 = vmax.f32 %v1102, 0.0
      %v2770 = vmax.f32 %v1104, 0.0
      %v2771 = vmax.f32 %v1283, 0.0
      %v2772 = vmax.f32 %v1285, 0.0
      %v2773 = vmax.f32 %v1464, 0.0
      %v2774 = vmax.f32 %v1466, 0.0
      %v2775 = vmax.f32 %v1645, 0.0
      %v2776 = vmax.f32 %v1647, 0.0
      %v2777 = vmax.f32 %v1826, 0.0
      %v2778 = vmax.f32 %v1828, 0.0
      %v2779 = vmax.f32 %v2007, 0.0
      %v2780 = vmax.f32 %v2009, 0.0
      %v2781 = vmax.f32 %v2188, 0.0
      %v2782 = vmax.f32 %v2190, 0.0
      %v2783 = vmax.f32 %v2369, 0.0
      %v2784 = vmax.f32 %v2371, 0.0
      %v2785 = vmax.f32 %v1108, 0.0
      %v2786 = vmax.f32 %v1110, 0.0
      %v2787 = vmax.f32 %v1289, 0.0
      %v2788 = vmax.f32 %v1291, 0.0
      %v2789 = vmax.f32 %v1470, 0.0
      %v2790 = vmax.f32 %v1472, 0.0
      %v2791 = vmax.f32 %v1651, 0.0
      %v2792 = vmax.f32 %v1653, 0.0
      %v2793 = vmax.f32 %v1832, 0.0
      %v2794 = vmax.f32 %v1834, 0.0
      %v2795 = vmax.f32 %v2013, 0.0
      %v2796 = vmax.f32 %v2015, 0.0
      %v2797 = vmax.f32 %v2194, 0.0
      %v2798 = vmax.f32 %v2196, 0.0
      %v2799 = vmax.f32 %v2375, 0.0
      %v2800 = vmax.f32 %v2377, 0.0
      %v2801 = vmax.f32 %v1112, 0.0
      %v2802 = vmax.f32 %v1114, 0.0
      %v2803 = vmax.f32 %v1293, 0.0
      %v2804 = vmax.f32 %v1295, 0.0
      %v2805 = vmax.f32 %v1474, 0.0
      %v2806 = vmax.f32 %v1476, 0.0
      %v2807 = vmax.f32 %v1655, 0.0
      %v2808 = vmax.f32 %v1657, 0.0
      %v2809 = vmax.f32 %v1836, 0.0
      %v2810 = vmax.f32 %v1838, 0.0
      %v2811 = vmax.f32 %v2017, 0.0
      %v2812 = vmax.f32 %v2019, 0.0
      %v2813 = vmax.f32 %v2198, 0.0
      %v2814 = vmax.f32 %v2200, 0.0
      %v2815 = vmax.f32 %v2379, 0.0
      %v2816 = vmax.f32 %v2381, 0.0
      %v2817 = vmax.f32 %v1118, 0.0
      %v2818 = vmax.f32 %v1120, 0.0
      %v2819 = vmax.f32 %v1299, 0.0
      %v2820 = vmax.f32 %v1301, 0.0
      %v2821 = vmax.f32 %v1480, 0.0
      %v2822 = vmax.f32 %v1482, 0.0
      %v2823 = vmax.f32 %v1661, 0.0
      %v2824 = vmax.f32 %v1663, 0.0
      %v2825 = vmax.f32 %v1842, 0.0
      %v2826 = vmax.f32 %v1844, 0.0
      %v2827 = vmax.f32 %v2023, 0.0
      %v2828 = vmax.f32 %v2025, 0.0
      %v2829 = vmax.f32 %v2204, 0.0
      %v2830 = vmax.f32 %v2206, 0.0
      %v2831 = vmax.f32 %v2385, 0.0
      %v2832 = vmax.f32 %v2387, 0.0
      %v2833 = vmax.f32 %v1122, 0.0
      %v2834 = vmax.f32 %v1124, 0.0
      %v2835 = vmax.f32 %v1303, 0.0
      %v2836 = vmax.f32 %v1305, 0.0
      %v2837 = vmax.f32 %v1484, 0.0
      %v2838 = vmax.f32 %v1486, 0.0
      %v2839 = vmax.f32 %v1665, 0.0
      %v2840 = vmax.f32 %v1667, 0.0
      %v2841 = vmax.f32 %v1846, 0.0
      %v2842 = vmax.f32 %v1848, 0.0
      %v2843 = vmax.f32 %v2027, 0.0
      %v2844 = vmax.f32 %v2029, 0.0
      %v2845 = vmax.f32 %v2208, 0.0
      %v2846 = vmax.f32 %v2210, 0.0
      %v2847 = vmax.f32 %v2389, 0.0
      %v2848 = vmax.f32 %v2391, 0.0
      %v2849 = vmax.f32 %v1128, 0.0
      %v2850 = vmax.f32 %v1130, 0.0
      %v2851 = vmax.f32 %v1309, 0.0
      %v2852 = vmax.f32 %v1311, 0.0
      %v2853 = vmax.f32 %v1490, 0.0
      %v2854 = vmax.f32 %v1492, 0.0
      %v2855 = vmax.f32 %v1671, 0.0
      %v2856 = vmax.f32 %v1673, 0.0
      %v2857 = vmax.f32 %v1852, 0.0
      %v2858 = vmax.f32 %v1854, 0.0
      %v2859 = vmax.f32 %v2033, 0.0
      %v2860 = vmax.f32 %v2035, 0.0
      %v2861 = vmax.f32 %v2214, 0.0
      %v2862 = vmax.f32 %v2216, 0.0
      %v2863 = vmax.f32 %v2395, 0.0
      %v2864 = vmax.f32 %v2397, 0.0
      %s2865 = smul.u32 %s21, 232
      %v2866 = vlaneseq
      %v2867 = vshrl.u32 %v2866, 7
      %v2868 = vadd.s32 %v2867, 8
      %v2869 = vadd.s32 %v2867, 16
      %v2870 = vadd.s32 %v2867, 24
      %v2871 = vadd.s32 %v2867, 32
      %v2872 = vadd.s32 %v2867, 40
      %v2873 = vadd.s32 %v2867, 48
      %v2874 = vadd.s32 %v2867, 56
      %v2875 = vadd.s32 %v2867, 64
      %v2876 = vadd.s32 %v2867, 72
      %v2877 = vadd.s32 %v2867, 80
      %v2878 = vadd.s32 %v2867, 88
      %v2879 = vadd.s32 %v2867, 96
      %v2880 = vadd.s32 %v2867, 104
      %v2881 = vadd.s32 %v2867, 112
      %v2882 = vadd.s32 %v2867, 120
      %v2883 = vadd.s32 %v2867, 128
      %v2884 = vadd.s32 %v2867, 136
      %v2885 = vadd.s32 %v2867, 144
      %v2886 = vadd.s32 %v2867, 152
      %v2887 = vadd.s32 %v2867, 160
      %v2888 = vadd.s32 %v2867, 168
      %v2889 = vadd.s32 %v2867, 176
      %v2890 = vadd.s32 %v2867, 184
      %v2891 = vadd.s32 %v2867, 192
      %v2892 = vadd.s32 %v2867, 200
      %v2893 = vadd.s32 %v2867, 208
      %v2894 = vadd.s32 %v2867, 216
      %v2895 = vadd.s32 %v2867, 224
      %v2896 = vstv %s2865
      %v2897 = vadd.s32 %v2896, %v2867
      %v2898 = vadd.s32 %v2896, %v2868
      %v2899 = vadd.s32 %v2896, %v2869
      %v2900 = vadd.s32 %v2896, %v2870
      %v2901 = vadd.s32 %v2896, %v2871
      %v2902 = vadd.s32 %v2896, %v2872
      %v2903 = vadd.s32 %v2896, %v2873
      %v2904 = vadd.s32 %v2896, %v2874
      %v2905 = vadd.s32 %v2896, %v2875
      %v2906 = vadd.s32 %v2896, %v2876
      %v2907 = vadd.s32 %v2896, %v2877
      %v2908 = vadd.s32 %v2896, %v2878
      %v2909 = vadd.s32 %v2896, %v2879
      %v2910 = vadd.s32 %v2896, %v2880
      %v2911 = vadd.s32 %v2896, %v2881
      %v2912 = vadd.s32 %v2896, %v2882
      %v2913 = vadd.s32 %v2896, %v2883
      %v2914 = vadd.s32 %v2896, %v2884
      %v2915 = vadd.s32 %v2896, %v2885
      %v2916 = vadd.s32 %v2896, %v2886
      %v2917 = vadd.s32 %v2896, %v2887
      %v2918 = vadd.s32 %v2896, %v2888
      %v2919 = vadd.s32 %v2896, %v2889
      %v2920 = vadd.s32 %v2896, %v2890
      %v2921 = vadd.s32 %v2896, %v2891
      %v2922 = vadd.s32 %v2896, %v2892
      %v2923 = vadd.s32 %v2896, %v2893
      %v2924 = vadd.s32 %v2896, %v2894
      %v2925 = vadd.s32 %v2896, %v2895
      %vm2926 = vcmp.lt.s32.totalorder %v2897, 225
      %vm2927 = vcmp.lt.s32.totalorder %v2898, 225
      %vm2928 = vcmp.lt.s32.totalorder %v2899, 225
      %vm2929 = vcmp.lt.s32.totalorder %v2900, 225
      %vm2930 = vcmp.lt.s32.totalorder %v2901, 225
      %vm2931 = vcmp.lt.s32.totalorder %v2902, 225
      %vm2932 = vcmp.lt.s32.totalorder %v2903, 225
      %vm2933 = vcmp.lt.s32.totalorder %v2904, 225
      %vm2934 = vcmp.lt.s32.totalorder %v2905, 225
      %vm2935 = vcmp.lt.s32.totalorder %v2906, 225
      %vm2936 = vcmp.lt.s32.totalorder %v2907, 225
      %vm2937 = vcmp.lt.s32.totalorder %v2908, 225
      %vm2938 = vcmp.lt.s32.totalorder %v2909, 225
      %vm2939 = vcmp.lt.s32.totalorder %v2910, 225
      %vm2940 = vcmp.lt.s32.totalorder %v2911, 225
      %vm2941 = vcmp.lt.s32.totalorder %v2912, 225
      %vm2942 = vcmp.lt.s32.totalorder %v2913, 225
      %vm2943 = vcmp.lt.s32.totalorder %v2914, 225
      %vm2944 = vcmp.lt.s32.totalorder %v2915, 225
      %vm2945 = vcmp.lt.s32.totalorder %v2916, 225
      %vm2946 = vcmp.lt.s32.totalorder %v2917, 225
      %vm2947 = vcmp.lt.s32.totalorder %v2918, 225
      %vm2948 = vcmp.lt.s32.totalorder %v2919, 225
      %vm2949 = vcmp.lt.s32.totalorder %v2920, 225
      %vm2950 = vcmp.lt.s32.totalorder %v2921, 225
      %vm2951 = vcmp.lt.s32.totalorder %v2922, 225
      %vm2952 = vcmp.lt.s32.totalorder %v2923, 225
      %vm2953 = vcmp.lt.s32.totalorder %v2924, 225
      %vm2954 = vcmp.lt.s32.totalorder %v2925, 225
      %v2955 = vsel %vm2926, 1, 0
      %v2956 = vsel %vm2927, 1, 0
      %v2957 = vsel %vm2928, 1, 0
      %v2958 = vsel %vm2929, 1, 0
      %v2959 = vsel %vm2930, 1, 0
      %v2960 = vsel %vm2931, 1, 0
      %v2961 = vsel %vm2932, 1, 0
      %v2962 = vsel %vm2933, 1, 0
      %v2963 = vsel %vm2934, 1, 0
      %v2964 = vsel %vm2935, 1, 0
      %v2965 = vsel %vm2936, 1, 0
      %v2966 = vsel %vm2937, 1, 0
      %v2967 = vsel %vm2938, 1, 0
      %v2968 = vsel %vm2939, 1, 0
      %v2969 = vsel %vm2940, 1, 0
      %v2970 = vsel %vm2941, 1, 0
      %v2971 = vsel %vm2942, 1, 0
      %v2972 = vsel %vm2943, 1, 0
      %v2973 = vsel %vm2944, 1, 0
      %v2974 = vsel %vm2945, 1, 0
      %v2975 = vsel %vm2946, 1, 0
      %v2976 = vsel %vm2947, 1, 0
      %v2977 = vsel %vm2948, 1, 0
      %v2978 = vsel %vm2949, 1, 0
      %v2979 = vsel %vm2950, 1, 0
      %v2980 = vsel %vm2951, 1, 0
      %v2981 = vsel %vm2952, 1, 0
      %v2982 = vsel %vm2953, 1, 0
      %v2983 = vsel %vm2954, 1, 0
      %vm2984 = vcmp.eq.s32.totalorder %v2955, 1
      %vm2985 = vcmp.eq.s32.totalorder %v2956, 1
      %vm2986 = vcmp.eq.s32.totalorder %v2957, 1
      %vm2987 = vcmp.eq.s32.totalorder %v2958, 1
      %vm2988 = vcmp.eq.s32.totalorder %v2959, 1
      %vm2989 = vcmp.eq.s32.totalorder %v2960, 1
      %vm2990 = vcmp.eq.s32.totalorder %v2961, 1
      %vm2991 = vcmp.eq.s32.totalorder %v2962, 1
      %vm2992 = vcmp.eq.s32.totalorder %v2963, 1
      %vm2993 = vcmp.eq.s32.totalorder %v2964, 1
      %vm2994 = vcmp.eq.s32.totalorder %v2965, 1
      %vm2995 = vcmp.eq.s32.totalorder %v2966, 1
      %vm2996 = vcmp.eq.s32.totalorder %v2967, 1
      %vm2997 = vcmp.eq.s32.totalorder %v2968, 1
      %vm2998 = vcmp.eq.s32.totalorder %v2969, 1
      %vm2999 = vcmp.eq.s32.totalorder %v2970, 1
      %vm3000 = vcmp.eq.s32.totalorder %v2971, 1
      %vm3001 = vcmp.eq.s32.totalorder %v2972, 1
      %vm3002 = vcmp.eq.s32.totalorder %v2973, 1
      %vm3003 = vcmp.eq.s32.totalorder %v2974, 1
      %vm3004 = vcmp.eq.s32.totalorder %v2975, 1
      %vm3005 = vcmp.eq.s32.totalorder %v2976, 1
      %vm3006 = vcmp.eq.s32.totalorder %v2977, 1
      %vm3007 = vcmp.eq.s32.totalorder %v2978, 1
      %vm3008 = vcmp.eq.s32.totalorder %v2979, 1
      %vm3009 = vcmp.eq.s32.totalorder %v2980, 1
      %vm3010 = vcmp.eq.s32.totalorder %v2981, 1
      %vm3011 = vcmp.eq.s32.totalorder %v2982, 1
      %vm3012 = vcmp.eq.s32.totalorder %v2983, 1
      %v3013 = vsel %vm2984, %v2401, 0.0
      %v3014 = vsel %vm2984, %v2402, 0.0
      %v3015 = vsel %vm2984, %v2403, 0.0
      %v3016 = vsel %vm2984, %v2404, 0.0
      %v3017 = vsel %vm2984, %v2405, 0.0
      %v3018 = vsel %vm2984, %v2406, 0.0
      %v3019 = vsel %vm2984, %v2407, 0.0
      %v3020 = vsel %vm2984, %v2408, 0.0
      %v3021 = vsel %vm2984, %v2409, 0.0
      %v3022 = vsel %vm2984, %v2410, 0.0
      %v3023 = vsel %vm2984, %v2411, 0.0
      %v3024 = vsel %vm2984, %v2412, 0.0
      %v3025 = vsel %vm2984, %v2413, 0.0
      %v3026 = vsel %vm2984, %v2414, 0.0
      %v3027 = vsel %vm2984, %v2415, 0.0
      %v3028 = vsel %vm2984, %v2416, 0.0
      %v3029 = vsel %vm2985, %v2417, 0.0
      %v3030 = vsel %vm2985, %v2418, 0.0
      %v3031 = vsel %vm2985, %v2419, 0.0
      %v3032 = vsel %vm2985, %v2420, 0.0
      %v3033 = vsel %vm2985, %v2421, 0.0
      %v3034 = vsel %vm2985, %v2422, 0.0
      %v3035 = vsel %vm2985, %v2423, 0.0
      %v3036 = vsel %vm2985, %v2424, 0.0
      %v3037 = vsel %vm2985, %v2425, 0.0
      %v3038 = vsel %vm2985, %v2426, 0.0
      %v3039 = vsel %vm2985, %v2427, 0.0
      %v3040 = vsel %vm2985, %v2428, 0.0
      %v3041 = vsel %vm2985, %v2429, 0.0
      %v3042 = vsel %vm2985, %v2430, 0.0
      %v3043 = vsel %vm2985, %v2431, 0.0
      %v3044 = vsel %vm2985, %v2432, 0.0
      %v3045 = vsel %vm2986, %v2433, 0.0
      %v3046 = vsel %vm2986, %v2434, 0.0
      %v3047 = vsel %vm2986, %v2435, 0.0
      %v3048 = vsel %vm2986, %v2436, 0.0
      %v3049 = vsel %vm2986, %v2437, 0.0
      %v3050 = vsel %vm2986, %v2438, 0.0
      %v3051 = vsel %vm2986, %v2439, 0.0
      %v3052 = vsel %vm2986, %v2440, 0.0
      %v3053 = vsel %vm2986, %v2441, 0.0
      %v3054 = vsel %vm2986, %v2442, 0.0
      %v3055 = vsel %vm2986, %v2443, 0.0
      %v3056 = vsel %vm2986, %v2444, 0.0
      %v3057 = vsel %vm2986, %v2445, 0.0
      %v3058 = vsel %vm2986, %v2446, 0.0
      %v3059 = vsel %vm2986, %v2447, 0.0
      %v3060 = vsel %vm2986, %v2448, 0.0
      %v3061 = vsel %vm2987, %v2449, 0.0
      %v3062 = vsel %vm2987, %v2450, 0.0
      %v3063 = vsel %vm2987, %v2451, 0.0
      %v3064 = vsel %vm2987, %v2452, 0.0
      %v3065 = vsel %vm2987, %v2453, 0.0
      %v3066 = vsel %vm2987, %v2454, 0.0
      %v3067 = vsel %vm2987, %v2455, 0.0
      %v3068 = vsel %vm2987, %v2456, 0.0
      %v3069 = vsel %vm2987, %v2457, 0.0
      %v3070 = vsel %vm2987, %v2458, 0.0
      %v3071 = vsel %vm2987, %v2459, 0.0
      %v3072 = vsel %vm2987, %v2460, 0.0
      %v3073 = vsel %vm2987, %v2461, 0.0
      %v3074 = vsel %vm2987, %v2462, 0.0
      %v3075 = vsel %vm2987, %v2463, 0.0
      %v3076 = vsel %vm2987, %v2464, 0.0
      %v3077 = vsel %vm2988, %v2465, 0.0
      %v3078 = vsel %vm2988, %v2466, 0.0
      %v3079 = vsel %vm2988, %v2467, 0.0
      %v3080 = vsel %vm2988, %v2468, 0.0
      %v3081 = vsel %vm2988, %v2469, 0.0
      %v3082 = vsel %vm2988, %v2470, 0.0
      %v3083 = vsel %vm2988, %v2471, 0.0
      %v3084 = vsel %vm2988, %v2472, 0.0
      %v3085 = vsel %vm2988, %v2473, 0.0
      %v3086 = vsel %vm2988, %v2474, 0.0
      %v3087 = vsel %vm2988, %v2475, 0.0
      %v3088 = vsel %vm2988, %v2476, 0.0
      %v3089 = vsel %vm2988, %v2477, 0.0
      %v3090 = vsel %vm2988, %v2478, 0.0
      %v3091 = vsel %vm2988, %v2479, 0.0
      %v3092 = vsel %vm2988, %v2480, 0.0
      %v3093 = vsel %vm2989, %v2481, 0.0
      %v3094 = vsel %vm2989, %v2482, 0.0
      %v3095 = vsel %vm2989, %v2483, 0.0
      %v3096 = vsel %vm2989, %v2484, 0.0
      %v3097 = vsel %vm2989, %v2485, 0.0
      %v3098 = vsel %vm2989, %v2486, 0.0
      %v3099 = vsel %vm2989, %v2487, 0.0
      %v3100 = vsel %vm2989, %v2488, 0.0
      %v3101 = vsel %vm2989, %v2489, 0.0
      %v3102 = vsel %vm2989, %v2490, 0.0
      %v3103 = vsel %vm2989, %v2491, 0.0
      %v3104 = vsel %vm2989, %v2492, 0.0
      %v3105 = vsel %vm2989, %v2493, 0.0
      %v3106 = vsel %vm2989, %v2494, 0.0
      %v3107 = vsel %vm2989, %v2495, 0.0
      %v3108 = vsel %vm2989, %v2496, 0.0
      %v3109 = vsel %vm2990, %v2497, 0.0
      %v3110 = vsel %vm2990, %v2498, 0.0
      %v3111 = vsel %vm2990, %v2499, 0.0
      %v3112 = vsel %vm2990, %v2500, 0.0
      %v3113 = vsel %vm2990, %v2501, 0.0
      %v3114 = vsel %vm2990, %v2502, 0.0
      %v3115 = vsel %vm2990, %v2503, 0.0
      %v3116 = vsel %vm2990, %v2504, 0.0
      %v3117 = vsel %vm2990, %v2505, 0.0
      %v3118 = vsel %vm2990, %v2506, 0.0
      %v3119 = vsel %vm2990, %v2507, 0.0
      %v3120 = vsel %vm2990, %v2508, 0.0
      %v3121 = vsel %vm2990, %v2509, 0.0
      %v3122 = vsel %vm2990, %v2510, 0.0
      %v3123 = vsel %vm2990, %v2511, 0.0
      %v3124 = vsel %vm2990, %v2512, 0.0
      %v3125 = vsel %vm2991, %v2513, 0.0
      %v3126 = vsel %vm2991, %v2514, 0.0
      %v3127 = vsel %vm2991, %v2515, 0.0
      %v3128 = vsel %vm2991, %v2516, 0.0
      %v3129 = vsel %vm2991, %v2517, 0.0
      %v3130 = vsel %vm2991, %v2518, 0.0
      %v3131 = vsel %vm2991, %v2519, 0.0
      %v3132 = vsel %vm2991, %v2520, 0.0
      %v3133 = vsel %vm2991, %v2521, 0.0
      %v3134 = vsel %vm2991, %v2522, 0.0
      %v3135 = vsel %vm2991, %v2523, 0.0
      %v3136 = vsel %vm2991, %v2524, 0.0
      %v3137 = vsel %vm2991, %v2525, 0.0
      %v3138 = vsel %vm2991, %v2526, 0.0
      %v3139 = vsel %vm2991, %v2527, 0.0
      %v3140 = vsel %vm2991, %v2528, 0.0
      %v3141 = vsel %vm2992, %v2529, 0.0
      %v3142 = vsel %vm2992, %v2530, 0.0
      %v3143 = vsel %vm2992, %v2531, 0.0
      %v3144 = vsel %vm2992, %v2532, 0.0
      %v3145 = vsel %vm2992, %v2533, 0.0
      %v3146 = vsel %vm2992, %v2534, 0.0
      %v3147 = vsel %vm2992, %v2535, 0.0
      %v3148 = vsel %vm2992, %v2536, 0.0
      %v3149 = vsel %vm2992, %v2537, 0.0
      %v3150 = vsel %vm2992, %v2538, 0.0
      %v3151 = vsel %vm2992, %v2539, 0.0
      %v3152 = vsel %vm2992, %v2540, 0.0
      %v3153 = vsel %vm2992, %v2541, 0.0
      %v3154 = vsel %vm2992, %v2542, 0.0
      %v3155 = vsel %vm2992, %v2543, 0.0
      %v3156 = vsel %vm2992, %v2544, 0.0
      %v3157 = vsel %vm2993, %v2545, 0.0
      %v3158 = vsel %vm2993, %v2546, 0.0
      %v3159 = vsel %vm2993, %v2547, 0.0
      %v3160 = vsel %vm2993, %v2548, 0.0
      %v3161 = vsel %vm2993, %v2549, 0.0
      %v3162 = vsel %vm2993, %v2550, 0.0
      %v3163 = vsel %vm2993, %v2551, 0.0
      %v3164 = vsel %vm2993, %v2552, 0.0
      %v3165 = vsel %vm2993, %v2553, 0.0
      %v3166 = vsel %vm2993, %v2554, 0.0
      %v3167 = vsel %vm2993, %v2555, 0.0
      %v3168 = vsel %vm2993, %v2556, 0.0
      %v3169 = vsel %vm2993, %v2557, 0.0
      %v3170 = vsel %vm2993, %v2558, 0.0
      %v3171 = vsel %vm2993, %v2559, 0.0
      %v3172 = vsel %vm2993, %v2560, 0.0
      %v3173 = vsel %vm2994, %v2561, 0.0
      %v3174 = vsel %vm2994, %v2562, 0.0
      %v3175 = vsel %vm2994, %v2563, 0.0
      %v3176 = vsel %vm2994, %v2564, 0.0
      %v3177 = vsel %vm2994, %v2565, 0.0
      %v3178 = vsel %vm2994, %v2566, 0.0
      %v3179 = vsel %vm2994, %v2567, 0.0
      %v3180 = vsel %vm2994, %v2568, 0.0
      %v3181 = vsel %vm2994, %v2569, 0.0
      %v3182 = vsel %vm2994, %v2570, 0.0
      %v3183 = vsel %vm2994, %v2571, 0.0
      %v3184 = vsel %vm2994, %v2572, 0.0
      %v3185 = vsel %vm2994, %v2573, 0.0
      %v3186 = vsel %vm2994, %v2574, 0.0
      %v3187 = vsel %vm2994, %v2575, 0.0
      %v3188 = vsel %vm2994, %v2576, 0.0
      %v3189 = vsel %vm2995, %v2577, 0.0
      %v3190 = vsel %vm2995, %v2578, 0.0
      %v3191 = vsel %vm2995, %v2579, 0.0
      %v3192 = vsel %vm2995, %v2580, 0.0
      %v3193 = vsel %vm2995, %v2581, 0.0
      %v3194 = vsel %vm2995, %v2582, 0.0
      %v3195 = vsel %vm2995, %v2583, 0.0
      %v3196 = vsel %vm2995, %v2584, 0.0
      %v3197 = vsel %vm2995, %v2585, 0.0
      %v3198 = vsel %vm2995, %v2586, 0.0
      %v3199 = vsel %vm2995, %v2587, 0.0
      %v3200 = vsel %vm2995, %v2588, 0.0
      %v3201 = vsel %vm2995, %v2589, 0.0
      %v3202 = vsel %vm2995, %v2590, 0.0
      %v3203 = vsel %vm2995, %v2591, 0.0
      %v3204 = vsel %vm2995, %v2592, 0.0
      %v3205 = vsel %vm2996, %v2593, 0.0
      %v3206 = vsel %vm2996, %v2594, 0.0
      %v3207 = vsel %vm2996, %v2595, 0.0
      %v3208 = vsel %vm2996, %v2596, 0.0
      %v3209 = vsel %vm2996, %v2597, 0.0
      %v3210 = vsel %vm2996, %v2598, 0.0
      %v3211 = vsel %vm2996, %v2599, 0.0
      %v3212 = vsel %vm2996, %v2600, 0.0
      %v3213 = vsel %vm2996, %v2601, 0.0
      %v3214 = vsel %vm2996, %v2602, 0.0
      %v3215 = vsel %vm2996, %v2603, 0.0
      %v3216 = vsel %vm2996, %v2604, 0.0
      %v3217 = vsel %vm2996, %v2605, 0.0
      %v3218 = vsel %vm2996, %v2606, 0.0
      %v3219 = vsel %vm2996, %v2607, 0.0
      %v3220 = vsel %vm2996, %v2608, 0.0
      %v3221 = vsel %vm2997, %v2609, 0.0
      %v3222 = vsel %vm2997, %v2610, 0.0
      %v3223 = vsel %vm2997, %v2611, 0.0
      %v3224 = vsel %vm2997, %v2612, 0.0
      %v3225 = vsel %vm2997, %v2613, 0.0
      %v3226 = vsel %vm2997, %v2614, 0.0
      %v3227 = vsel %vm2997, %v2615, 0.0
      %v3228 = vsel %vm2997, %v2616, 0.0
      %v3229 = vsel %vm2997, %v2617, 0.0
      %v3230 = vsel %vm2997, %v2618, 0.0
      %v3231 = vsel %vm2997, %v2619, 0.0
      %v3232 = vsel %vm2997, %v2620, 0.0
      %v3233 = vsel %vm2997, %v2621, 0.0
      %v3234 = vsel %vm2997, %v2622, 0.0
      %v3235 = vsel %vm2997, %v2623, 0.0
      %v3236 = vsel %vm2997, %v2624, 0.0
      %v3237 = vsel %vm2998, %v2625, 0.0
      %v3238 = vsel %vm2998, %v2626, 0.0
      %v3239 = vsel %vm2998, %v2627, 0.0
      %v3240 = vsel %vm2998, %v2628, 0.0
      %v3241 = vsel %vm2998, %v2629, 0.0
      %v3242 = vsel %vm2998, %v2630, 0.0
      %v3243 = vsel %vm2998, %v2631, 0.0
      %v3244 = vsel %vm2998, %v2632, 0.0
      %v3245 = vsel %vm2998, %v2633, 0.0
      %v3246 = vsel %vm2998, %v2634, 0.0
      %v3247 = vsel %vm2998, %v2635, 0.0
      %v3248 = vsel %vm2998, %v2636, 0.0
      %v3249 = vsel %vm2998, %v2637, 0.0
      %v3250 = vsel %vm2998, %v2638, 0.0
      %v3251 = vsel %vm2998, %v2639, 0.0
      %v3252 = vsel %vm2998, %v2640, 0.0
      %v3253 = vsel %vm2999, %v2641, 0.0
      %v3254 = vsel %vm2999, %v2642, 0.0
      %v3255 = vsel %vm2999, %v2643, 0.0
      %v3256 = vsel %vm2999, %v2644, 0.0
      %v3257 = vsel %vm2999, %v2645, 0.0
      %v3258 = vsel %vm2999, %v2646, 0.0
      %v3259 = vsel %vm2999, %v2647, 0.0
      %v3260 = vsel %vm2999, %v2648, 0.0
      %v3261 = vsel %vm2999, %v2649, 0.0
      %v3262 = vsel %vm2999, %v2650, 0.0
      %v3263 = vsel %vm2999, %v2651, 0.0
      %v3264 = vsel %vm2999, %v2652, 0.0
      %v3265 = vsel %vm2999, %v2653, 0.0
      %v3266 = vsel %vm2999, %v2654, 0.0
      %v3267 = vsel %vm2999, %v2655, 0.0
      %v3268 = vsel %vm2999, %v2656, 0.0
      %v3269 = vsel %vm3000, %v2657, 0.0
      %v3270 = vsel %vm3000, %v2658, 0.0
      %v3271 = vsel %vm3000, %v2659, 0.0
      %v3272 = vsel %vm3000, %v2660, 0.0
      %v3273 = vsel %vm3000, %v2661, 0.0
      %v3274 = vsel %vm3000, %v2662, 0.0
      %v3275 = vsel %vm3000, %v2663, 0.0
      %v3276 = vsel %vm3000, %v2664, 0.0
      %v3277 = vsel %vm3000, %v2665, 0.0
      %v3278 = vsel %vm3000, %v2666, 0.0
      %v3279 = vsel %vm3000, %v2667, 0.0
      %v3280 = vsel %vm3000, %v2668, 0.0
      %v3281 = vsel %vm3000, %v2669, 0.0
      %v3282 = vsel %vm3000, %v2670, 0.0
      %v3283 = vsel %vm3000, %v2671, 0.0
      %v3284 = vsel %vm3000, %v2672, 0.0
      %v3285 = vsel %vm3001, %v2673, 0.0
      %v3286 = vsel %vm3001, %v2674, 0.0
      %v3287 = vsel %vm3001, %v2675, 0.0
      %v3288 = vsel %vm3001, %v2676, 0.0
      %v3289 = vsel %vm3001, %v2677, 0.0
      %v3290 = vsel %vm3001, %v2678, 0.0
      %v3291 = vsel %vm3001, %v2679, 0.0
      %v3292 = vsel %vm3001, %v2680, 0.0
      %v3293 = vsel %vm3001, %v2681, 0.0
      %v3294 = vsel %vm3001, %v2682, 0.0
      %v3295 = vsel %vm3001, %v2683, 0.0
      %v3296 = vsel %vm3001, %v2684, 0.0
      %v3297 = vsel %vm3001, %v2685, 0.0
      %v3298 = vsel %vm3001, %v2686, 0.0
      %v3299 = vsel %vm3001, %v2687, 0.0
      %v3300 = vsel %vm3001, %v2688, 0.0
      %v3301 = vsel %vm3002, %v2689, 0.0
      %v3302 = vsel %vm3002, %v2690, 0.0
      %v3303 = vsel %vm3002, %v2691, 0.0
      %v3304 = vsel %vm3002, %v2692, 0.0
      %v3305 = vsel %vm3002, %v2693, 0.0
      %v3306 = vsel %vm3002, %v2694, 0.0
      %v3307 = vsel %vm3002, %v2695, 0.0
      %v3308 = vsel %vm3002, %v2696, 0.0
      %v3309 = vsel %vm3002, %v2697, 0.0
      %v3310 = vsel %vm3002, %v2698, 0.0
      %v3311 = vsel %vm3002, %v2699, 0.0
      %v3312 = vsel %vm3002, %v2700, 0.0
      %v3313 = vsel %vm3002, %v2701, 0.0
      %v3314 = vsel %vm3002, %v2702, 0.0
      %v3315 = vsel %vm3002, %v2703, 0.0
      %v3316 = vsel %vm3002, %v2704, 0.0
      %v3317 = vsel %vm3003, %v2705, 0.0
      %v3318 = vsel %vm3003, %v2706, 0.0
      %v3319 = vsel %vm3003, %v2707, 0.0
      %v3320 = vsel %vm3003, %v2708, 0.0
      %v3321 = vsel %vm3003, %v2709, 0.0
      %v3322 = vsel %vm3003, %v2710, 0.0
      %v3323 = vsel %vm3003, %v2711, 0.0
      %v3324 = vsel %vm3003, %v2712, 0.0
      %v3325 = vsel %vm3003, %v2713, 0.0
      %v3326 = vsel %vm3003, %v2714, 0.0
      %v3327 = vsel %vm3003, %v2715, 0.0
      %v3328 = vsel %vm3003, %v2716, 0.0
      %v3329 = vsel %vm3003, %v2717, 0.0
      %v3330 = vsel %vm3003, %v2718, 0.0
      %v3331 = vsel %vm3003, %v2719, 0.0
      %v3332 = vsel %vm3003, %v2720, 0.0
      %v3333 = vsel %vm3004, %v2721, 0.0
      %v3334 = vsel %vm3004, %v2722, 0.0
      %v3335 = vsel %vm3004, %v2723, 0.0
      %v3336 = vsel %vm3004, %v2724, 0.0
      %v3337 = vsel %vm3004, %v2725, 0.0
      %v3338 = vsel %vm3004, %v2726, 0.0
      %v3339 = vsel %vm3004, %v2727, 0.0
      %v3340 = vsel %vm3004, %v2728, 0.0
      %v3341 = vsel %vm3004, %v2729, 0.0
      %v3342 = vsel %vm3004, %v2730, 0.0
      %v3343 = vsel %vm3004, %v2731, 0.0
      %v3344 = vsel %vm3004, %v2732, 0.0
      %v3345 = vsel %vm3004, %v2733, 0.0
      %v3346 = vsel %vm3004, %v2734, 0.0
      %v3347 = vsel %vm3004, %v2735, 0.0
      %v3348 = vsel %vm3004, %v2736, 0.0
      %v3349 = vsel %vm3005, %v2737, 0.0
      %v3350 = vsel %vm3005, %v2738, 0.0
      %v3351 = vsel %vm3005, %v2739, 0.0
      %v3352 = vsel %vm3005, %v2740, 0.0
      %v3353 = vsel %vm3005, %v2741, 0.0
      %v3354 = vsel %vm3005, %v2742, 0.0
      %v3355 = vsel %vm3005, %v2743, 0.0
      %v3356 = vsel %vm3005, %v2744, 0.0
      %v3357 = vsel %vm3005, %v2745, 0.0
      %v3358 = vsel %vm3005, %v2746, 0.0
      %v3359 = vsel %vm3005, %v2747, 0.0
      %v3360 = vsel %vm3005, %v2748, 0.0
      %v3361 = vsel %vm3005, %v2749, 0.0
      %v3362 = vsel %vm3005, %v2750, 0.0
      %v3363 = vsel %vm3005, %v2751, 0.0
      %v3364 = vsel %vm3005, %v2752, 0.0
      %v3365 = vsel %vm3006, %v2753, 0.0
      %v3366 = vsel %vm3006, %v2754, 0.0
      %v3367 = vsel %vm3006, %v2755, 0.0
      %v3368 = vsel %vm3006, %v2756, 0.0
      %v3369 = vsel %vm3006, %v2757, 0.0
      %v3370 = vsel %vm3006, %v2758, 0.0
      %v3371 = vsel %vm3006, %v2759, 0.0
      %v3372 = vsel %vm3006, %v2760, 0.0
      %v3373 = vsel %vm3006, %v2761, 0.0
      %v3374 = vsel %vm3006, %v2762, 0.0
      %v3375 = vsel %vm3006, %v2763, 0.0
      %v3376 = vsel %vm3006, %v2764, 0.0
      %v3377 = vsel %vm3006, %v2765, 0.0
      %v3378 = vsel %vm3006, %v2766, 0.0
      %v3379 = vsel %vm3006, %v2767, 0.0
      %v3380 = vsel %vm3006, %v2768, 0.0
      %v3381 = vsel %vm3007, %v2769, 0.0
      %v3382 = vsel %vm3007, %v2770, 0.0
      %v3383 = vsel %vm3007, %v2771, 0.0
      %v3384 = vsel %vm3007, %v2772, 0.0
      %v3385 = vsel %vm3007, %v2773, 0.0
      %v3386 = vsel %vm3007, %v2774, 0.0
      %v3387 = vsel %vm3007, %v2775, 0.0
      %v3388 = vsel %vm3007, %v2776, 0.0
      %v3389 = vsel %vm3007, %v2777, 0.0
      %v3390 = vsel %vm3007, %v2778, 0.0
      %v3391 = vsel %vm3007, %v2779, 0.0
      %v3392 = vsel %vm3007, %v2780, 0.0
      %v3393 = vsel %vm3007, %v2781, 0.0
      %v3394 = vsel %vm3007, %v2782, 0.0
      %v3395 = vsel %vm3007, %v2783, 0.0
      %v3396 = vsel %vm3007, %v2784, 0.0
      %v3397 = vsel %vm3008, %v2785, 0.0
      %v3398 = vsel %vm3008, %v2786, 0.0
      %v3399 = vsel %vm3008, %v2787, 0.0
      %v3400 = vsel %vm3008, %v2788, 0.0
      %v3401 = vsel %vm3008, %v2789, 0.0
      %v3402 = vsel %vm3008, %v2790, 0.0
      %v3403 = vsel %vm3008, %v2791, 0.0
      %v3404 = vsel %vm3008, %v2792, 0.0
      %v3405 = vsel %vm3008, %v2793, 0.0
      %v3406 = vsel %vm3008, %v2794, 0.0
      %v3407 = vsel %vm3008, %v2795, 0.0
      %v3408 = vsel %vm3008, %v2796, 0.0
      %v3409 = vsel %vm3008, %v2797, 0.0
      %v3410 = vsel %vm3008, %v2798, 0.0
      %v3411 = vsel %vm3008, %v2799, 0.0
      %v3412 = vsel %vm3008, %v2800, 0.0
      %v3413 = vsel %vm3009, %v2801, 0.0
      %v3414 = vsel %vm3009, %v2802, 0.0
      %v3415 = vsel %vm3009, %v2803, 0.0
      %v3416 = vsel %vm3009, %v2804, 0.0
      %v3417 = vsel %vm3009, %v2805, 0.0
      %v3418 = vsel %vm3009, %v2806, 0.0
      %v3419 = vsel %vm3009, %v2807, 0.0
      %v3420 = vsel %vm3009, %v2808, 0.0
      %v3421 = vsel %vm3009, %v2809, 0.0
      %v3422 = vsel %vm3009, %v2810, 0.0
      %v3423 = vsel %vm3009, %v2811, 0.0
      %v3424 = vsel %vm3009, %v2812, 0.0
      %v3425 = vsel %vm3009, %v2813, 0.0
      %v3426 = vsel %vm3009, %v2814, 0.0
      %v3427 = vsel %vm3009, %v2815, 0.0
      %v3428 = vsel %vm3009, %v2816, 0.0
      %v3429 = vsel %vm3010, %v2817, 0.0
      %v3430 = vsel %vm3010, %v2818, 0.0
      %v3431 = vsel %vm3010, %v2819, 0.0
      %v3432 = vsel %vm3010, %v2820, 0.0
      %v3433 = vsel %vm3010, %v2821, 0.0
      %v3434 = vsel %vm3010, %v2822, 0.0
      %v3435 = vsel %vm3010, %v2823, 0.0
      %v3436 = vsel %vm3010, %v2824, 0.0
      %v3437 = vsel %vm3010, %v2825, 0.0
      %v3438 = vsel %vm3010, %v2826, 0.0
      %v3439 = vsel %vm3010, %v2827, 0.0
      %v3440 = vsel %vm3010, %v2828, 0.0
      %v3441 = vsel %vm3010, %v2829, 0.0
      %v3442 = vsel %vm3010, %v2830, 0.0
      %v3443 = vsel %vm3010, %v2831, 0.0
      %v3444 = vsel %vm3010, %v2832, 0.0
      %v3445 = vsel %vm3011, %v2833, 0.0
      %v3446 = vsel %vm3011, %v2834, 0.0
      %v3447 = vsel %vm3011, %v2835, 0.0
      %v3448 = vsel %vm3011, %v2836, 0.0
      %v3449 = vsel %vm3011, %v2837, 0.0
      %v3450 = vsel %vm3011, %v2838, 0.0
      %v3451 = vsel %vm3011, %v2839, 0.0
      %v3452 = vsel %vm3011, %v2840, 0.0
      %v3453 = vsel %vm3011, %v2841, 0.0
      %v3454 = vsel %vm3011, %v2842, 0.0
      %v3455 = vsel %vm3011, %v2843, 0.0
      %v3456 = vsel %vm3011, %v2844, 0.0
      %v3457 = vsel %vm3011, %v2845, 0.0
      %v3458 = vsel %vm3011, %v2846, 0.0
      %v3459 = vsel %vm3011, %v2847, 0.0
      %v3460 = vsel %vm3011, %v2848, 0.0
      %v3461 = vsel %vm3012, %v2849, 0.0
      %v3462 = vsel %vm3012, %v2850, 0.0
      %v3463 = vsel %vm3012, %v2851, 0.0
      %v3464 = vsel %vm3012, %v2852, 0.0
      %v3465 = vsel %vm3012, %v2853, 0.0
      %v3466 = vsel %vm3012, %v2854, 0.0
      %v3467 = vsel %vm3012, %v2855, 0.0
      %v3468 = vsel %vm3012, %v2856, 0.0
      %v3469 = vsel %vm3012, %v2857, 0.0
      %v3470 = vsel %vm3012, %v2858, 0.0
      %v3471 = vsel %vm3012, %v2859, 0.0
      %v3472 = vsel %vm3012, %v2860, 0.0
      %v3473 = vsel %vm3012, %v2861, 0.0
      %v3474 = vsel %vm3012, %v2862, 0.0
      %v3475 = vsel %vm3012, %v2863, 0.0
      %v3476 = vsel %vm3012, %v2864, 0.0
      %v3477 = vld [vmem:[#allocation2] sm:$0xff]
      %v3478 = vld [vmem:[#allocation2 + $0x8] sm:$0xff]
      %v3479 = vadd.f32 %v3013, %v3029
      %v3480 = vadd.f32 %v3479, %v3045
      %v3481 = vadd.f32 %v3480, %v3061
      %v3482 = vadd.f32 %v3481, %v3077
      %v3483 = vadd.f32 %v3482, %v3093
      %v3484 = vadd.f32 %v3483, %v3109
      %v3485 = vadd.f32 %v3484, %v3125
      %v3486 = vadd.f32 %v3485, %v3141
      %v3487 = vadd.f32 %v3486, %v3157
      %v3488 = vadd.f32 %v3487, %v3173
      %v3489 = vadd.f32 %v3488, %v3189
      %v3490 = vadd.f32 %v3489, %v3205
      %v3491 = vadd.f32 %v3490, %v3221
      %v3492 = vadd.f32 %v3491, %v3237
      %v3493 = vadd.f32 %v3492, %v3253
      %v3494 = vadd.f32 %v3493, %v3269
      %v3495 = vadd.f32 %v3494, %v3285
      %v3496 = vadd.f32 %v3495, %v3301
      %v3497 = vadd.f32 %v3496, %v3317
      %v3498 = vadd.f32 %v3497, %v3333
      %v3499 = vadd.f32 %v3498, %v3349
      %v3500 = vadd.f32 %v3499, %v3365
      %v3501 = vadd.f32 %v3500, %v3381
      %v3502 = vadd.f32 %v3501, %v3397
      %v3503 = vadd.f32 %v3502, %v3413
      %v3504 = vadd.f32 %v3503, %v3429
      %v3505 = vadd.f32 %v3504, %v3445
      %v3506 = vadd.f32 %v3505, %v3461
      %v3507 = vrot.slane %v3506, 4
      %v3508 = vadd.f32 %v3506, %v3507
      %v3509 = vrot.slane %v3508, 2
      %v3510 = vadd.f32 %v3508, %v3509
      %v3511 = vrot.slane %v3510, 1
      %v3512 = vadd.f32 %v3510, %v3511
      %v3513 = vadd.f32 %v3014, %v3030
      %v3514 = vadd.f32 %v3513, %v3046
      %v3515 = vadd.f32 %v3514, %v3062
      %v3516 = vadd.f32 %v3515, %v3078
      %v3517 = vadd.f32 %v3516, %v3094
      %v3518 = vadd.f32 %v3517, %v3110
      %v3519 = vadd.f32 %v3518, %v3126
      %v3520 = vadd.f32 %v3519, %v3142
      %v3521 = vadd.f32 %v3520, %v3158
      %v3522 = vadd.f32 %v3521, %v3174
      %v3523 = vadd.f32 %v3522, %v3190
      %v3524 = vadd.f32 %v3523, %v3206
      %v3525 = vadd.f32 %v3524, %v3222
      %v3526 = vadd.f32 %v3525, %v3238
      %v3527 = vadd.f32 %v3526, %v3254
      %v3528 = vadd.f32 %v3527, %v3270
      %v3529 = vadd.f32 %v3528, %v3286
      %v3530 = vadd.f32 %v3529, %v3302
      %v3531 = vadd.f32 %v3530, %v3318
      %v3532 = vadd.f32 %v3531, %v3334
      %v3533 = vadd.f32 %v3532, %v3350
      %v3534 = vadd.f32 %v3533, %v3366
      %v3535 = vadd.f32 %v3534, %v3382
      %v3536 = vadd.f32 %v3535, %v3398
      %v3537 = vadd.f32 %v3536, %v3414
      %v3538 = vadd.f32 %v3537, %v3430
      %v3539 = vadd.f32 %v3538, %v3446
      %v3540 = vadd.f32 %v3539, %v3462
      %v3541 = vrot.slane %v3540, 4
      %v3542 = vadd.f32 %v3540, %v3541
      %v3543 = vrot.slane %v3542, 2
      %v3544 = vadd.f32 %v3542, %v3543
      %v3545 = vrot.slane %v3544, 1
      %v3546 = vadd.f32 %v3544, %v3545
      %v3547 = vadd.f32 %v3015, %v3031
      %v3548 = vadd.f32 %v3547, %v3047
      %v3549 = vadd.f32 %v3548, %v3063
      %v3550 = vadd.f32 %v3549, %v3079
      %v3551 = vadd.f32 %v3550, %v3095
      %v3552 = vadd.f32 %v3551, %v3111
      %v3553 = vadd.f32 %v3552, %v3127
      %v3554 = vadd.f32 %v3553, %v3143
      %v3555 = vadd.f32 %v3554, %v3159
      %v3556 = vadd.f32 %v3555, %v3175
      %v3557 = vadd.f32 %v3556, %v3191
      %v3558 = vadd.f32 %v3557, %v3207
      %v3559 = vadd.f32 %v3558, %v3223
      %v3560 = vadd.f32 %v3559, %v3239
      %v3561 = vadd.f32 %v3560, %v3255
      %v3562 = vadd.f32 %v3561, %v3271
      %v3563 = vadd.f32 %v3562, %v3287
      %v3564 = vadd.f32 %v3563, %v3303
      %v3565 = vadd.f32 %v3564, %v3319
      %v3566 = vadd.f32 %v3565, %v3335
      %v3567 = vadd.f32 %v3566, %v3351
      %v3568 = vadd.f32 %v3567, %v3367
      %v3569 = vadd.f32 %v3568, %v3383
      %v3570 = vadd.f32 %v3569, %v3399
      %v3571 = vadd.f32 %v3570, %v3415
      %v3572 = vadd.f32 %v3571, %v3431
      %v3573 = vadd.f32 %v3572, %v3447
      %v3574 = vadd.f32 %v3573, %v3463
      %v3575 = vrot.slane %v3574, 4
      %v3576 = vadd.f32 %v3574, %v3575
      %v3577 = vrot.slane %v3576, 2
      %v3578 = vadd.f32 %v3576, %v3577
      %v3579 = vrot.slane %v3578, 1
      %v3580 = vadd.f32 %v3578, %v3579
      %v3581 = vadd.f32 %v3016, %v3032
      %v3582 = vadd.f32 %v3581, %v3048
      %v3583 = vadd.f32 %v3582, %v3064
      %v3584 = vadd.f32 %v3583, %v3080
      %v3585 = vadd.f32 %v3584, %v3096
      %v3586 = vadd.f32 %v3585, %v3112
      %v3587 = vadd.f32 %v3586, %v3128
      %v3588 = vadd.f32 %v3587, %v3144
      %v3589 = vadd.f32 %v3588, %v3160
      %v3590 = vadd.f32 %v3589, %v3176
      %v3591 = vadd.f32 %v3590, %v3192
      %v3592 = vadd.f32 %v3591, %v3208
      %v3593 = vadd.f32 %v3592, %v3224
      %v3594 = vadd.f32 %v3593, %v3240
      %v3595 = vadd.f32 %v3594, %v3256
      %v3596 = vadd.f32 %v3595, %v3272
      %v3597 = vadd.f32 %v3596, %v3288
      %v3598 = vadd.f32 %v3597, %v3304
      %v3599 = vadd.f32 %v3598, %v3320
      %v3600 = vadd.f32 %v3599, %v3336
      %v3601 = vadd.f32 %v3600, %v3352
      %v3602 = vadd.f32 %v3601, %v3368
      %v3603 = vadd.f32 %v3602, %v3384
      %v3604 = vadd.f32 %v3603, %v3400
      %v3605 = vadd.f32 %v3604, %v3416
      %v3606 = vadd.f32 %v3605, %v3432
      %v3607 = vadd.f32 %v3606, %v3448
      %v3608 = vadd.f32 %v3607, %v3464
      %v3609 = vrot.slane %v3608, 4
      %v3610 = vadd.f32 %v3608, %v3609
      %v3611 = vrot.slane %v3610, 2
      %v3612 = vadd.f32 %v3610, %v3611
      %v3613 = vrot.slane %v3612, 1
      %v3614 = vadd.f32 %v3612, %v3613
      %v3615 = vadd.f32 %v3017, %v3033
      %v3616 = vadd.f32 %v3615, %v3049
      %v3617 = vadd.f32 %v3616, %v3065
      %v3618 = vadd.f32 %v3617, %v3081
      %v3619 = vadd.f32 %v3618, %v3097
      %v3620 = vadd.f32 %v3619, %v3113
      %v3621 = vadd.f32 %v3620, %v3129
      %v3622 = vadd.f32 %v3621, %v3145
      %v3623 = vadd.f32 %v3622, %v3161
      %v3624 = vadd.f32 %v3623, %v3177
      %v3625 = vadd.f32 %v3624, %v3193
      %v3626 = vadd.f32 %v3625, %v3209
      %v3627 = vadd.f32 %v3626, %v3225
      %v3628 = vadd.f32 %v3627, %v3241
      %v3629 = vadd.f32 %v3628, %v3257
      %v3630 = vadd.f32 %v3629, %v3273
      %v3631 = vadd.f32 %v3630, %v3289
      %v3632 = vadd.f32 %v3631, %v3305
      %v3633 = vadd.f32 %v3632, %v3321
      %v3634 = vadd.f32 %v3633, %v3337
      %v3635 = vadd.f32 %v3634, %v3353
      %v3636 = vadd.f32 %v3635, %v3369
      %v3637 = vadd.f32 %v3636, %v3385
      %v3638 = vadd.f32 %v3637, %v3401
      %v3639 = vadd.f32 %v3638, %v3417
      %v3640 = vadd.f32 %v3639, %v3433
      %v3641 = vadd.f32 %v3640, %v3449
      %v3642 = vadd.f32 %v3641, %v3465
      %v3643 = vrot.slane %v3642, 4
      %v3644 = vadd.f32 %v3642, %v3643
      %v3645 = vrot.slane %v3644, 2
      %v3646 = vadd.f32 %v3644, %v3645
      %v3647 = vrot.slane %v3646, 1
      %v3648 = vadd.f32 %v3646, %v3647
      %v3649 = vadd.f32 %v3018, %v3034
      %v3650 = vadd.f32 %v3649, %v3050
      %v3651 = vadd.f32 %v3650, %v3066
      %v3652 = vadd.f32 %v3651, %v3082
      %v3653 = vadd.f32 %v3652, %v3098
      %v3654 = vadd.f32 %v3653, %v3114
      %v3655 = vadd.f32 %v3654, %v3130
      %v3656 = vadd.f32 %v3655, %v3146
      %v3657 = vadd.f32 %v3656, %v3162
      %v3658 = vadd.f32 %v3657, %v3178
      %v3659 = vadd.f32 %v3658, %v3194
      %v3660 = vadd.f32 %v3659, %v3210
      %v3661 = vadd.f32 %v3660, %v3226
      %v3662 = vadd.f32 %v3661, %v3242
      %v3663 = vadd.f32 %v3662, %v3258
      %v3664 = vadd.f32 %v3663, %v3274
      %v3665 = vadd.f32 %v3664, %v3290
      %v3666 = vadd.f32 %v3665, %v3306
      %v3667 = vadd.f32 %v3666, %v3322
      %v3668 = vadd.f32 %v3667, %v3338
      %v3669 = vadd.f32 %v3668, %v3354
      %v3670 = vadd.f32 %v3669, %v3370
      %v3671 = vadd.f32 %v3670, %v3386
      %v3672 = vadd.f32 %v3671, %v3402
      %v3673 = vadd.f32 %v3672, %v3418
      %v3674 = vadd.f32 %v3673, %v3434
      %v3675 = vadd.f32 %v3674, %v3450
      %v3676 = vadd.f32 %v3675, %v3466
      %v3677 = vrot.slane %v3676, 4
      %v3678 = vadd.f32 %v3676, %v3677
      %v3679 = vrot.slane %v3678, 2
      %v3680 = vadd.f32 %v3678, %v3679
      %v3681 = vrot.slane %v3680, 1
      %v3682 = vadd.f32 %v3680, %v3681
      %v3683 = vadd.f32 %v3019, %v3035
      %v3684 = vadd.f32 %v3683, %v3051
      %v3685 = vadd.f32 %v3684, %v3067
      %v3686 = vadd.f32 %v3685, %v3083
      %v3687 = vadd.f32 %v3686, %v3099
      %v3688 = vadd.f32 %v3687, %v3115
      %v3689 = vadd.f32 %v3688, %v3131
      %v3690 = vadd.f32 %v3689, %v3147
      %v3691 = vadd.f32 %v3690, %v3163
      %v3692 = vadd.f32 %v3691, %v3179
      %v3693 = vadd.f32 %v3692, %v3195
      %v3694 = vadd.f32 %v3693, %v3211
      %v3695 = vadd.f32 %v3694, %v3227
      %v3696 = vadd.f32 %v3695, %v3243
      %v3697 = vadd.f32 %v3696, %v3259
      %v3698 = vadd.f32 %v3697, %v3275
      %v3699 = vadd.f32 %v3698, %v3291
      %v3700 = vadd.f32 %v3699, %v3307
      %v3701 = vadd.f32 %v3700, %v3323
      %v3702 = vadd.f32 %v3701, %v3339
      %v3703 = vadd.f32 %v3702, %v3355
      %v3704 = vadd.f32 %v3703, %v3371
      %v3705 = vadd.f32 %v3704, %v3387
      %v3706 = vadd.f32 %v3705, %v3403
      %v3707 = vadd.f32 %v3706, %v3419
      %v3708 = vadd.f32 %v3707, %v3435
      %v3709 = vadd.f32 %v3708, %v3451
      %v3710 = vadd.f32 %v3709, %v3467
      %v3711 = vrot.slane %v3710, 4
      %v3712 = vadd.f32 %v3710, %v3711
      %v3713 = vrot.slane %v3712, 2
      %v3714 = vadd.f32 %v3712, %v3713
      %v3715 = vrot.slane %v3714, 1
      %v3716 = vadd.f32 %v3714, %v3715
      %v3717 = vadd.f32 %v3020, %v3036
      %v3718 = vadd.f32 %v3717, %v3052
      %v3719 = vadd.f32 %v3718, %v3068
      %v3720 = vadd.f32 %v3719, %v3084
      %v3721 = vadd.f32 %v3720, %v3100
      %v3722 = vadd.f32 %v3721, %v3116
      %v3723 = vadd.f32 %v3722, %v3132
      %v3724 = vadd.f32 %v3723, %v3148
      %v3725 = vadd.f32 %v3724, %v3164
      %v3726 = vadd.f32 %v3725, %v3180
      %v3727 = vadd.f32 %v3726, %v3196
      %v3728 = vadd.f32 %v3727, %v3212
      %v3729 = vadd.f32 %v3728, %v3228
      %v3730 = vadd.f32 %v3729, %v3244
      %v3731 = vadd.f32 %v3730, %v3260
      %v3732 = vadd.f32 %v3731, %v3276
      %v3733 = vadd.f32 %v3732, %v3292
      %v3734 = vadd.f32 %v3733, %v3308
      %v3735 = vadd.f32 %v3734, %v3324
      %v3736 = vadd.f32 %v3735, %v3340
      %v3737 = vadd.f32 %v3736, %v3356
      %v3738 = vadd.f32 %v3737, %v3372
      %v3739 = vadd.f32 %v3738, %v3388
      %v3740 = vadd.f32 %v3739, %v3404
      %v3741 = vadd.f32 %v3740, %v3420
      %v3742 = vadd.f32 %v3741, %v3436
      %v3743 = vadd.f32 %v3742, %v3452
      %v3744 = vadd.f32 %v3743, %v3468
      %v3745 = vrot.slane %v3744, 4
      %v3746 = vadd.f32 %v3744, %v3745
      %v3747 = vrot.slane %v3746, 2
      %v3748 = vadd.f32 %v3746, %v3747
      %v3749 = vrot.slane %v3748, 1
      %v3750 = vadd.f32 %v3748, %v3749
      %v3751 = vadd.f32 %v3021, %v3037
      %v3752 = vadd.f32 %v3751, %v3053
      %v3753 = vadd.f32 %v3752, %v3069
      %v3754 = vadd.f32 %v3753, %v3085
      %v3755 = vadd.f32 %v3754, %v3101
      %v3756 = vadd.f32 %v3755, %v3117
      %v3757 = vadd.f32 %v3756, %v3133
      %v3758 = vadd.f32 %v3757, %v3149
      %v3759 = vadd.f32 %v3758, %v3165
      %v3760 = vadd.f32 %v3759, %v3181
      %v3761 = vadd.f32 %v3760, %v3197
      %v3762 = vadd.f32 %v3761, %v3213
      %v3763 = vadd.f32 %v3762, %v3229
      %v3764 = vadd.f32 %v3763, %v3245
      %v3765 = vadd.f32 %v3764, %v3261
      %v3766 = vadd.f32 %v3765, %v3277
      %v3767 = vadd.f32 %v3766, %v3293
      %v3768 = vadd.f32 %v3767, %v3309
      %v3769 = vadd.f32 %v3768, %v3325
      %v3770 = vadd.f32 %v3769, %v3341
      %v3771 = vadd.f32 %v3770, %v3357
      %v3772 = vadd.f32 %v3771, %v3373
      %v3773 = vadd.f32 %v3772, %v3389
      %v3774 = vadd.f32 %v3773, %v3405
      %v3775 = vadd.f32 %v3774, %v3421
      %v3776 = vadd.f32 %v3775, %v3437
      %v3777 = vadd.f32 %v3776, %v3453
      %v3778 = vadd.f32 %v3777, %v3469
      %v3779 = vrot.slane %v3778, 4
      %v3780 = vadd.f32 %v3778, %v3779
      %v3781 = vrot.slane %v3780, 2
      %v3782 = vadd.f32 %v3780, %v3781
      %v3783 = vrot.slane %v3782, 1
      %v3784 = vadd.f32 %v3782, %v3783
      %v3785 = vadd.f32 %v3022, %v3038
      %v3786 = vadd.f32 %v3785, %v3054
      %v3787 = vadd.f32 %v3786, %v3070
      %v3788 = vadd.f32 %v3787, %v3086
      %v3789 = vadd.f32 %v3788, %v3102
      %v3790 = vadd.f32 %v3789, %v3118
      %v3791 = vadd.f32 %v3790, %v3134
      %v3792 = vadd.f32 %v3791, %v3150
      %v3793 = vadd.f32 %v3792, %v3166
      %v3794 = vadd.f32 %v3793, %v3182
      %v3795 = vadd.f32 %v3794, %v3198
      %v3796 = vadd.f32 %v3795, %v3214
      %v3797 = vadd.f32 %v3796, %v3230
      %v3798 = vadd.f32 %v3797, %v3246
      %v3799 = vadd.f32 %v3798, %v3262
      %v3800 = vadd.f32 %v3799, %v3278
      %v3801 = vadd.f32 %v3800, %v3294
      %v3802 = vadd.f32 %v3801, %v3310
      %v3803 = vadd.f32 %v3802, %v3326
      %v3804 = vadd.f32 %v3803, %v3342
      %v3805 = vadd.f32 %v3804, %v3358
      %v3806 = vadd.f32 %v3805, %v3374
      %v3807 = vadd.f32 %v3806, %v3390
      %v3808 = vadd.f32 %v3807, %v3406
      %v3809 = vadd.f32 %v3808, %v3422
      %v3810 = vadd.f32 %v3809, %v3438
      %v3811 = vadd.f32 %v3810, %v3454
      %v3812 = vadd.f32 %v3811, %v3470
      %v3813 = vrot.slane %v3812, 4
      %v3814 = vadd.f32 %v3812, %v3813
      %v3815 = vrot.slane %v3814, 2
      %v3816 = vadd.f32 %v3814, %v3815
      %v3817 = vrot.slane %v3816, 1
      %v3818 = vadd.f32 %v3816, %v3817
      %v3819 = vadd.f32 %v3023, %v3039
      %v3820 = vadd.f32 %v3819, %v3055
      %v3821 = vadd.f32 %v3820, %v3071
      %v3822 = vadd.f32 %v3821, %v3087
      %v3823 = vadd.f32 %v3822, %v3103
      %v3824 = vadd.f32 %v3823, %v3119
      %v3825 = vadd.f32 %v3824, %v3135
      %v3826 = vadd.f32 %v3825, %v3151
      %v3827 = vadd.f32 %v3826, %v3167
      %v3828 = vadd.f32 %v3827, %v3183
      %v3829 = vadd.f32 %v3828, %v3199
      %v3830 = vadd.f32 %v3829, %v3215
      %v3831 = vadd.f32 %v3830, %v3231
      %v3832 = vadd.f32 %v3831, %v3247
      %v3833 = vadd.f32 %v3832, %v3263
      %v3834 = vadd.f32 %v3833, %v3279
      %v3835 = vadd.f32 %v3834, %v3295
      %v3836 = vadd.f32 %v3835, %v3311
      %v3837 = vadd.f32 %v3836, %v3327
      %v3838 = vadd.f32 %v3837, %v3343
      %v3839 = vadd.f32 %v3838, %v3359
      %v3840 = vadd.f32 %v3839, %v3375
      %v3841 = vadd.f32 %v3840, %v3391
      %v3842 = vadd.f32 %v3841, %v3407
      %v3843 = vadd.f32 %v3842, %v3423
      %v3844 = vadd.f32 %v3843, %v3439
      %v3845 = vadd.f32 %v3844, %v3455
      %v3846 = vadd.f32 %v3845, %v3471
      %v3847 = vrot.slane %v3846, 4
      %v3848 = vadd.f32 %v3846, %v3847
      %v3849 = vrot.slane %v3848, 2
      %v3850 = vadd.f32 %v3848, %v3849
      %v3851 = vrot.slane %v3850, 1
      %v3852 = vadd.f32 %v3850, %v3851
      %v3853 = vadd.f32 %v3024, %v3040
      %v3854 = vadd.f32 %v3853, %v3056
      %v3855 = vadd.f32 %v3854, %v3072
      %v3856 = vadd.f32 %v3855, %v3088
      %v3857 = vadd.f32 %v3856, %v3104
      %v3858 = vadd.f32 %v3857, %v3120
      %v3859 = vadd.f32 %v3858, %v3136
      %v3860 = vadd.f32 %v3859, %v3152
      %v3861 = vadd.f32 %v3860, %v3168
      %v3862 = vadd.f32 %v3861, %v3184
      %v3863 = vadd.f32 %v3862, %v3200
      %v3864 = vadd.f32 %v3863, %v3216
      %v3865 = vadd.f32 %v3864, %v3232
      %v3866 = vadd.f32 %v3865, %v3248
      %v3867 = vadd.f32 %v3866, %v3264
      %v3868 = vadd.f32 %v3867, %v3280
      %v3869 = vadd.f32 %v3868, %v3296
      %v3870 = vadd.f32 %v3869, %v3312
      %v3871 = vadd.f32 %v3870, %v3328
      %v3872 = vadd.f32 %v3871, %v3344
      %v3873 = vadd.f32 %v3872, %v3360
      %v3874 = vadd.f32 %v3873, %v3376
      %v3875 = vadd.f32 %v3874, %v3392
      %v3876 = vadd.f32 %v3875, %v3408
      %v3877 = vadd.f32 %v3876, %v3424
      %v3878 = vadd.f32 %v3877, %v3440
      %v3879 = vadd.f32 %v3878, %v3456
      %v3880 = vadd.f32 %v3879, %v3472
      %v3881 = vrot.slane %v3880, 4
      %v3882 = vadd.f32 %v3880, %v3881
      %v3883 = vrot.slane %v3882, 2
      %v3884 = vadd.f32 %v3882, %v3883
      %v3885 = vrot.slane %v3884, 1
      %v3886 = vadd.f32 %v3884, %v3885
      %v3887 = vadd.f32 %v3025, %v3041
      %v3888 = vadd.f32 %v3887, %v3057
      %v3889 = vadd.f32 %v3888, %v3073
      %v3890 = vadd.f32 %v3889, %v3089
      %v3891 = vadd.f32 %v3890, %v3105
      %v3892 = vadd.f32 %v3891, %v3121
      %v3893 = vadd.f32 %v3892, %v3137
      %v3894 = vadd.f32 %v3893, %v3153
      %v3895 = vadd.f32 %v3894, %v3169
      %v3896 = vadd.f32 %v3895, %v3185
      %v3897 = vadd.f32 %v3896, %v3201
      %v3898 = vadd.f32 %v3897, %v3217
      %v3899 = vadd.f32 %v3898, %v3233
      %v3900 = vadd.f32 %v3899, %v3249
      %v3901 = vadd.f32 %v3900, %v3265
      %v3902 = vadd.f32 %v3901, %v3281
      %v3903 = vadd.f32 %v3902, %v3297
      %v3904 = vadd.f32 %v3903, %v3313
      %v3905 = vadd.f32 %v3904, %v3329
      %v3906 = vadd.f32 %v3905, %v3345
      %v3907 = vadd.f32 %v3906, %v3361
      %v3908 = vadd.f32 %v3907, %v3377
      %v3909 = vadd.f32 %v3908, %v3393
      %v3910 = vadd.f32 %v3909, %v3409
      %v3911 = vadd.f32 %v3910, %v3425
      %v3912 = vadd.f32 %v3911, %v3441
      %v3913 = vadd.f32 %v3912, %v3457
      %v3914 = vadd.f32 %v3913, %v3473
      %v3915 = vrot.slane %v3914, 4
      %v3916 = vadd.f32 %v3914, %v3915
      %v3917 = vrot.slane %v3916, 2
      %v3918 = vadd.f32 %v3916, %v3917
      %v3919 = vrot.slane %v3918, 1
      %v3920 = vadd.f32 %v3918, %v3919
      %v3921 = vadd.f32 %v3026, %v3042
      %v3922 = vadd.f32 %v3921, %v3058
      %v3923 = vadd.f32 %v3922, %v3074
      %v3924 = vadd.f32 %v3923, %v3090
      %v3925 = vadd.f32 %v3924, %v3106
      %v3926 = vadd.f32 %v3925, %v3122
      %v3927 = vadd.f32 %v3926, %v3138
      %v3928 = vadd.f32 %v3927, %v3154
      %v3929 = vadd.f32 %v3928, %v3170
      %v3930 = vadd.f32 %v3929, %v3186
      %v3931 = vadd.f32 %v3930, %v3202
      %v3932 = vadd.f32 %v3931, %v3218
      %v3933 = vadd.f32 %v3932, %v3234
      %v3934 = vadd.f32 %v3933, %v3250
      %v3935 = vadd.f32 %v3934, %v3266
      %v3936 = vadd.f32 %v3935, %v3282
      %v3937 = vadd.f32 %v3936, %v3298
      %v3938 = vadd.f32 %v3937, %v3314
      %v3939 = vadd.f32 %v3938, %v3330
      %v3940 = vadd.f32 %v3939, %v3346
      %v3941 = vadd.f32 %v3940, %v3362
      %v3942 = vadd.f32 %v3941, %v3378
      %v3943 = vadd.f32 %v3942, %v3394
      %v3944 = vadd.f32 %v3943, %v3410
      %v3945 = vadd.f32 %v3944, %v3426
      %v3946 = vadd.f32 %v3945, %v3442
      %v3947 = vadd.f32 %v3946, %v3458
      %v3948 = vadd.f32 %v3947, %v3474
      %v3949 = vrot.slane %v3948, 4
      %v3950 = vadd.f32 %v3948, %v3949
      %v3951 = vrot.slane %v3950, 2
      %v3952 = vadd.f32 %v3950, %v3951
      %v3953 = vrot.slane %v3952, 1
      %v3954 = vadd.f32 %v3952, %v3953
      %v3955 = vadd.f32 %v3027, %v3043
      %v3956 = vadd.f32 %v3955, %v3059
      %v3957 = vadd.f32 %v3956, %v3075
      %v3958 = vadd.f32 %v3957, %v3091
      %v3959 = vadd.f32 %v3958, %v3107
      %v3960 = vadd.f32 %v3959, %v3123
      %v3961 = vadd.f32 %v3960, %v3139
      %v3962 = vadd.f32 %v3961, %v3155
      %v3963 = vadd.f32 %v3962, %v3171
      %v3964 = vadd.f32 %v3963, %v3187
      %v3965 = vadd.f32 %v3964, %v3203
      %v3966 = vadd.f32 %v3965, %v3219
      %v3967 = vadd.f32 %v3966, %v3235
      %v3968 = vadd.f32 %v3967, %v3251
      %v3969 = vadd.f32 %v3968, %v3267
      %v3970 = vadd.f32 %v3969, %v3283
      %v3971 = vadd.f32 %v3970, %v3299
      %v3972 = vadd.f32 %v3971, %v3315
      %v3973 = vadd.f32 %v3972, %v3331
      %v3974 = vadd.f32 %v3973, %v3347
      %v3975 = vadd.f32 %v3974, %v3363
      %v3976 = vadd.f32 %v3975, %v3379
      %v3977 = vadd.f32 %v3976, %v3395
      %v3978 = vadd.f32 %v3977, %v3411
      %v3979 = vadd.f32 %v3978, %v3427
      %v3980 = vadd.f32 %v3979, %v3443
      %v3981 = vadd.f32 %v3980, %v3459
      %v3982 = vadd.f32 %v3981, %v3475
      %v3983 = vrot.slane %v3982, 4
      %v3984 = vadd.f32 %v3982, %v3983
      %v3985 = vrot.slane %v3984, 2
      %v3986 = vadd.f32 %v3984, %v3985
      %v3987 = vrot.slane %v3986, 1
      %v3988 = vadd.f32 %v3986, %v3987
      %v3989 = vadd.f32 %v3028, %v3044
      %v3990 = vadd.f32 %v3989, %v3060
      %v3991 = vadd.f32 %v3990, %v3076
      %v3992 = vadd.f32 %v3991, %v3092
      %v3993 = vadd.f32 %v3992, %v3108
      %v3994 = vadd.f32 %v3993, %v3124
      %v3995 = vadd.f32 %v3994, %v3140
      %v3996 = vadd.f32 %v3995, %v3156
      %v3997 = vadd.f32 %v3996, %v3172
      %v3998 = vadd.f32 %v3997, %v3188
      %v3999 = vadd.f32 %v3998, %v3204
      %v4000 = vadd.f32 %v3999, %v3220
      %v4001 = vadd.f32 %v4000, %v3236
      %v4002 = vadd.f32 %v4001, %v3252
      %v4003 = vadd.f32 %v4002, %v3268
      %v4004 = vadd.f32 %v4003, %v3284
      %v4005 = vadd.f32 %v4004, %v3300
      %v4006 = vadd.f32 %v4005, %v3316
      %v4007 = vadd.f32 %v4006, %v3332
      %v4008 = vadd.f32 %v4007, %v3348
      %v4009 = vadd.f32 %v4008, %v3364
      %v4010 = vadd.f32 %v4009, %v3380
      %v4011 = vadd.f32 %v4010, %v3396
      %v4012 = vadd.f32 %v4011, %v3412
      %v4013 = vadd.f32 %v4012, %v3428
      %v4014 = vadd.f32 %v4013, %v3444
      %v4015 = vadd.f32 %v4014, %v3460
      %v4016 = vadd.f32 %v4015, %v3476
      %v4017 = vrot.slane %v4016, 4
      %v4018 = vadd.f32 %v4016, %v4017
      %v4019 = vrot.slane %v4018, 2
      %v4020 = vadd.f32 %v4018, %v4019
      %v4021 = vrot.slane %v4020, 1
      %v4022 = vadd.f32 %v4020, %v4021
      %v4039 = vcombine.low %v3512, %v3546
      %v4040 = vcombine.low %v3580, %v3614
      %v4041 = vcombine.low %v3648, %v3682
      %v4042 = vcombine.low %v3716, %v3750
      %v4044 = vunpack.c.l.s4 1966171168
      %v4045 = vunpack.c.0.s8 %v4044
      %v4046 = vlaneseq
      %v4047 = vshrl.u32 %v4046, 7
      %v4048 = vsub.s32 %v4045, %v4047
      %v4049 = vrot.slane %v4039, %v4048
      %v4051 = vunpack.c.l.s4 1966171168
      %v4052 = vunpack.c.0.s8 %v4051
      %v4053 = vlaneseq
      %v4054 = vshrl.u32 %v4053, 7
      %v4055 = vsub.s32 %v4052, %v4054
      %v4056 = vrot.slane %v4040, %v4055
      %v4058 = vunpack.c.l.s4 1966171168
      %v4059 = vunpack.c.0.s8 %v4058
      %v4060 = vlaneseq
      %v4061 = vshrl.u32 %v4060, 7
      %v4062 = vsub.s32 %v4059, %v4061
      %v4063 = vrot.slane %v4041, %v4062
      %v4065 = vunpack.c.l.s4 1966171168
      %v4066 = vunpack.c.0.s8 %v4065
      %v4067 = vlaneseq
      %v4068 = vshrl.u32 %v4067, 7
      %v4069 = vsub.s32 %v4066, %v4068
      %v4070 = vrot.slane %v4042, %v4069
      %v4071 = vcombine.low %v4049, %v4056
      %v4072 = vcombine.low %v4063, %v4070
      %v4074 = vunpack.c.l.s4 1966171168
      %v4075 = vunpack.c.0.s8 %v4074
      %v4076 = vlaneseq
      %v4077 = vshrl.u32 %v4076, 7
      %v4078 = vsub.s32 %v4075, %v4077
      %v4079 = vrot.slane %v4071, %v4078
      %v4081 = vunpack.c.l.s4 1966171168
      %v4082 = vunpack.c.0.s8 %v4081
      %v4083 = vlaneseq
      %v4084 = vshrl.u32 %v4083, 7
      %v4085 = vsub.s32 %v4082, %v4084
      %v4086 = vrot.slane %v4072, %v4085
      %v4087 = vcombine.low %v4079, %v4086
      %v4088 = vcombine.low %v3784, %v3818
      %v4089 = vcombine.low %v3852, %v3886
      %v4090 = vcombine.low %v3920, %v3954
      %v4091 = vcombine.low %v3988, %v4022
      %v4093 = vunpack.c.l.s4 1966171168
      %v4094 = vunpack.c.0.s8 %v4093
      %v4095 = vlaneseq
      %v4096 = vshrl.u32 %v4095, 7
      %v4097 = vsub.s32 %v4094, %v4096
      %v4098 = vrot.slane %v4088, %v4097
      %v4100 = vunpack.c.l.s4 1966171168
      %v4101 = vunpack.c.0.s8 %v4100
      %v4102 = vlaneseq
      %v4103 = vshrl.u32 %v4102, 7
      %v4104 = vsub.s32 %v4101, %v4103
      %v4105 = vrot.slane %v4089, %v4104
      %v4107 = vunpack.c.l.s4 1966171168
      %v4108 = vunpack.c.0.s8 %v4107
      %v4109 = vlaneseq
      %v4110 = vshrl.u32 %v4109, 7
      %v4111 = vsub.s32 %v4108, %v4110
      %v4112 = vrot.slane %v4090, %v4111
      %v4114 = vunpack.c.l.s4 1966171168
      %v4115 = vunpack.c.0.s8 %v4114
      %v4116 = vlaneseq
      %v4117 = vshrl.u32 %v4116, 7
      %v4118 = vsub.s32 %v4115, %v4117
      %v4119 = vrot.slane %v4091, %v4118
      %v4120 = vcombine.low %v4098, %v4105
      %v4121 = vcombine.low %v4112, %v4119
      %v4123 = vunpack.c.l.s4 1966171168
      %v4124 = vunpack.c.0.s8 %v4123
      %v4125 = vlaneseq
      %v4126 = vshrl.u32 %v4125, 7
      %v4127 = vsub.s32 %v4124, %v4126
      %v4128 = vrot.slane %v4120, %v4127
      %v4130 = vunpack.c.l.s4 1966171168
      %v4131 = vunpack.c.0.s8 %v4130
      %v4132 = vlaneseq
      %v4133 = vshrl.u32 %v4132, 7
      %v4134 = vsub.s32 %v4131, %v4133
      %v4135 = vrot.slane %v4121, %v4134
      %v4136 = vcombine.low %v4128, %v4135
      %v4139 = vadd.f32 %v3477, %v4087
      %v4140 = vadd.f32 %v3478, %v4136
      %4141 = vst [vmem:[#allocation2] sm:$0xff] %v4139
      %4142 = vst [vmem:[#allocation2 + $0x8] sm:$0xff] %v4140
      // Predicated region
      $region45: #{encoder_cnn_forward.2} parent=39 // pred_check
        %p4143 = pneg %p252
      $region46: #{encoder_cnn_forward.2} parent=39 // pred_check_branch
        %4145 = sbr.rel (%p4143) target = $region48
      $region47: #{encoder_cnn_forward.2} parent=39 // pred_region
        %v4146 = vld [vmem:[#allocation2] sm:$0xff]
        %v4147 = vld [vmem:[#allocation2 + $0x8] sm:$0xff]
        %v4148 = vmul.f32 %v4146, 0.0044444446
        %v4149 = vmul.f32 %v4147, 0.0044444446
        %4150 = vst [vmem:[%s250] sm:$0xff] %v4148
        %4151 = vst [vmem:[%s250 + $0x8] sm:$0xff] %v4149
      $region48: #{encoder_cnn_forward.2} parent=39 // pred_fallthru
        _
      %p4152 = scmp.lt.s32.totalorder %s20, 1
      %s4153 = scalar_select %p4152, %s20, 1
      %s4154 = smul.addr %s4153, 16
      %s4155 = scalar_lea.vmem %s5, %s4154
      // Predicated region
      $region49: #{encoder_cnn_forward.2} parent=39 // pred_check
        %p4156 = pneg %p158
      $region50: #{encoder_cnn_forward.2} parent=39 // pred_check_branch
        %4158 = sbr.rel (%p4156) target = $region52
      $region51: #{encoder_cnn_forward.2} parent=39 // pred_region
        _
      $region52: #{encoder_cnn_forward.2} parent=39 // pred_fallthru
        _
    $region40: #{encoder_cnn_forward.2} parent=5 // pred_fallthru
      _
    %p4159 = scmp.le.s32.totalorder 2, %s11
    // Predicated region
    $region53: #{encoder_cnn_forward.2} parent=5 // pred_check
      %p4160 = pneg %p4159
    $region54: #{encoder_cnn_forward.2} parent=5 // pred_check_branch
      %4162 = sbr.rel (%p4160) target = $region56
    $region55: #{encoder_cnn_forward.2} parent=5 // pred_region
      %s4163 = ssub.s32 %s11, 2
      // Predicated region
      $region57: #{encoder_cnn_forward.2} parent=55 // pred_check
        %p4164 = pneg %p164
      $region58: #{encoder_cnn_forward.2} parent=55 // pred_check_branch
        %4166 = sbr.rel (%p4164) target = $region60
      $region59: #{encoder_cnn_forward.2} parent=55 // pred_region
        %p4167 = scmp.lt.s32.totalorder %s22, 1
        %s4168 = scalar_select %p4167, %s22, 1
        %s4169 = smul.addr %s4168, 16
        %s4170 = scalar_lea.vmem %s5, %s4169
      $region60: #{encoder_cnn_forward.2} parent=55 // pred_fallthru
        _
    $region56: #{encoder_cnn_forward.2} parent=5 // pred_fallthru
      _
  $region6: #{encoder_cnn_forward.2} parent=0 // loop_footer
    %s15 = sadd.s32 1, %s11
  $region7: #{encoder_cnn_forward.2} parent=0 // loop_footer_branch
    %10 = sbr.rel target = $region3
  $region8: #{encoder_cnn_forward.2} parent=0 // loop_exit
    _

// kernel: encoder_cnn_forward.3
$region0: #{encoder_cnn_forward.3}
  #allocation0 [shape = 'u32[]', space=smem, size = 0x4, offset = 0x4, fixed_abs, tag = 'smem constant byte address 0x4 - core index']
  #allocation1 [shape = 'u32[144,128]{1,0:T(1,128)}', space=vmem, size = 0x12000, scoped, tag = 'internal scratch']
  %s0 = inlined_call_operand.vmem [shape: f32[2,2048], index: 0, kind: input, shape index: {}]
  %s1 = inlined_call_operand.vmem [shape: bf16[2048,128], index: 1, kind: input, shape index: {}]
  %s2 = inlined_call_operand.vmem [shape: f32[1,128], index: 2, kind: input, shape index: {}]
  %s3 = inlined_call_operand.vmem [shape: f32[2,128], index: 3, kind: input, shape index: {}]
  %s4 = inlined_call_operand.hbm [shape: f32[2,128], index: 4, kind: output, shape index: {}]
  %s5 = sld [smem:[#allocation0]]
  $region26: #{encoder_cnn_forward.3} parent=0
    _
  %s7 = ssub.s32 1, %s5
  %s8 = scalar_select 0, %s7, %s5
  $region1: #{encoder_cnn_forward.3} parent=0
    #allocation2 [shape = 'u8[1024]{0}', space=vmem, size = 0x400, scoped, tag = 'output window, operand 0, single buffered']
    #allocation3 [shape = 's32[1]{0}', space=sflag, size = 0x4, scoped, tag = 'scoped memory for encoder_cnn_forward.3']
    %9 = vsyncpa [#allocation3], 0
    // Predicated region
    $region2: #{encoder_cnn_forward.3} parent=1 // pred_check
      _
    $region3: #{encoder_cnn_forward.3} parent=1 // pred_check_branch
      %11 = sbr.rel (0) target = $region5
    $region4: #{encoder_cnn_forward.3} parent=1 // pred_region
      _
    $region5: #{encoder_cnn_forward.3} parent=1 // pred_fallthru
      _
    // Predicated region
    $region6: #{encoder_cnn_forward.3} parent=1 // pred_check
      _
    $region7: #{encoder_cnn_forward.3} parent=1 // pred_check_branch
      %13 = sbr.rel (0) target = $region9
    $region8: #{encoder_cnn_forward.3} parent=1 // pred_region
      _
    $region9: #{encoder_cnn_forward.3} parent=1 // pred_fallthru
      _
    // Predicated region
    $region10: #{encoder_cnn_forward.3} parent=1 // pred_check
      _
    $region11: #{encoder_cnn_forward.3} parent=1 // pred_check_branch
      %15 = sbr.rel (0) target = $region13
    $region12: #{encoder_cnn_forward.3} parent=1 // pred_region
      _
    $region13: #{encoder_cnn_forward.3} parent=1 // pred_fallthru
      _
    // Predicated region
    $region14: #{encoder_cnn_forward.3} parent=1 // pred_check
      _
    $region15: #{encoder_cnn_forward.3} parent=1 // pred_check_branch
      %17 = sbr.rel (0) target = $region17
    $region16: #{encoder_cnn_forward.3} parent=1 // pred_region
      _
    $region17: #{encoder_cnn_forward.3} parent=1 // pred_fallthru
      _
    %v19 = vld [vmem:[%s0] sm:$0xff]
    %v20 = vld [vmem:[%s0 + $0x8] sm:$0xff]
    %v21 = vld [vmem:[%s0 + $0x10] sm:$0xff]
    %v22 = vld [vmem:[%s0 + $0x18] sm:$0xff]
    %v27 = vcombine.high %v19, %v19
    %v29 = vunpack.c.l.s4 1983009808
    %v30 = vunpack.c.0.s8 %v29
    %v31 = vlaneseq
    %v32 = vshrl.u32 %v31, 7
    %v33 = vsub.s32 %v30, %v32
    %v34 = vrot.slane %v19, %v33
    %v36 = vunpack.c.l.s4 1983009808
    %v37 = vunpack.c.0.s8 %v36
    %v38 = vlaneseq
    %v39 = vshrl.u32 %v38, 7
    %v40 = vsub.s32 %v37, %v39
    %v41 = vrot.slane %v27, %v40
    %v42 = vcombine.high %v34, %v34
    %v43 = vcombine.high %v41, %v41
    %v44 = vcombine.high %v20, %v20
    %v46 = vunpack.c.l.s4 1983009808
    %v47 = vunpack.c.0.s8 %v46
    %v48 = vlaneseq
    %v49 = vshrl.u32 %v48, 7
    %v50 = vsub.s32 %v47, %v49
    %v51 = vrot.slane %v20, %v50
    %v53 = vunpack.c.l.s4 1983009808
    %v54 = vunpack.c.0.s8 %v53
    %v55 = vlaneseq
    %v56 = vshrl.u32 %v55, 7
    %v57 = vsub.s32 %v54, %v56
    %v58 = vrot.slane %v44, %v57
    %v59 = vcombine.high %v51, %v51
    %v60 = vcombine.high %v58, %v58
    %v61 = vcombine.high %v21, %v21
    %v63 = vunpack.c.l.s4 1983009808
    %v64 = vunpack.c.0.s8 %v63
    %v65 = vlaneseq
    %v66 = vshrl.u32 %v65, 7
    %v67 = vsub.s32 %v64, %v66
    %v68 = vrot.slane %v21, %v67
    %v70 = vunpack.c.l.s4 1983009808
    %v71 = vunpack.c.0.s8 %v70
    %v72 = vlaneseq
    %v73 = vshrl.u32 %v72, 7
    %v74 = vsub.s32 %v71, %v73
    %v75 = vrot.slane %v61, %v74
    %v76 = vcombine.high %v68, %v68
    %v77 = vcombine.high %v75, %v75
    %v78 = vcombine.high %v22, %v22
    %v80 = vunpack.c.l.s4 1983009808
    %v81 = vunpack.c.0.s8 %v80
    %v82 = vlaneseq
    %v83 = vshrl.u32 %v82, 7
    %v84 = vsub.s32 %v81, %v83
    %v85 = vrot.slane %v22, %v84
    %v87 = vunpack.c.l.s4 1983009808
    %v88 = vunpack.c.0.s8 %v87
    %v89 = vlaneseq
    %v90 = vshrl.u32 %v89, 7
    %v91 = vsub.s32 %v88, %v90
    %v92 = vrot.slane %v78, %v91
    %v93 = vcombine.high %v85, %v85
    %v94 = vcombine.high %v92, %v92
    %v111 = vpack.c.bf16 %v34, %v34
    %v112 = vpack.c.bf16 %v42, %v42
    %v113 = vpack.c.bf16 %v41, %v41
    %v114 = vpack.c.bf16 %v43, %v43
    %v115 = vpack.c.bf16 %v51, %v51
    %v116 = vpack.c.bf16 %v59, %v59
    %v117 = vpack.c.bf16 %v58, %v58
    %v118 = vpack.c.bf16 %v60, %v60
    %v119 = vpack.c.bf16 %v68, %v68
    %v120 = vpack.c.bf16 %v76, %v76
    %v121 = vpack.c.bf16 %v75, %v75
    %v122 = vpack.c.bf16 %v77, %v77
    %v123 = vpack.c.bf16 %v85, %v85
    %v124 = vpack.c.bf16 %v93, %v93
    %v125 = vpack.c.bf16 %v92, %v92
    %v126 = vpack.c.bf16 %v94, %v94
    %v127 = vld [vmem:[%s1] sm:$0xf]
    %v128 = vld [vmem:[%s1 + $0x4] sm:$0xf]
    %v129 = vld [vmem:[%s1 + $0x8] sm:$0xf]
    %v130 = vld [vmem:[%s1 + $0xc] sm:$0xf]
    %v131 = vld [vmem:[%s1 + $0x10] sm:$0xf]
    %v132 = vld [vmem:[%s1 + $0x14] sm:$0xf]
    %v133 = vld [vmem:[%s1 + $0x18] sm:$0xf]
    %v134 = vld [vmem:[%s1 + $0x1c] sm:$0xf]
    %v135 = vld [vmem:[%s1 + $0x20] sm:$0xf]
    %v136 = vld [vmem:[%s1 + $0x24] sm:$0xf]
    %v137 = vld [vmem:[%s1 + $0x28] sm:$0xf]
    %v138 = vld [vmem:[%s1 + $0x2c] sm:$0xf]
    %v139 = vld [vmem:[%s1 + $0x30] sm:$0xf]
    %v140 = vld [vmem:[%s1 + $0x34] sm:$0xf]
    %v141 = vld [vmem:[%s1 + $0x38] sm:$0xf]
    %v142 = vld [vmem:[%s1 + $0x3c] sm:$0xf]
    %v143 = vld [vmem:[%s1 + $0x40] sm:$0xf]
    %v144 = vld [vmem:[%s1 + $0x44] sm:$0xf]
    %v145 = vld [vmem:[%s1 + $0x48] sm:$0xf]
    %v146 = vld [vmem:[%s1 + $0x4c] sm:$0xf]
    %v147 = vld [vmem:[%s1 + $0x50] sm:$0xf]
    %v148 = vld [vmem:[%s1 + $0x54] sm:$0xf]
    %v149 = vld [vmem:[%s1 + $0x58] sm:$0xf]
    %v150 = vld [vmem:[%s1 + $0x5c] sm:$0xf]
    %v151 = vld [vmem:[%s1 + $0x60] sm:$0xf]
    %v152 = vld [vmem:[%s1 + $0x64] sm:$0xf]
    %v153 = vld [vmem:[%s1 + $0x68] sm:$0xf]
    %v154 = vld [vmem:[%s1 + $0x6c] sm:$0xf]
    %v155 = vld [vmem:[%s1 + $0x70] sm:$0xf]
    %v156 = vld [vmem:[%s1 + $0x74] sm:$0xf]
    %v157 = vld [vmem:[%s1 + $0x78] sm:$0xf]
    %v158 = vld [vmem:[%s1 + $0x7c] sm:$0xf]
    %v159 = vld [vmem:[%s1 + $0x80] sm:$0xf]
    %v160 = vld [vmem:[%s1 + $0x84] sm:$0xf]
    %v161 = vld [vmem:[%s1 + $0x88] sm:$0xf]
    %v162 = vld [vmem:[%s1 + $0x8c] sm:$0xf]
    %v163 = vld [vmem:[%s1 + $0x90] sm:$0xf]
    %v164 = vld [vmem:[%s1 + $0x94] sm:$0xf]
    %v165 = vld [vmem:[%s1 + $0x98] sm:$0xf]
    %v166 = vld [vmem:[%s1 + $0x9c] sm:$0xf]
    %v167 = vld [vmem:[%s1 + $0xa0] sm:$0xf]
    %v168 = vld [vmem:[%s1 + $0xa4] sm:$0xf]
    %v169 = vld [vmem:[%s1 + $0xa8] sm:$0xf]
    %v170 = vld [vmem:[%s1 + $0xac] sm:$0xf]
    %v171 = vld [vmem:[%s1 + $0xb0] sm:$0xf]
    %v172 = vld [vmem:[%s1 + $0xb4] sm:$0xf]
    %v173 = vld [vmem:[%s1 + $0xb8] sm:$0xf]
    %v174 = vld [vmem:[%s1 + $0xbc] sm:$0xf]
    %v175 = vld [vmem:[%s1 + $0xc0] sm:$0xf]
    %v176 = vld [vmem:[%s1 + $0xc4] sm:$0xf]
    %v177 = vld [vmem:[%s1 + $0xc8] sm:$0xf]
    %v178 = vld [vmem:[%s1 + $0xcc] sm:$0xf]
    %v179 = vld [vmem:[%s1 + $0xd0] sm:$0xf]
    %v180 = vld [vmem:[%s1 + $0xd4] sm:$0xf]
    %v181 = vld [vmem:[%s1 + $0xd8] sm:$0xf]
    %v182 = vld [vmem:[%s1 + $0xdc] sm:$0xf]
    %v183 = vld [vmem:[%s1 + $0xe0] sm:$0xf]
    %v184 = vld [vmem:[%s1 + $0xe4] sm:$0xf]
    %v185 = vld [vmem:[%s1 + $0xe8] sm:$0xf]
    %v186 = vld [vmem:[%s1 + $0xec] sm:$0xf]
    %v187 = vld [vmem:[%s1 + $0xf0] sm:$0xf]
    %v188 = vld [vmem:[%s1 + $0xf4] sm:$0xf]
    %v189 = vld [vmem:[%s1 + $0xf8] sm:$0xf]
    %v190 = vld [vmem:[%s1 + $0xfc] sm:$0xf]
    %v191 = vld [vmem:[%s1 + $0x100] sm:$0xf]
    %v192 = vld [vmem:[%s1 + $0x104] sm:$0xf]
    %v193 = vld [vmem:[%s1 + $0x108] sm:$0xf]
    %v194 = vld [vmem:[%s1 + $0x10c] sm:$0xf]
    %v195 = vld [vmem:[%s1 + $0x110] sm:$0xf]
    %v196 = vld [vmem:[%s1 + $0x114] sm:$0xf]
    %v197 = vld [vmem:[%s1 + $0x118] sm:$0xf]
    %v198 = vld [vmem:[%s1 + $0x11c] sm:$0xf]
    %v199 = vld [vmem:[%s1 + $0x120] sm:$0xf]
    %v200 = vld [vmem:[%s1 + $0x124] sm:$0xf]
    %v201 = vld [vmem:[%s1 + $0x128] sm:$0xf]
    %v202 = vld [vmem:[%s1 + $0x12c] sm:$0xf]
    %v203 = vld [vmem:[%s1 + $0x130] sm:$0xf]
    %v204 = vld [vmem:[%s1 + $0x134] sm:$0xf]
    %v205 = vld [vmem:[%s1 + $0x138] sm:$0xf]
    %v206 = vld [vmem:[%s1 + $0x13c] sm:$0xf]
    %v207 = vld [vmem:[%s1 + $0x140] sm:$0xf]
    %v208 = vld [vmem:[%s1 + $0x144] sm:$0xf]
    %v209 = vld [vmem:[%s1 + $0x148] sm:$0xf]
    %v210 = vld [vmem:[%s1 + $0x14c] sm:$0xf]
    %v211 = vld [vmem:[%s1 + $0x150] sm:$0xf]
    %v212 = vld [vmem:[%s1 + $0x154] sm:$0xf]
    %v213 = vld [vmem:[%s1 + $0x158] sm:$0xf]
    %v214 = vld [vmem:[%s1 + $0x15c] sm:$0xf]
    %v215 = vld [vmem:[%s1 + $0x160] sm:$0xf]
    %v216 = vld [vmem:[%s1 + $0x164] sm:$0xf]
    %v217 = vld [vmem:[%s1 + $0x168] sm:$0xf]
    %v218 = vld [vmem:[%s1 + $0x16c] sm:$0xf]
    %v219 = vld [vmem:[%s1 + $0x170] sm:$0xf]
    %v220 = vld [vmem:[%s1 + $0x174] sm:$0xf]
    %v221 = vld [vmem:[%s1 + $0x178] sm:$0xf]
    %v222 = vld [vmem:[%s1 + $0x17c] sm:$0xf]
    %v223 = vld [vmem:[%s1 + $0x180] sm:$0xf]
    %v224 = vld [vmem:[%s1 + $0x184] sm:$0xf]
    %v225 = vld [vmem:[%s1 + $0x188] sm:$0xf]
    %v226 = vld [vmem:[%s1 + $0x18c] sm:$0xf]
    %v227 = vld [vmem:[%s1 + $0x190] sm:$0xf]
    %v228 = vld [vmem:[%s1 + $0x194] sm:$0xf]
    %v229 = vld [vmem:[%s1 + $0x198] sm:$0xf]
    %v230 = vld [vmem:[%s1 + $0x19c] sm:$0xf]
    %v231 = vld [vmem:[%s1 + $0x1a0] sm:$0xf]
    %v232 = vld [vmem:[%s1 + $0x1a4] sm:$0xf]
    %v233 = vld [vmem:[%s1 + $0x1a8] sm:$0xf]
    %v234 = vld [vmem:[%s1 + $0x1ac] sm:$0xf]
    %v235 = vld [vmem:[%s1 + $0x1b0] sm:$0xf]
    %v236 = vld [vmem:[%s1 + $0x1b4] sm:$0xf]
    %v237 = vld [vmem:[%s1 + $0x1b8] sm:$0xf]
    %v238 = vld [vmem:[%s1 + $0x1bc] sm:$0xf]
    %v239 = vld [vmem:[%s1 + $0x1c0] sm:$0xf]
    %v240 = vld [vmem:[%s1 + $0x1c4] sm:$0xf]
    %v241 = vld [vmem:[%s1 + $0x1c8] sm:$0xf]
    %v242 = vld [vmem:[%s1 + $0x1cc] sm:$0xf]
    %v243 = vld [vmem:[%s1 + $0x1d0] sm:$0xf]
    %v244 = vld [vmem:[%s1 + $0x1d4] sm:$0xf]
    %v245 = vld [vmem:[%s1 + $0x1d8] sm:$0xf]
    %v246 = vld [vmem:[%s1 + $0x1dc] sm:$0xf]
    %v247 = vld [vmem:[%s1 + $0x1e0] sm:$0xf]
    %v248 = vld [vmem:[%s1 + $0x1e4] sm:$0xf]
    %v249 = vld [vmem:[%s1 + $0x1e8] sm:$0xf]
    %v250 = vld [vmem:[%s1 + $0x1ec] sm:$0xf]
    %v251 = vld [vmem:[%s1 + $0x1f0] sm:$0xf]
    %v252 = vld [vmem:[%s1 + $0x1f4] sm:$0xf]
    %v253 = vld [vmem:[%s1 + $0x1f8] sm:$0xf]
    %v254 = vld [vmem:[%s1 + $0x1fc] sm:$0xf]
    %v255 = vld [vmem:[%s1 + $0x200] sm:$0xf]
    %v256 = vld [vmem:[%s1 + $0x204] sm:$0xf]
    %v257 = vld [vmem:[%s1 + $0x208] sm:$0xf]
    %v258 = vld [vmem:[%s1 + $0x20c] sm:$0xf]
    %v259 = vld [vmem:[%s1 + $0x210] sm:$0xf]
    %v260 = vld [vmem:[%s1 + $0x214] sm:$0xf]
    %v261 = vld [vmem:[%s1 + $0x218] sm:$0xf]
    %v262 = vld [vmem:[%s1 + $0x21c] sm:$0xf]
    %v263 = vld [vmem:[%s1 + $0x220] sm:$0xf]
    %v264 = vld [vmem:[%s1 + $0x224] sm:$0xf]
    %v265 = vld [vmem:[%s1 + $0x228] sm:$0xf]
    %v266 = vld [vmem:[%s1 + $0x22c] sm:$0xf]
    %v267 = vld [vmem:[%s1 + $0x230] sm:$0xf]
    %v268 = vld [vmem:[%s1 + $0x234] sm:$0xf]
    %v269 = vld [vmem:[%s1 + $0x238] sm:$0xf]
    %v270 = vld [vmem:[%s1 + $0x23c] sm:$0xf]
    %v271 = vld [vmem:[%s1 + $0x240] sm:$0xf]
    %v272 = vld [vmem:[%s1 + $0x244] sm:$0xf]
    %v273 = vld [vmem:[%s1 + $0x248] sm:$0xf]
    %v274 = vld [vmem:[%s1 + $0x24c] sm:$0xf]
    %v275 = vld [vmem:[%s1 + $0x250] sm:$0xf]
    %v276 = vld [vmem:[%s1 + $0x254] sm:$0xf]
    %v277 = vld [vmem:[%s1 + $0x258] sm:$0xf]
    %v278 = vld [vmem:[%s1 + $0x25c] sm:$0xf]
    %v279 = vld [vmem:[%s1 + $0x260] sm:$0xf]
    %v280 = vld [vmem:[%s1 + $0x264] sm:$0xf]
    %v281 = vld [vmem:[%s1 + $0x268] sm:$0xf]
    %v282 = vld [vmem:[%s1 + $0x26c] sm:$0xf]
    %v283 = vld [vmem:[%s1 + $0x270] sm:$0xf]
    %v284 = vld [vmem:[%s1 + $0x274] sm:$0xf]
    %v285 = vld [vmem:[%s1 + $0x278] sm:$0xf]
    %v286 = vld [vmem:[%s1 + $0x27c] sm:$0xf]
    %v287 = vld [vmem:[%s1 + $0x280] sm:$0xf]
    %v288 = vld [vmem:[%s1 + $0x284] sm:$0xf]
    %v289 = vld [vmem:[%s1 + $0x288] sm:$0xf]
    %v290 = vld [vmem:[%s1 + $0x28c] sm:$0xf]
    %v291 = vld [vmem:[%s1 + $0x290] sm:$0xf]
    %v292 = vld [vmem:[%s1 + $0x294] sm:$0xf]
    %v293 = vld [vmem:[%s1 + $0x298] sm:$0xf]
    %v294 = vld [vmem:[%s1 + $0x29c] sm:$0xf]
    %v295 = vld [vmem:[%s1 + $0x2a0] sm:$0xf]
    %v296 = vld [vmem:[%s1 + $0x2a4] sm:$0xf]
    %v297 = vld [vmem:[%s1 + $0x2a8] sm:$0xf]
    %v298 = vld [vmem:[%s1 + $0x2ac] sm:$0xf]
    %v299 = vld [vmem:[%s1 + $0x2b0] sm:$0xf]
    %v300 = vld [vmem:[%s1 + $0x2b4] sm:$0xf]
    %v301 = vld [vmem:[%s1 + $0x2b8] sm:$0xf]
    %v302 = vld [vmem:[%s1 + $0x2bc] sm:$0xf]
    %v303 = vld [vmem:[%s1 + $0x2c0] sm:$0xf]
    %v304 = vld [vmem:[%s1 + $0x2c4] sm:$0xf]
    %v305 = vld [vmem:[%s1 + $0x2c8] sm:$0xf]
    %v306 = vld [vmem:[%s1 + $0x2cc] sm:$0xf]
    %v307 = vld [vmem:[%s1 + $0x2d0] sm:$0xf]
    %v308 = vld [vmem:[%s1 + $0x2d4] sm:$0xf]
    %v309 = vld [vmem:[%s1 + $0x2d8] sm:$0xf]
    %v310 = vld [vmem:[%s1 + $0x2dc] sm:$0xf]
    %v311 = vld [vmem:[%s1 + $0x2e0] sm:$0xf]
    %v312 = vld [vmem:[%s1 + $0x2e4] sm:$0xf]
    %v313 = vld [vmem:[%s1 + $0x2e8] sm:$0xf]
    %v314 = vld [vmem:[%s1 + $0x2ec] sm:$0xf]
    %v315 = vld [vmem:[%s1 + $0x2f0] sm:$0xf]
    %v316 = vld [vmem:[%s1 + $0x2f4] sm:$0xf]
    %v317 = vld [vmem:[%s1 + $0x2f8] sm:$0xf]
    %v318 = vld [vmem:[%s1 + $0x2fc] sm:$0xf]
    %v319 = vld [vmem:[%s1 + $0x300] sm:$0xf]
    %v320 = vld [vmem:[%s1 + $0x304] sm:$0xf]
    %v321 = vld [vmem:[%s1 + $0x308] sm:$0xf]
    %v322 = vld [vmem:[%s1 + $0x30c] sm:$0xf]
    %v323 = vld [vmem:[%s1 + $0x310] sm:$0xf]
    %v324 = vld [vmem:[%s1 + $0x314] sm:$0xf]
    %v325 = vld [vmem:[%s1 + $0x318] sm:$0xf]
    %v326 = vld [vmem:[%s1 + $0x31c] sm:$0xf]
    %v327 = vld [vmem:[%s1 + $0x320] sm:$0xf]
    %v328 = vld [vmem:[%s1 + $0x324] sm:$0xf]
    %v329 = vld [vmem:[%s1 + $0x328] sm:$0xf]
    %v330 = vld [vmem:[%s1 + $0x32c] sm:$0xf]
    %v331 = vld [vmem:[%s1 + $0x330] sm:$0xf]
    %v332 = vld [vmem:[%s1 + $0x334] sm:$0xf]
    %v333 = vld [vmem:[%s1 + $0x338] sm:$0xf]
    %v334 = vld [vmem:[%s1 + $0x33c] sm:$0xf]
    %v335 = vld [vmem:[%s1 + $0x340] sm:$0xf]
    %v336 = vld [vmem:[%s1 + $0x344] sm:$0xf]
    %v337 = vld [vmem:[%s1 + $0x348] sm:$0xf]
    %v338 = vld [vmem:[%s1 + $0x34c] sm:$0xf]
    %v339 = vld [vmem:[%s1 + $0x350] sm:$0xf]
    %v340 = vld [vmem:[%s1 + $0x354] sm:$0xf]
    %v341 = vld [vmem:[%s1 + $0x358] sm:$0xf]
    %v342 = vld [vmem:[%s1 + $0x35c] sm:$0xf]
    %v343 = vld [vmem:[%s1 + $0x360] sm:$0xf]
    %v344 = vld [vmem:[%s1 + $0x364] sm:$0xf]
    %v345 = vld [vmem:[%s1 + $0x368] sm:$0xf]
    %v346 = vld [vmem:[%s1 + $0x36c] sm:$0xf]
    %v347 = vld [vmem:[%s1 + $0x370] sm:$0xf]
    %v348 = vld [vmem:[%s1 + $0x374] sm:$0xf]
    %v349 = vld [vmem:[%s1 + $0x378] sm:$0xf]
    %v350 = vld [vmem:[%s1 + $0x37c] sm:$0xf]
    %v351 = vld [vmem:[%s1 + $0x380] sm:$0xf]
    %v352 = vld [vmem:[%s1 + $0x384] sm:$0xf]
    %v353 = vld [vmem:[%s1 + $0x388] sm:$0xf]
    %v354 = vld [vmem:[%s1 + $0x38c] sm:$0xf]
    %v355 = vld [vmem:[%s1 + $0x390] sm:$0xf]
    %v356 = vld [vmem:[%s1 + $0x394] sm:$0xf]
    %v357 = vld [vmem:[%s1 + $0x398] sm:$0xf]
    %v358 = vld [vmem:[%s1 + $0x39c] sm:$0xf]
    %v359 = vld [vmem:[%s1 + $0x3a0] sm:$0xf]
    %v360 = vld [vmem:[%s1 + $0x3a4] sm:$0xf]
    %v361 = vld [vmem:[%s1 + $0x3a8] sm:$0xf]
    %v362 = vld [vmem:[%s1 + $0x3ac] sm:$0xf]
    %v363 = vld [vmem:[%s1 + $0x3b0] sm:$0xf]
    %v364 = vld [vmem:[%s1 + $0x3b4] sm:$0xf]
    %v365 = vld [vmem:[%s1 + $0x3b8] sm:$0xf]
    %v366 = vld [vmem:[%s1 + $0x3bc] sm:$0xf]
    %v367 = vld [vmem:[%s1 + $0x3c0] sm:$0xf]
    %v368 = vld [vmem:[%s1 + $0x3c4] sm:$0xf]
    %v369 = vld [vmem:[%s1 + $0x3c8] sm:$0xf]
    %v370 = vld [vmem:[%s1 + $0x3cc] sm:$0xf]
    %v371 = vld [vmem:[%s1 + $0x3d0] sm:$0xf]
    %v372 = vld [vmem:[%s1 + $0x3d4] sm:$0xf]
    %v373 = vld [vmem:[%s1 + $0x3d8] sm:$0xf]
    %v374 = vld [vmem:[%s1 + $0x3dc] sm:$0xf]
    %v375 = vld [vmem:[%s1 + $0x3e0] sm:$0xf]
    %v376 = vld [vmem:[%s1 + $0x3e4] sm:$0xf]
    %v377 = vld [vmem:[%s1 + $0x3e8] sm:$0xf]
    %v378 = vld [vmem:[%s1 + $0x3ec] sm:$0xf]
    %v379 = vld [vmem:[%s1 + $0x3f0] sm:$0xf]
    %v380 = vld [vmem:[%s1 + $0x3f4] sm:$0xf]
    %v381 = vld [vmem:[%s1 + $0x3f8] sm:$0xf]
    %v382 = vld [vmem:[%s1 + $0x3fc] sm:$0xf]
    %v383 = vld [vmem:[%s2] sm:$0x1]
    %v385 = vlaneseq
    %v386 = vshrl.u32 %v385, 7
    %v387 = vsub.s32 0, %v386
    %v388 = vrot.slane %v383, %v387
    %v646 = vunpack.c.l.b16 %v127
    %v647 = vunpack.c.l.b16 %v128
    %v648 = vunpack.c.l.b16 %v129
    %v649 = vunpack.c.l.b16 %v130
    %v650 = vunpack.c.l.b16 %v131
    %v651 = vunpack.c.l.b16 %v132
    %v652 = vunpack.c.l.b16 %v133
    %v653 = vunpack.c.l.b16 %v134
    %v654 = vunpack.c.l.b16 %v135
    %v655 = vunpack.c.l.b16 %v136
    %v656 = vunpack.c.l.b16 %v137
    %v657 = vunpack.c.l.b16 %v138
    %v658 = vunpack.c.l.b16 %v139
    %v659 = vunpack.c.l.b16 %v140
    %v660 = vunpack.c.l.b16 %v141
    %v661 = vunpack.c.l.b16 %v142
    %v662 = vunpack.c.l.b16 %v143
    %v663 = vunpack.c.l.b16 %v144
    %v664 = vunpack.c.l.b16 %v145
    %v665 = vunpack.c.l.b16 %v146
    %v666 = vunpack.c.l.b16 %v147
    %v667 = vunpack.c.l.b16 %v148
    %v668 = vunpack.c.l.b16 %v149
    %v669 = vunpack.c.l.b16 %v150
    %v670 = vunpack.c.l.b16 %v151
    %v671 = vunpack.c.l.b16 %v152
    %v672 = vunpack.c.l.b16 %v153
    %v673 = vunpack.c.l.b16 %v154
    %v674 = vunpack.c.l.b16 %v155
    %v675 = vunpack.c.l.b16 %v156
    %v676 = vunpack.c.l.b16 %v157
    %v677 = vunpack.c.l.b16 %v158
    %v678 = vunpack.c.l.b16 %v159
    %v679 = vunpack.c.l.b16 %v160
    %v680 = vunpack.c.l.b16 %v161
    %v681 = vunpack.c.l.b16 %v162
    %v682 = vunpack.c.l.b16 %v163
    %v683 = vunpack.c.l.b16 %v164
    %v684 = vunpack.c.l.b16 %v165
    %v685 = vunpack.c.l.b16 %v166
    %v686 = vunpack.c.l.b16 %v167
    %v687 = vunpack.c.l.b16 %v168
    %v688 = vunpack.c.l.b16 %v169
    %v689 = vunpack.c.l.b16 %v170
    %v690 = vunpack.c.l.b16 %v171
    %v691 = vunpack.c.l.b16 %v172
    %v692 = vunpack.c.l.b16 %v173
    %v693 = vunpack.c.l.b16 %v174
    %v694 = vunpack.c.l.b16 %v175
    %v695 = vunpack.c.l.b16 %v176
    %v696 = vunpack.c.l.b16 %v177
    %v697 = vunpack.c.l.b16 %v178
    %v698 = vunpack.c.l.b16 %v179
    %v699 = vunpack.c.l.b16 %v180
    %v700 = vunpack.c.l.b16 %v181
    %v701 = vunpack.c.l.b16 %v182
    %v702 = vunpack.c.l.b16 %v183
    %v703 = vunpack.c.l.b16 %v184
    %v704 = vunpack.c.l.b16 %v185
    %v705 = vunpack.c.l.b16 %v186
    %v706 = vunpack.c.l.b16 %v187
    %v707 = vunpack.c.l.b16 %v188
    %v708 = vunpack.c.l.b16 %v189
    %v709 = vunpack.c.l.b16 %v190
    %v710 = vunpack.c.l.b16 %v191
    %v711 = vunpack.c.l.b16 %v192
    %v712 = vunpack.c.l.b16 %v193
    %v713 = vunpack.c.l.b16 %v194
    %v714 = vunpack.c.l.b16 %v195
    %v715 = vunpack.c.l.b16 %v196
    %v716 = vunpack.c.l.b16 %v197
    %v717 = vunpack.c.l.b16 %v198
    %v718 = vunpack.c.l.b16 %v199
    %v719 = vunpack.c.l.b16 %v200
    %v720 = vunpack.c.l.b16 %v201
    %v721 = vunpack.c.l.b16 %v202
    %v722 = vunpack.c.l.b16 %v203
    %v723 = vunpack.c.l.b16 %v204
    %v724 = vunpack.c.l.b16 %v205
    %v725 = vunpack.c.l.b16 %v206
    %v726 = vunpack.c.l.b16 %v207
    %v727 = vunpack.c.l.b16 %v208
    %v728 = vunpack.c.l.b16 %v209
    %v729 = vunpack.c.l.b16 %v210
    %v730 = vunpack.c.l.b16 %v211
    %v731 = vunpack.c.l.b16 %v212
    %v732 = vunpack.c.l.b16 %v213
    %v733 = vunpack.c.l.b16 %v214
    %v734 = vunpack.c.l.b16 %v215
    %v735 = vunpack.c.l.b16 %v216
    %v736 = vunpack.c.l.b16 %v217
    %v737 = vunpack.c.l.b16 %v218
    %v738 = vunpack.c.l.b16 %v219
    %v739 = vunpack.c.l.b16 %v220
    %v740 = vunpack.c.l.b16 %v221
    %v741 = vunpack.c.l.b16 %v222
    %v742 = vunpack.c.l.b16 %v223
    %v743 = vunpack.c.l.b16 %v224
    %v744 = vunpack.c.l.b16 %v225
    %v745 = vunpack.c.l.b16 %v226
    %v746 = vunpack.c.l.b16 %v227
    %v747 = vunpack.c.l.b16 %v228
    %v748 = vunpack.c.l.b16 %v229
    %v749 = vunpack.c.l.b16 %v230
    %v750 = vunpack.c.l.b16 %v231
    %v751 = vunpack.c.l.b16 %v232
    %v752 = vunpack.c.l.b16 %v233
    %v753 = vunpack.c.l.b16 %v234
    %v754 = vunpack.c.l.b16 %v235
    %v755 = vunpack.c.l.b16 %v236
    %v756 = vunpack.c.l.b16 %v237
    %v757 = vunpack.c.l.b16 %v238
    %v758 = vunpack.c.l.b16 %v239
    %v759 = vunpack.c.l.b16 %v240
    %v760 = vunpack.c.l.b16 %v241
    %v761 = vunpack.c.l.b16 %v242
    %v762 = vunpack.c.l.b16 %v243
    %v763 = vunpack.c.l.b16 %v244
    %v764 = vunpack.c.l.b16 %v245
    %v765 = vunpack.c.l.b16 %v246
    %v766 = vunpack.c.l.b16 %v247
    %v767 = vunpack.c.l.b16 %v248
    %v768 = vunpack.c.l.b16 %v249
    %v769 = vunpack.c.l.b16 %v250
    %v770 = vunpack.c.l.b16 %v251
    %v771 = vunpack.c.l.b16 %v252
    %v772 = vunpack.c.l.b16 %v253
    %v773 = vunpack.c.l.b16 %v254
    %v774 = vunpack.c.l.b16 %v255
    %v775 = vunpack.c.l.b16 %v256
    %v776 = vunpack.c.l.b16 %v257
    %v777 = vunpack.c.l.b16 %v258
    %v778 = vunpack.c.l.b16 %v259
    %v779 = vunpack.c.l.b16 %v260
    %v780 = vunpack.c.l.b16 %v261
    %v781 = vunpack.c.l.b16 %v262
    %v782 = vunpack.c.l.b16 %v263
    %v783 = vunpack.c.l.b16 %v264
    %v784 = vunpack.c.l.b16 %v265
    %v785 = vunpack.c.l.b16 %v266
    %v786 = vunpack.c.l.b16 %v267
    %v787 = vunpack.c.l.b16 %v268
    %v788 = vunpack.c.l.b16 %v269
    %v789 = vunpack.c.l.b16 %v270
    %v790 = vunpack.c.l.b16 %v271
    %v791 = vunpack.c.l.b16 %v272
    %v792 = vunpack.c.l.b16 %v273
    %v793 = vunpack.c.l.b16 %v274
    %v794 = vunpack.c.l.b16 %v275
    %v795 = vunpack.c.l.b16 %v276
    %v796 = vunpack.c.l.b16 %v277
    %v797 = vunpack.c.l.b16 %v278
    %v798 = vunpack.c.l.b16 %v279
    %v799 = vunpack.c.l.b16 %v280
    %v800 = vunpack.c.l.b16 %v281
    %v801 = vunpack.c.l.b16 %v282
    %v802 = vunpack.c.l.b16 %v283
    %v803 = vunpack.c.l.b16 %v284
    %v804 = vunpack.c.l.b16 %v285
    %v805 = vunpack.c.l.b16 %v286
    %v806 = vunpack.c.l.b16 %v287
    %v807 = vunpack.c.l.b16 %v288
    %v808 = vunpack.c.l.b16 %v289
    %v809 = vunpack.c.l.b16 %v290
    %v810 = vunpack.c.l.b16 %v291
    %v811 = vunpack.c.l.b16 %v292
    %v812 = vunpack.c.l.b16 %v293
    %v813 = vunpack.c.l.b16 %v294
    %v814 = vunpack.c.l.b16 %v295
    %v815 = vunpack.c.l.b16 %v296
    %v816 = vunpack.c.l.b16 %v297
    %v817 = vunpack.c.l.b16 %v298
    %v818 = vunpack.c.l.b16 %v299
    %v819 = vunpack.c.l.b16 %v300
    %v820 = vunpack.c.l.b16 %v301
    %v821 = vunpack.c.l.b16 %v302
    %v822 = vunpack.c.l.b16 %v303
    %v823 = vunpack.c.l.b16 %v304
    %v824 = vunpack.c.l.b16 %v305
    %v825 = vunpack.c.l.b16 %v306
    %v826 = vunpack.c.l.b16 %v307
    %v827 = vunpack.c.l.b16 %v308
    %v828 = vunpack.c.l.b16 %v309
    %v829 = vunpack.c.l.b16 %v310
    %v830 = vunpack.c.l.b16 %v311
    %v831 = vunpack.c.l.b16 %v312
    %v832 = vunpack.c.l.b16 %v313
    %v833 = vunpack.c.l.b16 %v314
    %v834 = vunpack.c.l.b16 %v315
    %v835 = vunpack.c.l.b16 %v316
    %v836 = vunpack.c.l.b16 %v317
    %v837 = vunpack.c.l.b16 %v318
    %v838 = vunpack.c.l.b16 %v319
    %v839 = vunpack.c.l.b16 %v320
    %v840 = vunpack.c.l.b16 %v321
    %v841 = vunpack.c.l.b16 %v322
    %v842 = vunpack.c.l.b16 %v323
    %v843 = vunpack.c.l.b16 %v324
    %v844 = vunpack.c.l.b16 %v325
    %v845 = vunpack.c.l.b16 %v326
    %v846 = vunpack.c.l.b16 %v327
    %v847 = vunpack.c.l.b16 %v328
    %v848 = vunpack.c.l.b16 %v329
    %v849 = vunpack.c.l.b16 %v330
    %v850 = vunpack.c.l.b16 %v331
    %v851 = vunpack.c.l.b16 %v332
    %v852 = vunpack.c.l.b16 %v333
    %v853 = vunpack.c.l.b16 %v334
    %v854 = vunpack.c.l.b16 %v335
    %v855 = vunpack.c.l.b16 %v336
    %v856 = vunpack.c.l.b16 %v337
    %v857 = vunpack.c.l.b16 %v338
    %v858 = vunpack.c.l.b16 %v339
    %v859 = vunpack.c.l.b16 %v340
    %v860 = vunpack.c.l.b16 %v341
    %v861 = vunpack.c.l.b16 %v342
    %v862 = vunpack.c.l.b16 %v343
    %v863 = vunpack.c.l.b16 %v344
    %v864 = vunpack.c.l.b16 %v345
    %v865 = vunpack.c.l.b16 %v346
    %v866 = vunpack.c.l.b16 %v347
    %v867 = vunpack.c.l.b16 %v348
    %v868 = vunpack.c.l.b16 %v349
    %v869 = vunpack.c.l.b16 %v350
    %v870 = vunpack.c.l.b16 %v351
    %v871 = vunpack.c.l.b16 %v352
    %v872 = vunpack.c.l.b16 %v353
    %v873 = vunpack.c.l.b16 %v354
    %v874 = vunpack.c.l.b16 %v355
    %v875 = vunpack.c.l.b16 %v356
    %v876 = vunpack.c.l.b16 %v357
    %v877 = vunpack.c.l.b16 %v358
    %v878 = vunpack.c.l.b16 %v359
    %v879 = vunpack.c.l.b16 %v360
    %v880 = vunpack.c.l.b16 %v361
    %v881 = vunpack.c.l.b16 %v362
    %v882 = vunpack.c.l.b16 %v363
    %v883 = vunpack.c.l.b16 %v364
    %v884 = vunpack.c.l.b16 %v365
    %v885 = vunpack.c.l.b16 %v366
    %v886 = vunpack.c.l.b16 %v367
    %v887 = vunpack.c.l.b16 %v368
    %v888 = vunpack.c.l.b16 %v369
    %v889 = vunpack.c.l.b16 %v370
    %v890 = vunpack.c.l.b16 %v371
    %v891 = vunpack.c.l.b16 %v372
    %v892 = vunpack.c.l.b16 %v373
    %v893 = vunpack.c.l.b16 %v374
    %v894 = vunpack.c.l.b16 %v375
    %v895 = vunpack.c.l.b16 %v376
    %v896 = vunpack.c.l.b16 %v377
    %v897 = vunpack.c.l.b16 %v378
    %v898 = vunpack.c.l.b16 %v379
    %v899 = vunpack.c.l.b16 %v380
    %v900 = vunpack.c.l.b16 %v381
    %v901 = vunpack.c.l.b16 %v382
    %v902 = vpack.c.b16 %v647, %v646
    %v903 = vpack.c.b16 %v649, %v648
    %v904 = vpack.c.b16 %v651, %v650
    %v905 = vpack.c.b16 %v653, %v652
    %v906 = vpack.c.b16 %v655, %v654
    %v907 = vpack.c.b16 %v657, %v656
    %v908 = vpack.c.b16 %v659, %v658
    %v909 = vpack.c.b16 %v661, %v660
    %v910 = vpack.c.b16 %v663, %v662
    %v911 = vpack.c.b16 %v665, %v664
    %v912 = vpack.c.b16 %v667, %v666
    %v913 = vpack.c.b16 %v669, %v668
    %v914 = vpack.c.b16 %v671, %v670
    %v915 = vpack.c.b16 %v673, %v672
    %v916 = vpack.c.b16 %v675, %v674
    %v917 = vpack.c.b16 %v677, %v676
    %v918 = vpack.c.b16 %v679, %v678
    %v919 = vpack.c.b16 %v681, %v680
    %v920 = vpack.c.b16 %v683, %v682
    %v921 = vpack.c.b16 %v685, %v684
    %v922 = vpack.c.b16 %v687, %v686
    %v923 = vpack.c.b16 %v689, %v688
    %v924 = vpack.c.b16 %v691, %v690
    %v925 = vpack.c.b16 %v693, %v692
    %v926 = vpack.c.b16 %v695, %v694
    %v927 = vpack.c.b16 %v697, %v696
    %v928 = vpack.c.b16 %v699, %v698
    %v929 = vpack.c.b16 %v701, %v700
    %v930 = vpack.c.b16 %v703, %v702
    %v931 = vpack.c.b16 %v705, %v704
    %v932 = vpack.c.b16 %v707, %v706
    %v933 = vpack.c.b16 %v709, %v708
    %v934 = vpack.c.b16 %v711, %v710
    %v935 = vpack.c.b16 %v713, %v712
    %v936 = vpack.c.b16 %v715, %v714
    %v937 = vpack.c.b16 %v717, %v716
    %v938 = vpack.c.b16 %v719, %v718
    %v939 = vpack.c.b16 %v721, %v720
    %v940 = vpack.c.b16 %v723, %v722
    %v941 = vpack.c.b16 %v725, %v724
    %v942 = vpack.c.b16 %v727, %v726
    %v943 = vpack.c.b16 %v729, %v728
    %v944 = vpack.c.b16 %v731, %v730
    %v945 = vpack.c.b16 %v733, %v732
    %v946 = vpack.c.b16 %v735, %v734
    %v947 = vpack.c.b16 %v737, %v736
    %v948 = vpack.c.b16 %v739, %v738
    %v949 = vpack.c.b16 %v741, %v740
    %v950 = vpack.c.b16 %v743, %v742
    %v951 = vpack.c.b16 %v745, %v744
    %v952 = vpack.c.b16 %v747, %v746
    %v953 = vpack.c.b16 %v749, %v748
    %v954 = vpack.c.b16 %v751, %v750
    %v955 = vpack.c.b16 %v753, %v752
    %v956 = vpack.c.b16 %v755, %v754
    %v957 = vpack.c.b16 %v757, %v756
    %v958 = vpack.c.b16 %v759, %v758
    %v959 = vpack.c.b16 %v761, %v760
    %v960 = vpack.c.b16 %v763, %v762
    %v961 = vpack.c.b16 %v765, %v764
    %v962 = vpack.c.b16 %v767, %v766
    %v963 = vpack.c.b16 %v769, %v768
    %v964 = vpack.c.b16 %v771, %v770
    %v965 = vpack.c.b16 %v773, %v772
    %v966 = vpack.c.b16 %v775, %v774
    %v967 = vpack.c.b16 %v777, %v776
    %v968 = vpack.c.b16 %v779, %v778
    %v969 = vpack.c.b16 %v781, %v780
    %v970 = vpack.c.b16 %v783, %v782
    %v971 = vpack.c.b16 %v785, %v784
    %v972 = vpack.c.b16 %v787, %v786
    %v973 = vpack.c.b16 %v789, %v788
    %v974 = vpack.c.b16 %v791, %v790
    %v975 = vpack.c.b16 %v793, %v792
    %v976 = vpack.c.b16 %v795, %v794
    %v977 = vpack.c.b16 %v797, %v796
    %v978 = vpack.c.b16 %v799, %v798
    %v979 = vpack.c.b16 %v801, %v800
    %v980 = vpack.c.b16 %v803, %v802
    %v981 = vpack.c.b16 %v805, %v804
    %v982 = vpack.c.b16 %v807, %v806
    %v983 = vpack.c.b16 %v809, %v808
    %v984 = vpack.c.b16 %v811, %v810
    %v985 = vpack.c.b16 %v813, %v812
    %v986 = vpack.c.b16 %v815, %v814
    %v987 = vpack.c.b16 %v817, %v816
    %v988 = vpack.c.b16 %v819, %v818
    %v989 = vpack.c.b16 %v821, %v820
    %v990 = vpack.c.b16 %v823, %v822
    %v991 = vpack.c.b16 %v825, %v824
    %v992 = vpack.c.b16 %v827, %v826
    %v993 = vpack.c.b16 %v829, %v828
    %v994 = vpack.c.b16 %v831, %v830
    %v995 = vpack.c.b16 %v833, %v832
    %v996 = vpack.c.b16 %v835, %v834
    %v997 = vpack.c.b16 %v837, %v836
    %v998 = vpack.c.b16 %v839, %v838
    %v999 = vpack.c.b16 %v841, %v840
    %v1000 = vpack.c.b16 %v843, %v842
    %v1001 = vpack.c.b16 %v845, %v844
    %v1002 = vpack.c.b16 %v847, %v846
    %v1003 = vpack.c.b16 %v849, %v848
    %v1004 = vpack.c.b16 %v851, %v850
    %v1005 = vpack.c.b16 %v853, %v852
    %v1006 = vpack.c.b16 %v855, %v854
    %v1007 = vpack.c.b16 %v857, %v856
    %v1008 = vpack.c.b16 %v859, %v858
    %v1009 = vpack.c.b16 %v861, %v860
    %v1010 = vpack.c.b16 %v863, %v862
    %v1011 = vpack.c.b16 %v865, %v864
    %v1012 = vpack.c.b16 %v867, %v866
    %v1013 = vpack.c.b16 %v869, %v868
    %v1014 = vpack.c.b16 %v871, %v870
    %v1015 = vpack.c.b16 %v873, %v872
    %v1016 = vpack.c.b16 %v875, %v874
    %v1017 = vpack.c.b16 %v877, %v876
    %v1018 = vpack.c.b16 %v879, %v878
    %v1019 = vpack.c.b16 %v881, %v880
    %v1020 = vpack.c.b16 %v883, %v882
    %v1021 = vpack.c.b16 %v885, %v884
    %v1022 = vpack.c.b16 %v887, %v886
    %v1023 = vpack.c.b16 %v889, %v888
    %v1024 = vpack.c.b16 %v891, %v890
    %v1025 = vpack.c.b16 %v893, %v892
    %v1026 = vpack.c.b16 %v895, %v894
    %v1027 = vpack.c.b16 %v897, %v896
    %v1028 = vpack.c.b16 %v899, %v898
    %v1029 = vpack.c.b16 %v901, %v900
    %1158 = vmatprep.subr.bf16.mxu0 0
    %1159 = vmatpush1.bf16.msra.mxu0 %v902
    %1160 = vmatprep.subr.bf16.mxu0 0
    %1161 = vmatpush1.bf16.msra.mxu0 %v903
    %1162 = vmatprep.subr.bf16.mxu0 0
    %1163 = vmatpush1.bf16.msra.mxu0 %v904
    %1164 = vmatprep.subr.bf16.mxu0 0
    %1165 = vmatpush1.bf16.msra.mxu0 %v905
    %1166 = vmatprep.subr.bf16.mxu0 0
    %1167 = vmatpush1.bf16.msra.mxu0 %v906
    %1168 = vmatprep.subr.bf16.mxu0 0
    %1169 = vmatpush1.bf16.msra.mxu0 %v907
    %1170 = vmatprep.subr.bf16.mxu0 0
    %1171 = vmatpush1.bf16.msra.mxu0 %v908
    %1172 = vmatprep.subr.bf16.mxu0 0
    %1173 = vmatpush1.bf16.msra.mxu0 %v909
    %1174 = vmatprep.subr.bf16.mxu0 0
    %1175 = vmatpush1.bf16.msra.mxu0 %v910
    %1176 = vmatprep.subr.bf16.mxu0 0
    %1177 = vmatpush1.bf16.msra.mxu0 %v911
    %1178 = vmatprep.subr.bf16.mxu0 0
    %1179 = vmatpush1.bf16.msra.mxu0 %v912
    %1180 = vmatprep.subr.bf16.mxu0 0
    %1181 = vmatpush1.bf16.msra.mxu0 %v913
    %1182 = vmatprep.subr.bf16.mxu0 0
    %1183 = vmatpush1.bf16.msra.mxu0 %v914
    %1184 = vmatprep.subr.bf16.mxu0 0
    %1185 = vmatpush1.bf16.msra.mxu0 %v915
    %1186 = vmatprep.subr.bf16.mxu0 0
    %1187 = vmatpush1.bf16.msra.mxu0 %v916
    %1188 = vmatprep.subr.bf16.mxu0 0
    %1189 = vmatpush1.bf16.msra.mxu0 %v917
    %1190 = vmatprep.mubr.bf16.mxu0 %v112
    %1191 = vmatmul.mubr.bf16.gmra.mrb[0].mxu0 %v111
    %v1192 = vpop.f32.mrb[0].mxu0
    %v1193 = vadd.f32 %v388, %v1192
    %v1194 = vpop.f32.mrb[0].mxu0
    %v1195 = vpop.f32.mrb[0].mxu0
    %v1196 = vpop.f32.mrb[0].mxu0
    %1197 = vdwg.mxu0
    %1198 = vmatprep.subr.bf16.mxu0 0
    %1199 = vmatpush1.bf16.msra.mxu0 %v918
    %1200 = vmatprep.subr.bf16.mxu0 0
    %1201 = vmatpush1.bf16.msra.mxu0 %v919
    %1202 = vmatprep.subr.bf16.mxu0 0
    %1203 = vmatpush1.bf16.msra.mxu0 %v920
    %1204 = vmatprep.subr.bf16.mxu0 0
    %1205 = vmatpush1.bf16.msra.mxu0 %v921
    %1206 = vmatprep.subr.bf16.mxu0 0
    %1207 = vmatpush1.bf16.msra.mxu0 %v922
    %1208 = vmatprep.subr.bf16.mxu0 0
    %1209 = vmatpush1.bf16.msra.mxu0 %v923
    %1210 = vmatprep.subr.bf16.mxu0 0
    %1211 = vmatpush1.bf16.msra.mxu0 %v924
    %1212 = vmatprep.subr.bf16.mxu0 0
    %1213 = vmatpush1.bf16.msra.mxu0 %v925
    %1214 = vmatprep.subr.bf16.mxu0 0
    %1215 = vmatpush1.bf16.msra.mxu0 %v926
    %1216 = vmatprep.subr.bf16.mxu0 0
    %1217 = vmatpush1.bf16.msra.mxu0 %v927
    %1218 = vmatprep.subr.bf16.mxu0 0
    %1219 = vmatpush1.bf16.msra.mxu0 %v928
    %1220 = vmatprep.subr.bf16.mxu0 0
    %1221 = vmatpush1.bf16.msra.mxu0 %v929
    %1222 = vmatprep.subr.bf16.mxu0 0
    %1223 = vmatpush1.bf16.msra.mxu0 %v930
    %1224 = vmatprep.subr.bf16.mxu0 0
    %1225 = vmatpush1.bf16.msra.mxu0 %v931
    %1226 = vmatprep.subr.bf16.mxu0 0
    %1227 = vmatpush1.bf16.msra.mxu0 %v932
    %1228 = vmatprep.subr.bf16.mxu0 0
    %1229 = vmatpush1.bf16.msra.mxu0 %v933
    %1230 = vmatprep.mubr.bf16.mxu0 %v114
    %1231 = vmatmul.mubr.bf16.gmra.mrb[0].mxu0 %v113
    %v1232 = vpop.f32.mrb[0].mxu0
    %v1233 = vadd.f32 %v1193, %v1232
    %v1234 = vpop.f32.mrb[0].mxu0
    %v1235 = vpop.f32.mrb[0].mxu0
    %v1236 = vpop.f32.mrb[0].mxu0
    %1237 = vdwg.mxu0
    %1238 = vmatprep.subr.bf16.mxu0 0
    %1239 = vmatpush1.bf16.msra.mxu0 %v934
    %1240 = vmatprep.subr.bf16.mxu0 0
    %1241 = vmatpush1.bf16.msra.mxu0 %v935
    %1242 = vmatprep.subr.bf16.mxu0 0
    %1243 = vmatpush1.bf16.msra.mxu0 %v936
    %1244 = vmatprep.subr.bf16.mxu0 0
    %1245 = vmatpush1.bf16.msra.mxu0 %v937
    %1246 = vmatprep.subr.bf16.mxu0 0
    %1247 = vmatpush1.bf16.msra.mxu0 %v938
    %1248 = vmatprep.subr.bf16.mxu0 0
    %1249 = vmatpush1.bf16.msra.mxu0 %v939
    %1250 = vmatprep.subr.bf16.mxu0 0
    %1251 = vmatpush1.bf16.msra.mxu0 %v940
    %1252 = vmatprep.subr.bf16.mxu0 0
    %1253 = vmatpush1.bf16.msra.mxu0 %v941
    %1254 = vmatprep.subr.bf16.mxu0 0
    %1255 = vmatpush1.bf16.msra.mxu0 %v942
    %1256 = vmatprep.subr.bf16.mxu0 0
    %1257 = vmatpush1.bf16.msra.mxu0 %v943
    %1258 = vmatprep.subr.bf16.mxu0 0
    %1259 = vmatpush1.bf16.msra.mxu0 %v944
    %1260 = vmatprep.subr.bf16.mxu0 0
    %1261 = vmatpush1.bf16.msra.mxu0 %v945
    %1262 = vmatprep.subr.bf16.mxu0 0
    %1263 = vmatpush1.bf16.msra.mxu0 %v946
    %1264 = vmatprep.subr.bf16.mxu0 0
    %1265 = vmatpush1.bf16.msra.mxu0 %v947
    %1266 = vmatprep.subr.bf16.mxu0 0
    %1267 = vmatpush1.bf16.msra.mxu0 %v948
    %1268 = vmatprep.subr.bf16.mxu0 0
    %1269 = vmatpush1.bf16.msra.mxu0 %v949
    %1270 = vmatprep.mubr.bf16.mxu0 %v116
    %1271 = vmatmul.mubr.bf16.gmra.mrb[0].mxu0 %v115
    %v1272 = vpop.f32.mrb[0].mxu0
    %v1273 = vadd.f32 %v1233, %v1272
    %v1274 = vpop.f32.mrb[0].mxu0
    %v1275 = vpop.f32.mrb[0].mxu0
    %v1276 = vpop.f32.mrb[0].mxu0
    %1277 = vdwg.mxu0
    %1278 = vmatprep.subr.bf16.mxu0 0
    %1279 = vmatpush1.bf16.msra.mxu0 %v950
    %1280 = vmatprep.subr.bf16.mxu0 0
    %1281 = vmatpush1.bf16.msra.mxu0 %v951
    %1282 = vmatprep.subr.bf16.mxu0 0
    %1283 = vmatpush1.bf16.msra.mxu0 %v952
    %1284 = vmatprep.subr.bf16.mxu0 0
    %1285 = vmatpush1.bf16.msra.mxu0 %v953
    %1286 = vmatprep.subr.bf16.mxu0 0
    %1287 = vmatpush1.bf16.msra.mxu0 %v954
    %1288 = vmatprep.subr.bf16.mxu0 0
    %1289 = vmatpush1.bf16.msra.mxu0 %v955
    %1290 = vmatprep.subr.bf16.mxu0 0
    %1291 = vmatpush1.bf16.msra.mxu0 %v956
    %1292 = vmatprep.subr.bf16.mxu0 0
    %1293 = vmatpush1.bf16.msra.mxu0 %v957
    %1294 = vmatprep.subr.bf16.mxu0 0
    %1295 = vmatpush1.bf16.msra.mxu0 %v958
    %1296 = vmatprep.subr.bf16.mxu0 0
    %1297 = vmatpush1.bf16.msra.mxu0 %v959
    %1298 = vmatprep.subr.bf16.mxu0 0
    %1299 = vmatpush1.bf16.msra.mxu0 %v960
    %1300 = vmatprep.subr.bf16.mxu0 0
    %1301 = vmatpush1.bf16.msra.mxu0 %v961
    %1302 = vmatprep.subr.bf16.mxu0 0
    %1303 = vmatpush1.bf16.msra.mxu0 %v962
    %1304 = vmatprep.subr.bf16.mxu0 0
    %1305 = vmatpush1.bf16.msra.mxu0 %v963
    %1306 = vmatprep.subr.bf16.mxu0 0
    %1307 = vmatpush1.bf16.msra.mxu0 %v964
    %1308 = vmatprep.subr.bf16.mxu0 0
    %1309 = vmatpush1.bf16.msra.mxu0 %v965
    %1310 = vmatprep.mubr.bf16.mxu0 %v118
    %1311 = vmatmul.mubr.bf16.gmra.mrb[0].mxu0 %v117
    %v1312 = vpop.f32.mrb[0].mxu0
    %v1313 = vadd.f32 %v1273, %v1312
    %v1314 = vpop.f32.mrb[0].mxu0
    %v1315 = vpop.f32.mrb[0].mxu0
    %v1316 = vpop.f32.mrb[0].mxu0
    %1317 = vdwg.mxu0
    %1318 = vmatprep.subr.bf16.mxu0 0
    %1319 = vmatpush1.bf16.msra.mxu0 %v966
    %1320 = vmatprep.subr.bf16.mxu0 0
    %1321 = vmatpush1.bf16.msra.mxu0 %v967
    %1322 = vmatprep.subr.bf16.mxu0 0
    %1323 = vmatpush1.bf16.msra.mxu0 %v968
    %1324 = vmatprep.subr.bf16.mxu0 0
    %1325 = vmatpush1.bf16.msra.mxu0 %v969
    %1326 = vmatprep.subr.bf16.mxu0 0
    %1327 = vmatpush1.bf16.msra.mxu0 %v970
    %1328 = vmatprep.subr.bf16.mxu0 0
    %1329 = vmatpush1.bf16.msra.mxu0 %v971
    %1330 = vmatprep.subr.bf16.mxu0 0
    %1331 = vmatpush1.bf16.msra.mxu0 %v972
    %1332 = vmatprep.subr.bf16.mxu0 0
    %1333 = vmatpush1.bf16.msra.mxu0 %v973
    %1334 = vmatprep.subr.bf16.mxu0 0
    %1335 = vmatpush1.bf16.msra.mxu0 %v974
    %1336 = vmatprep.subr.bf16.mxu0 0
    %1337 = vmatpush1.bf16.msra.mxu0 %v975
    %1338 = vmatprep.subr.bf16.mxu0 0
    %1339 = vmatpush1.bf16.msra.mxu0 %v976
    %1340 = vmatprep.subr.bf16.mxu0 0
    %1341 = vmatpush1.bf16.msra.mxu0 %v977
    %1342 = vmatprep.subr.bf16.mxu0 0
    %1343 = vmatpush1.bf16.msra.mxu0 %v978
    %1344 = vmatprep.subr.bf16.mxu0 0
    %1345 = vmatpush1.bf16.msra.mxu0 %v979
    %1346 = vmatprep.subr.bf16.mxu0 0
    %1347 = vmatpush1.bf16.msra.mxu0 %v980
    %1348 = vmatprep.subr.bf16.mxu0 0
    %1349 = vmatpush1.bf16.msra.mxu0 %v981
    %1350 = vmatprep.mubr.bf16.mxu0 %v120
    %1351 = vmatmul.mubr.bf16.gmra.mrb[0].mxu0 %v119
    %v1352 = vpop.f32.mrb[0].mxu0
    %v1353 = vadd.f32 %v1313, %v1352
    %v1354 = vpop.f32.mrb[0].mxu0
    %v1355 = vpop.f32.mrb[0].mxu0
    %v1356 = vpop.f32.mrb[0].mxu0
    %1357 = vdwg.mxu0
    %1358 = vmatprep.subr.bf16.mxu0 0
    %1359 = vmatpush1.bf16.msra.mxu0 %v982
    %1360 = vmatprep.subr.bf16.mxu0 0
    %1361 = vmatpush1.bf16.msra.mxu0 %v983
    %1362 = vmatprep.subr.bf16.mxu0 0
    %1363 = vmatpush1.bf16.msra.mxu0 %v984
    %1364 = vmatprep.subr.bf16.mxu0 0
    %1365 = vmatpush1.bf16.msra.mxu0 %v985
    %1366 = vmatprep.subr.bf16.mxu0 0
    %1367 = vmatpush1.bf16.msra.mxu0 %v986
    %1368 = vmatprep.subr.bf16.mxu0 0
    %1369 = vmatpush1.bf16.msra.mxu0 %v987
    %1370 = vmatprep.subr.bf16.mxu0 0
    %1371 = vmatpush1.bf16.msra.mxu0 %v988
    %1372 = vmatprep.subr.bf16.mxu0 0
    %1373 = vmatpush1.bf16.msra.mxu0 %v989
    %1374 = vmatprep.subr.bf16.mxu0 0
    %1375 = vmatpush1.bf16.msra.mxu0 %v990
    %1376 = vmatprep.subr.bf16.mxu0 0
    %1377 = vmatpush1.bf16.msra.mxu0 %v991
    %1378 = vmatprep.subr.bf16.mxu0 0
    %1379 = vmatpush1.bf16.msra.mxu0 %v992
    %1380 = vmatprep.subr.bf16.mxu0 0
    %1381 = vmatpush1.bf16.msra.mxu0 %v993
    %1382 = vmatprep.subr.bf16.mxu0 0
    %1383 = vmatpush1.bf16.msra.mxu0 %v994
    %1384 = vmatprep.subr.bf16.mxu0 0
    %1385 = vmatpush1.bf16.msra.mxu0 %v995
    %1386 = vmatprep.subr.bf16.mxu0 0
    %1387 = vmatpush1.bf16.msra.mxu0 %v996
    %1388 = vmatprep.subr.bf16.mxu0 0
    %1389 = vmatpush1.bf16.msra.mxu0 %v997
    %1390 = vmatprep.mubr.bf16.mxu0 %v122
    %1391 = vmatmul.mubr.bf16.gmra.mrb[0].mxu0 %v121
    %v1392 = vpop.f32.mrb[0].mxu0
    %v1393 = vadd.f32 %v1353, %v1392
    %v1394 = vpop.f32.mrb[0].mxu0
    %v1395 = vpop.f32.mrb[0].mxu0
    %v1396 = vpop.f32.mrb[0].mxu0
    %1397 = vdwg.mxu0
    %1398 = vmatprep.subr.bf16.mxu0 0
    %1399 = vmatpush1.bf16.msra.mxu0 %v998
    %1400 = vmatprep.subr.bf16.mxu0 0
    %1401 = vmatpush1.bf16.msra.mxu0 %v999
    %1402 = vmatprep.subr.bf16.mxu0 0
    %1403 = vmatpush1.bf16.msra.mxu0 %v1000
    %1404 = vmatprep.subr.bf16.mxu0 0
    %1405 = vmatpush1.bf16.msra.mxu0 %v1001
    %1406 = vmatprep.subr.bf16.mxu0 0
    %1407 = vmatpush1.bf16.msra.mxu0 %v1002
    %1408 = vmatprep.subr.bf16.mxu0 0
    %1409 = vmatpush1.bf16.msra.mxu0 %v1003
    %1410 = vmatprep.subr.bf16.mxu0 0
    %1411 = vmatpush1.bf16.msra.mxu0 %v1004
    %1412 = vmatprep.subr.bf16.mxu0 0
    %1413 = vmatpush1.bf16.msra.mxu0 %v1005
    %1414 = vmatprep.subr.bf16.mxu0 0
    %1415 = vmatpush1.bf16.msra.mxu0 %v1006
    %1416 = vmatprep.subr.bf16.mxu0 0
    %1417 = vmatpush1.bf16.msra.mxu0 %v1007
    %1418 = vmatprep.subr.bf16.mxu0 0
    %1419 = vmatpush1.bf16.msra.mxu0 %v1008
    %1420 = vmatprep.subr.bf16.mxu0 0
    %1421 = vmatpush1.bf16.msra.mxu0 %v1009
    %1422 = vmatprep.subr.bf16.mxu0 0
    %1423 = vmatpush1.bf16.msra.mxu0 %v1010
    %1424 = vmatprep.subr.bf16.mxu0 0
    %1425 = vmatpush1.bf16.msra.mxu0 %v1011
    %1426 = vmatprep.subr.bf16.mxu0 0
    %1427 = vmatpush1.bf16.msra.mxu0 %v1012
    %1428 = vmatprep.subr.bf16.mxu0 0
    %1429 = vmatpush1.bf16.msra.mxu0 %v1013
    %1430 = vmatprep.mubr.bf16.mxu0 %v124
    %1431 = vmatmul.mubr.bf16.gmra.mrb[0].mxu0 %v123
    %v1432 = vpop.f32.mrb[0].mxu0
    %v1433 = vadd.f32 %v1393, %v1432
    %v1434 = vpop.f32.mrb[0].mxu0
    %v1435 = vpop.f32.mrb[0].mxu0
    %v1436 = vpop.f32.mrb[0].mxu0
    %1437 = vdwg.mxu0
    %1438 = vmatprep.subr.bf16.mxu0 0
    %1439 = vmatpush1.bf16.msra.mxu0 %v1014
    %1440 = vmatprep.subr.bf16.mxu0 0
    %1441 = vmatpush1.bf16.msra.mxu0 %v1015
    %1442 = vmatprep.subr.bf16.mxu0 0
    %1443 = vmatpush1.bf16.msra.mxu0 %v1016
    %1444 = vmatprep.subr.bf16.mxu0 0
    %1445 = vmatpush1.bf16.msra.mxu0 %v1017
    %1446 = vmatprep.subr.bf16.mxu0 0
    %1447 = vmatpush1.bf16.msra.mxu0 %v1018
    %1448 = vmatprep.subr.bf16.mxu0 0
    %1449 = vmatpush1.bf16.msra.mxu0 %v1019
    %1450 = vmatprep.subr.bf16.mxu0 0
    %1451 = vmatpush1.bf16.msra.mxu0 %v1020
    %1452 = vmatprep.subr.bf16.mxu0 0
    %1453 = vmatpush1.bf16.msra.mxu0 %v1021
    %1454 = vmatprep.subr.bf16.mxu0 0
    %1455 = vmatpush1.bf16.msra.mxu0 %v1022
    %1456 = vmatprep.subr.bf16.mxu0 0
    %1457 = vmatpush1.bf16.msra.mxu0 %v1023
    %1458 = vmatprep.subr.bf16.mxu0 0
    %1459 = vmatpush1.bf16.msra.mxu0 %v1024
    %1460 = vmatprep.subr.bf16.mxu0 0
    %1461 = vmatpush1.bf16.msra.mxu0 %v1025
    %1462 = vmatprep.subr.bf16.mxu0 0
    %1463 = vmatpush1.bf16.msra.mxu0 %v1026
    %1464 = vmatprep.subr.bf16.mxu0 0
    %1465 = vmatpush1.bf16.msra.mxu0 %v1027
    %1466 = vmatprep.subr.bf16.mxu0 0
    %1467 = vmatpush1.bf16.msra.mxu0 %v1028
    %1468 = vmatprep.subr.bf16.mxu0 0
    %1469 = vmatpush1.bf16.msra.mxu0 %v1029
    %1470 = vmatprep.mubr.bf16.mxu0 %v126
    %1471 = vmatmul.mubr.bf16.gmra.mrb[0].mxu0 %v125
    %v1472 = vpop.f32.mrb[0].mxu0
    %v1473 = vadd.f32 %v1433, %v1472
    %v1474 = vpop.f32.mrb[0].mxu0
    %v1475 = vpop.f32.mrb[0].mxu0
    %v1476 = vpop.f32.mrb[0].mxu0
    %1477 = vdwg.mxu0
    %v1478 = vmax.f32 %v1473, 0.0
    %v1479 = vld [vmem:[%s3] sm:$0x3]
    %v1480 = vmul.f32 %v1478, %v1479
    %1481 = vst [vmem:[#allocation2] sm:$0x3] %v1480
    // Predicated region
    $region18: #{encoder_cnn_forward.3} parent=1 // pred_check
      _
    $region19: #{encoder_cnn_forward.3} parent=1 // pred_check_branch
      %1483 = sbr.rel (0) target = $region21
    $region20: #{encoder_cnn_forward.3} parent=1 // pred_region
      %s1485 = ssub.s32 32, 32
      %1486 = vsyncadd [#allocation3], %s1485
      %s1488 = sshll.u32 [#allocation2], 4
      %s1489 = int_to_ptr.vmem [resolvable:$true] %s1488
      %1491 = dma.vmem_to_hbm [thread:$0]  %s1489, 32, %s4, [#allocation3]
    $region21: #{encoder_cnn_forward.3} parent=1 // pred_fallthru
      _
    // Predicated region
    $region22: #{encoder_cnn_forward.3} parent=1 // pred_check
      _
    $region23: #{encoder_cnn_forward.3} parent=1 // pred_check_branch
      %1493 = sbr.rel (0) target = $region25
    $region24: #{encoder_cnn_forward.3} parent=1 // pred_region
      %1494 = dma.done [#allocation3], 32
    $region25: #{encoder_cnn_forward.3} parent=1 // pred_fallthru
      _
    %1495 = vsyncpa [#allocation3], 1

</llo_original>
